<compile_context>
chip_gen: v7x
topology: tpu7x:2x2x1
jax: 0.10.0
libtpu: 0.0.40
codegen_flags: <defaults>
</compile_context>

<pallas_src>
import functools

import numpy as np

import jax
import jax.numpy as jnp
from jax.experimental import pallas as pl
from jax.experimental.pallas import tpu as pltpu

_LANE = 128
_CONV_ORDER = ("c03", "c11", "c13", "c23a", "c23b", "c01")


def _round_up(x, m):
    return (x + m - 1) // m * m


# ----------------------------------------------------------------------------
# Host-side border masks for dilated 3x3 convs (passed as a kernel input)
# ----------------------------------------------------------------------------
def _tap_masks(d, H, W):
    """Static 0/1 border masks (numpy) for the 9 taps of a dilated 3x3 conv."""
    HW = H * W
    pos = np.arange(HW)
    col = pos % W
    row = pos // W
    masks = []
    for kh in range(3):
        for kw in range(3):
            dh = (kh - 1) * d
            dw = (kw - 1) * d
            valid = ((col + dw >= 0) & (col + dw < W) &
                     (row + dh >= 0) & (row + dh < H))
            masks.append(valid.astype(np.float32).reshape(1, HW))
    return masks


def _build_mask_pack(dilations, H, W):
    """Pack masks for all unique dilations: (n_unique*9, H*W) + dil->row offset."""
    rows = []
    offs = {}
    for d in sorted(set(int(d) for d in dilations)):
        offs[d] = len(rows) * 9 // 9 * 9 if rows else 0   # = current row count
        offs[d] = sum(r.shape[0] for r in rows)
        rows.extend(_tap_masks(d, H, W))
    return jnp.asarray(np.concatenate(rows, axis=0)), offs


# ----------------------------------------------------------------------------
# Fused kernel
# ----------------------------------------------------------------------------
def _submeter_kernel(x_ref, w_ref, sc_ref, sh_ref, m_ref, o_ref, *,
                     H, W, metas, mask_offs):
    """Entire MFRF_Dila_Submeter forward for one batch element.

    x_ref : (1, Cin_pad, H*W)   channel-major input
    w_ref : (Cout, K_total)     all conv weights, 128-lane-aligned slabs
    sc_ref: (Cout, n_convs)     per-conv affine scale (BN folded; 1.0 if none)
    sh_ref: (Cout, n_convs)     per-conv affine shift (conv bias folded in)
    m_ref : (n_dil*9, H*W)      precomputed 0/1 border masks per dilation/tap
    o_ref : (1, Cout, H*W)
    """
    HW = H * W

    # Hoist: load each dilation's 9 masks once per grid step.
    masks = {
        d: [m_ref[moff + t:moff + t + 1, :] for t in range(9)]
        for d, moff in mask_offs.items()
    }

    def im2col(a, d):
        """a: (Cin, H*W) -> (9*Cin, H*W) im2col matrix for dilation d."""
        patches = []
        for t in range(9):
            kh, kw = t // 3, t % 3
            s = (kh - 1) * d * W + (kw - 1) * d        # flattened tap offset
            shifted = a if s == 0 else pltpu.roll(a, shift=(-s) % HW, axis=1)
            if t == 4:                                  # center tap: mask == 1
                patches.append(shifted)
            else:
                patches.append(shifted * masks[d][t])   # zero the halo
        return jnp.concatenate(patches, axis=0)

    def conv(a, meta):
        off, K, ks, d, col = meta
        w = w_ref[:, off:off + K]                               # (Cout, K)
        rhs = im2col(a, d) if ks == 3 else a
        acc = jnp.dot(w, rhs, preferred_element_type=jnp.float32)  # (Cout, HW)
        sc = sc_ref[:, col:col + 1]
        sh = sh_ref[:, col:col + 1]
        return jnp.maximum(acc * sc + sh, 0.0)          # affine(BN+bias) + ReLU

    def en_block(a, bm):                                # MFRF_En_Dila
        m03 = conv(a, bm["c03"])
        m11 = conv(m03, bm["c11"])
        m13 = conv(m03, bm["c13"])
        m23 = conv(conv(m03, bm["c23a"]), bm["c23b"])
        m01 = conv(jnp.concatenate([m11, m13, m23], axis=0), bm["c01"])
        return m01, m01 + m03

    def de_block(a, skip, bm):                          # MFRF_De_Dila_Skip
        m03 = conv(jnp.concatenate([skip, a], axis=0), bm["c03"])
        m11 = conv(m03, bm["c11"])
        m13 = conv(m03, bm["c13"])
        m23 = conv(conv(m03, bm["c23a"]), bm["c23b"])
        m01 = conv(jnp.concatenate([m11, m13, m23], axis=0), bm["c01"])
        return m01 + m03

    x = x_ref[0].astype(jnp.float32)                    # (Cin_pad, H*W)
    skip1, en = en_block(x, metas["encoder"])
    _skip2, mid = en_block(en, metas["mid"])
    de = de_block(mid, skip1, metas["decoder"])
    o_ref[0] = de.astype(o_ref.dtype)


# ----------------------------------------------------------------------------
# Wrapper around pallas_call
# ----------------------------------------------------------------------------
def mfrf_dila_submeter(x_nchw, w_pack, sc_pack, sh_pack, *, metas, c_out):
    N, C, H, W = x_nchw.shape
    HW = H * W
    cin_pad = _round_up(C, 8)

    # NCHW -> (N, C, H*W) channel-major (pure reshape); pad channels to sublane mult.
    x = x_nchw.reshape(N, C, HW)
    if cin_pad > C:
        x = jnp.pad(x, ((0, 0), (0, cin_pad - C), (0, 0)))

    # Border masks for every dilation used by the three blocks.
    dilations = [bm["c03"][3] for bm in metas.values()]
    mask_pack, mask_offs = _build_mask_pack(dilations, H, W)
    n_mask_rows = mask_pack.shape[0]

    lw = w_pack.shape[1]
    ncols = sc_pack.shape[1]

    flops = 0
    for bm in metas.values():
        for (_off, K, _ks, _d, _col) in bm.values():
            flops += 2 * N * HW * K * c_out
    bytes_accessed = 4 * (x.size + w_pack.size + sc_pack.size + sh_pack.size
                          + mask_pack.size + N * c_out * HW)

    kernel = functools.partial(_submeter_kernel, H=H, W=W, metas=metas,
                               mask_offs=mask_offs)
    out = pl.pallas_call(
        kernel,
        out_shape=jax.ShapeDtypeStruct((N, c_out, HW), jnp.float32),
        grid=(N,),
        in_specs=[
            pl.BlockSpec((1, cin_pad, HW), lambda n: (n, 0, 0)),
            pl.BlockSpec((c_out, lw), lambda n: (0, 0)),
            pl.BlockSpec((c_out, ncols), lambda n: (0, 0)),
            pl.BlockSpec((c_out, ncols), lambda n: (0, 0)),
            pl.BlockSpec((n_mask_rows, HW), lambda n: (0, 0)),
        ],
        out_specs=pl.BlockSpec((1, c_out, HW), lambda n: (n, 0, 0)),
        compiler_params=pltpu.CompilerParams(
            dimension_semantics=("parallel",)),
        cost_estimate=pl.CostEstimate(
            flops=flops, transcendentals=0, bytes_accessed=bytes_accessed),
    )(x, w_pack, sc_pack, sh_pack, mask_pack)

    # (N, Cout, H*W) is already channel-major -> NCHW via free reshape.
    return out.reshape(N, c_out, H, W)


# ----------------------------------------------------------------------------
# Parameter initialization (deterministic, synthetic) + packing
# ----------------------------------------------------------------------------
def _init_conv(key, ks, cin, cout, bn, cin_pad=None):
    kw_, kb_, kg, kbt, km, kv = jax.random.split(key, 6)
    w = 0.1 * jax.random.normal(kw_, (cout, ks, ks, cin), jnp.float32)
    b = 0.1 * jax.random.normal(kb_, (cout,), jnp.float32)
    if bn:
        eps = 1e-5
        gamma = 1.0 + 0.1 * jax.random.normal(kg, (cout,), jnp.float32)
        beta = 0.1 * jax.random.normal(kbt, (cout,), jnp.float32)
        mean = 0.1 * jax.random.normal(km, (cout,), jnp.float32)
        var = 1.0 + 0.1 * jnp.abs(jax.random.normal(kv, (cout,), jnp.float32))
        scale = gamma / jnp.sqrt(var + eps)
        shift = beta - mean * scale
    else:
        scale = jnp.ones((cout,), jnp.float32)
        shift = jnp.zeros((cout,), jnp.float32)
    # Fold conv bias: (acc + b) * scale + shift == acc * scale + (shift + b * scale)
    shift = shift + b * scale
    if cin_pad is not None and cin_pad > cin:       # zero weights for padded channels
        w = jnp.pad(w, ((0, 0), (0, 0), (0, 0), (0, cin_pad - cin)))
        cin = cin_pad
    # (cout, kh, kw, ci) -> (cout, kh*kw*ci); matches im2col row order (tap, ci).
    return dict(w=w.reshape(cout, ks * ks * cin), scale=scale, shift=shift, ks=ks)


def _init_block(key, cin, cout, dil, cin_pad=None):
    ks_ = jax.random.split(key, 6)
    return dict(
        c03=_init_conv(ks_[0], 3, cin, cout, bn=True, cin_pad=cin_pad),   # DCBR_BB
        c11=_init_conv(ks_[1], 1, cout, cout, bn=False),                  # CR_BB 1x1
        c13=_init_conv(ks_[2], 3, cout, cout, bn=False),                  # DCR_BB
        c23a=_init_conv(ks_[3], 3, cout, cout, bn=False),                 # DCR_BB
        c23b=_init_conv(ks_[4], 3, cout, cout, bn=False),                 # DCR_BB
        c01=_init_conv(ks_[5], 1, 3 * cout, cout, bn=True),               # CBR_BB 1x1
        dil=int(dil),
    )


def _pack_params(blocks, cout):
    w_slabs, sc_cols, sh_cols = [], [], []
    metas = {}
    off = 0
    col = 0
    for bname in ("encoder", "mid", "decoder"):
        bp = blocks[bname]
        d = int(bp["dil"])
        bmeta = {}
        for cname in _CONV_ORDER:
            cp = bp[cname]
            K = cp["w"].shape[1]
            kpad = _round_up(K, _LANE)                       # 128-aligned lane slabs
            w_slabs.append(jnp.pad(cp["w"], ((0, 0), (0, kpad - K))))
            sc_cols.append(cp["scale"][:, None])
            sh_cols.append(cp["shift"][:, None])
            bmeta[cname] = (off, K, cp["ks"], d, col)
            off += kpad
            col += 1
        metas[bname] = bmeta
    w_pack = jnp.concatenate(w_slabs, axis=1)                # (cout, K_total)
    sc_pack = jnp.concatenate(sc_cols, axis=1)               # (cout, 18)
    sh_pack = jnp.concatenate(sh_cols, axis=1)               # (cout, 18)
    return w_pack, sc_pack, sh_pack, metas


def init_submeter(key, in_channel, out_channel, dila_list):
    k_enc, k_mid, k_dec = jax.random.split(key, 3)
    cin_pad = _round_up(in_channel, 8)
    blocks = dict(
        encoder=_init_block(k_enc, in_channel, out_channel, dila_list[0],
                            cin_pad=cin_pad),
        mid=_init_block(k_mid, out_channel, out_channel, dila_list[1]),
        decoder=_init_block(k_dec, 2 * out_channel, out_channel, dila_list[2]),
    )
    return _pack_params(blocks, out_channel)


# ----------------------------------------------------------------------------
if __name__ == "__main__":
    N, C_in, C_out, H, W = 2, 4, 8, 16, 16
    dila_list = (1, 2, 2)

    key = jax.random.PRNGKey(0)
    k_params, k_x = jax.random.split(key)
    w_pack, sc_pack, sh_pack, metas = init_submeter(k_params, C_in, C_out, dila_list)
    x = jax.random.normal(k_x, (N, C_in, H, W), jnp.float32)   # NCHW like PyTorch

    fwd = jax.jit(functools.partial(mfrf_dila_submeter, metas=metas, c_out=C_out))
    out = fwd(x, w_pack, sc_pack, sh_pack)
    out = jax.block_until_ready(out)

    assert out.shape == (N, C_out, H, W), out.shape
    assert bool(jnp.all(jnp.isfinite(out)))
    print("KERNEL_OK")
</pallas_src>

<mosaic_0001>
module attributes {stable_mosaic.version = 11 : i64} {
  func.func @_submeter_kernel(%arg0: i32, %arg1: memref<1x8x256xf32, #tpu.memory_space<vmem>>, %arg2: memref<8x2432xf32, #tpu.memory_space<vmem>>, %arg3: memref<8x18xf32, #tpu.memory_space<vmem>>, %arg4: memref<8x18xf32, #tpu.memory_space<vmem>>, %arg5: memref<18x256xf32, #tpu.memory_space<vmem>>, %arg6: memref<1x8x256xf32, #tpu.memory_space<vmem>>) attributes {dimension_semantics = [#tpu.dimension_semantics<parallel>], iteration_bounds = array<i64: 2>, scalar_prefetch = 0 : i64, scratch_operands = 0 : i64, tpu.core_type = #tpu.core_type<tc>, window_params = [{transform_indices = @transform_0, window_bounds = array<i64: 1, 8, 256>}, {pipeline_mode = #tpu.pipeline_mode<synchronous>, transform_indices = @transform_1, window_bounds = array<i64: 8, 2432>}, {pipeline_mode = #tpu.pipeline_mode<synchronous>, transform_indices = @transform_2, window_bounds = array<i64: 8, 18>}, {pipeline_mode = #tpu.pipeline_mode<synchronous>, transform_indices = @transform_3, window_bounds = array<i64: 8, 18>}, {pipeline_mode = #tpu.pipeline_mode<synchronous>, transform_indices = @transform_4, window_bounds = array<i64: 18, 256>}, {transform_indices = @transform_5, window_bounds = array<i64: 1, 8, 256>}]} {
    %c0 = arith.constant 0 : index
    %c0_0 = arith.constant 0 : index
    %0 = vector.load %arg5[%c0, %c0_0] : memref<18x256xf32, #tpu.memory_space<vmem>>, vector<1x256xf32>
    %c1 = arith.constant 1 : index
    %c0_1 = arith.constant 0 : index
    %1 = vector.load %arg5[%c1, %c0_1] : memref<18x256xf32, #tpu.memory_space<vmem>>, vector<1x256xf32>
    %c2 = arith.constant 2 : index
    %c0_2 = arith.constant 0 : index
    %2 = vector.load %arg5[%c2, %c0_2] : memref<18x256xf32, #tpu.memory_space<vmem>>, vector<1x256xf32>
    %c3 = arith.constant 3 : index
    %c0_3 = arith.constant 0 : index
    %3 = vector.load %arg5[%c3, %c0_3] : memref<18x256xf32, #tpu.memory_space<vmem>>, vector<1x256xf32>
    %c5 = arith.constant 5 : index
    %c0_4 = arith.constant 0 : index
    %4 = vector.load %arg5[%c5, %c0_4] : memref<18x256xf32, #tpu.memory_space<vmem>>, vector<1x256xf32>
    %c6 = arith.constant 6 : index
    %c0_5 = arith.constant 0 : index
    %5 = vector.load %arg5[%c6, %c0_5] : memref<18x256xf32, #tpu.memory_space<vmem>>, vector<1x256xf32>
    %c7 = arith.constant 7 : index
    %c0_6 = arith.constant 0 : index
    %6 = vector.load %arg5[%c7, %c0_6] : memref<18x256xf32, #tpu.memory_space<vmem>>, vector<1x256xf32>
    %c8 = arith.constant 8 : index
    %c0_7 = arith.constant 0 : index
    %7 = vector.load %arg5[%c8, %c0_7] : memref<18x256xf32, #tpu.memory_space<vmem>>, vector<1x256xf32>
    %c9 = arith.constant 9 : index
    %c0_8 = arith.constant 0 : index
    %8 = vector.load %arg5[%c9, %c0_8] : memref<18x256xf32, #tpu.memory_space<vmem>>, vector<1x256xf32>
    %c10 = arith.constant 10 : index
    %c0_9 = arith.constant 0 : index
    %9 = vector.load %arg5[%c10, %c0_9] : memref<18x256xf32, #tpu.memory_space<vmem>>, vector<1x256xf32>
    %c11 = arith.constant 11 : index
    %c0_10 = arith.constant 0 : index
    %10 = vector.load %arg5[%c11, %c0_10] : memref<18x256xf32, #tpu.memory_space<vmem>>, vector<1x256xf32>
    %c12 = arith.constant 12 : index
    %c0_11 = arith.constant 0 : index
    %11 = vector.load %arg5[%c12, %c0_11] : memref<18x256xf32, #tpu.memory_space<vmem>>, vector<1x256xf32>
    %c14 = arith.constant 14 : index
    %c0_12 = arith.constant 0 : index
    %12 = vector.load %arg5[%c14, %c0_12] : memref<18x256xf32, #tpu.memory_space<vmem>>, vector<1x256xf32>
    %c15 = arith.constant 15 : index
    %c0_13 = arith.constant 0 : index
    %13 = vector.load %arg5[%c15, %c0_13] : memref<18x256xf32, #tpu.memory_space<vmem>>, vector<1x256xf32>
    %c16 = arith.constant 16 : index
    %c0_14 = arith.constant 0 : index
    %14 = vector.load %arg5[%c16, %c0_14] : memref<18x256xf32, #tpu.memory_space<vmem>>, vector<1x256xf32>
    %c17 = arith.constant 17 : index
    %c0_15 = arith.constant 0 : index
    %15 = vector.load %arg5[%c17, %c0_15] : memref<18x256xf32, #tpu.memory_space<vmem>>, vector<1x256xf32>
    %c0_16 = arith.constant 0 : index
    %c0_17 = arith.constant 0 : index
    %c0_18 = arith.constant 0 : index
    %16 = vector.load %arg1[%c0_16, %c0_17, %c0_18] : memref<1x8x256xf32, #tpu.memory_space<vmem>>, vector<1x8x256xf32>
    %17 = vector.shape_cast %16 : vector<1x8x256xf32> to vector<8x256xf32>
    %c0_19 = arith.constant 0 : index
    %c0_20 = arith.constant 0 : index
    %18 = vector.load %arg2[%c0_19, %c0_20] : memref<8x2432xf32, #tpu.memory_space<vmem>>, vector<8x72xf32>
    %c17_i32 = arith.constant 17 : i32
    %19 = tpu.dynamic_rotate %17 by %c17_i32 dim 1 : vector<8x256xf32>, i32 -> vector<8x256xf32>
    %20 = vector.broadcast %0 : vector<1x256xf32> to vector<8x256xf32>
    %21 = arith.mulf %19, %20 : vector<8x256xf32>
    %c16_i32 = arith.constant 16 : i32
    %22 = tpu.dynamic_rotate %17 by %c16_i32 dim 1 : vector<8x256xf32>, i32 -> vector<8x256xf32>
    %23 = vector.broadcast %1 : vector<1x256xf32> to vector<8x256xf32>
    %24 = arith.mulf %22, %23 : vector<8x256xf32>
    %c15_i32 = arith.constant 15 : i32
    %25 = tpu.dynamic_rotate %17 by %c15_i32 dim 1 : vector<8x256xf32>, i32 -> vector<8x256xf32>
    %26 = vector.broadcast %2 : vector<1x256xf32> to vector<8x256xf32>
    %27 = arith.mulf %25, %26 : vector<8x256xf32>
    %c1_i32 = arith.constant 1 : i32
    %28 = tpu.dynamic_rotate %17 by %c1_i32 dim 1 : vector<8x256xf32>, i32 -> vector<8x256xf32>
    %29 = vector.broadcast %3 : vector<1x256xf32> to vector<8x256xf32>
    %30 = arith.mulf %28, %29 : vector<8x256xf32>
    %c255_i32 = arith.constant 255 : i32
    %31 = tpu.dynamic_rotate %17 by %c255_i32 dim 1 : vector<8x256xf32>, i32 -> vector<8x256xf32>
    %32 = vector.broadcast %4 : vector<1x256xf32> to vector<8x256xf32>
    %33 = arith.mulf %31, %32 : vector<8x256xf32>
    %c241_i32 = arith.constant 241 : i32
    %34 = tpu.dynamic_rotate %17 by %c241_i32 dim 1 : vector<8x256xf32>, i32 -> vector<8x256xf32>
    %35 = vector.broadcast %5 : vector<1x256xf32> to vector<8x256xf32>
    %36 = arith.mulf %34, %35 : vector<8x256xf32>
    %c240_i32 = arith.constant 240 : i32
    %37 = tpu.dynamic_rotate %17 by %c240_i32 dim 1 : vector<8x256xf32>, i32 -> vector<8x256xf32>
    %38 = vector.broadcast %6 : vector<1x256xf32> to vector<8x256xf32>
    %39 = arith.mulf %37, %38 : vector<8x256xf32>
    %c239_i32 = arith.constant 239 : i32
    %40 = tpu.dynamic_rotate %17 by %c239_i32 dim 1 : vector<8x256xf32>, i32 -> vector<8x256xf32>
    %41 = vector.broadcast %7 : vector<1x256xf32> to vector<8x256xf32>
    %42 = arith.mulf %40, %41 : vector<8x256xf32>
    %43 = tpu.concatenate %21, %24, %27, %30, %17, %33, %36, %39, %42 in 0 : vector<8x256xf32>, vector<8x256xf32>, vector<8x256xf32>, vector<8x256xf32>, vector<8x256xf32>, vector<8x256xf32>, vector<8x256xf32>, vector<8x256xf32>, vector<8x256xf32> -> vector<72x256xf32>
    %cst = arith.constant dense<0.000000e+00> : vector<8x256xf32>
    %44 = tpu.matmul %18, %43, %cst {dimension_numbers = #tpu.dot_dimension_numbers<[1], [0], [0], [1], [0, 0, 1, 1], [], []>} : vector<8x72xf32>, vector<72x256xf32>, vector<8x256xf32> -> vector<8x256xf32>
    %c0_21 = arith.constant 0 : index
    %c0_22 = arith.constant 0 : index
    %45 = vector.load %arg3[%c0_21, %c0_22] : memref<8x18xf32, #tpu.memory_space<vmem>>, vector<8x1xf32>
    %c0_23 = arith.constant 0 : index
    %c0_24 = arith.constant 0 : index
    %46 = vector.load %arg4[%c0_23, %c0_24] : memref<8x18xf32, #tpu.memory_space<vmem>>, vector<8x1xf32>
    %47 = vector.broadcast %45 : vector<8x1xf32> to vector<8x256xf32>
    %48 = arith.mulf %44, %47 : vector<8x256xf32>
    %49 = vector.broadcast %46 : vector<8x1xf32> to vector<8x256xf32>
    %50 = arith.addf %48, %49 : vector<8x256xf32>
    %cst_25 = arith.constant 0.000000e+00 : f32
    %51 = vector.broadcast %cst_25 : f32 to vector<8x256xf32>
    %52 = arith.maximumf %50, %51 : vector<8x256xf32>
    %c0_26 = arith.constant 0 : index
    %c128 = arith.constant 128 : index
    %53 = vector.load %arg2[%c0_26, %c128] : memref<8x2432xf32, #tpu.memory_space<vmem>>, vector<8x8xf32>
    %cst_27 = arith.constant dense<0.000000e+00> : vector<8x256xf32>
    %54 = tpu.matmul %53, %52, %cst_27 {dimension_numbers = #tpu.dot_dimension_numbers<[1], [0], [0], [1], [0, 0, 1, 1], [], []>} : vector<8x8xf32>, vector<8x256xf32>, vector<8x256xf32> -> vector<8x256xf32>
    %c0_28 = arith.constant 0 : index
    %c1_29 = arith.constant 1 : index
    %55 = vector.load %arg3[%c0_28, %c1_29] : memref<8x18xf32, #tpu.memory_space<vmem>>, vector<8x1xf32>
    %c0_30 = arith.constant 0 : index
    %c1_31 = arith.constant 1 : index
    %56 = vector.load %arg4[%c0_30, %c1_31] : memref<8x18xf32, #tpu.memory_space<vmem>>, vector<8x1xf32>
    %57 = vector.broadcast %55 : vector<8x1xf32> to vector<8x256xf32>
    %58 = arith.mulf %54, %57 : vector<8x256xf32>
    %59 = vector.broadcast %56 : vector<8x1xf32> to vector<8x256xf32>
    %60 = arith.addf %58, %59 : vector<8x256xf32>
    %cst_32 = arith.constant 0.000000e+00 : f32
    %61 = vector.broadcast %cst_32 : f32 to vector<8x256xf32>
    %62 = arith.maximumf %60, %61 : vector<8x256xf32>
    %c0_33 = arith.constant 0 : index
    %c256 = arith.constant 256 : index
    %63 = vector.load %arg2[%c0_33, %c256] : memref<8x2432xf32, #tpu.memory_space<vmem>>, vector<8x72xf32>
    %c17_i32_34 = arith.constant 17 : i32
    %64 = tpu.dynamic_rotate %52 by %c17_i32_34 dim 1 : vector<8x256xf32>, i32 -> vector<8x256xf32>
    %65 = vector.broadcast %0 : vector<1x256xf32> to vector<8x256xf32>
    %66 = arith.mulf %64, %65 : vector<8x256xf32>
    %c16_i32_35 = arith.constant 16 : i32
    %67 = tpu.dynamic_rotate %52 by %c16_i32_35 dim 1 : vector<8x256xf32>, i32 -> vector<8x256xf32>
    %68 = vector.broadcast %1 : vector<1x256xf32> to vector<8x256xf32>
    %69 = arith.mulf %67, %68 : vector<8x256xf32>
    %c15_i32_36 = arith.constant 15 : i32
    %70 = tpu.dynamic_rotate %52 by %c15_i32_36 dim 1 : vector<8x256xf32>, i32 -> vector<8x256xf32>
    %71 = vector.broadcast %2 : vector<1x256xf32> to vector<8x256xf32>
    %72 = arith.mulf %70, %71 : vector<8x256xf32>
    %c1_i32_37 = arith.constant 1 : i32
    %73 = tpu.dynamic_rotate %52 by %c1_i32_37 dim 1 : vector<8x256xf32>, i32 -> vector<8x256xf32>
    %74 = vector.broadcast %3 : vector<1x256xf32> to vector<8x256xf32>
    %75 = arith.mulf %73, %74 : vector<8x256xf32>
    %c255_i32_38 = arith.constant 255 : i32
    %76 = tpu.dynamic_rotate %52 by %c255_i32_38 dim 1 : vector<8x256xf32>, i32 -> vector<8x256xf32>
    %77 = vector.broadcast %4 : vector<1x256xf32> to vector<8x256xf32>
    %78 = arith.mulf %76, %77 : vector<8x256xf32>
    %c241_i32_39 = arith.constant 241 : i32
    %79 = tpu.dynamic_rotate %52 by %c241_i32_39 dim 1 : vector<8x256xf32>, i32 -> vector<8x256xf32>
    %80 = vector.broadcast %5 : vector<1x256xf32> to vector<8x256xf32>
    %81 = arith.mulf %79, %80 : vector<8x256xf32>
    %c240_i32_40 = arith.constant 240 : i32
    %82 = tpu.dynamic_rotate %52 by %c240_i32_40 dim 1 : vector<8x256xf32>, i32 -> vector<8x256xf32>
    %83 = vector.broadcast %6 : vector<1x256xf32> to vector<8x256xf32>
    %84 = arith.mulf %82, %83 : vector<8x256xf32>
    %c239_i32_41 = arith.constant 239 : i32
    %85 = tpu.dynamic_rotate %52 by %c239_i32_41 dim 1 : vector<8x256xf32>, i32 -> vector<8x256xf32>
    %86 = vector.broadcast %7 : vector<1x256xf32> to vector<8x256xf32>
    %87 = arith.mulf %85, %86 : vector<8x256xf32>
    %88 = tpu.concatenate %66, %69, %72, %75, %52, %78, %81, %84, %87 in 0 : vector<8x256xf32>, vector<8x256xf32>, vector<8x256xf32>, vector<8x256xf32>, vector<8x256xf32>, vector<8x256xf32>, vector<8x256xf32>, vector<8x256xf32>, vector<8x256xf32> -> vector<72x256xf32>
    %cst_42 = arith.constant dense<0.000000e+00> : vector<8x256xf32>
    %89 = tpu.matmul %63, %88, %cst_42 {dimension_numbers = #tpu.dot_dimension_numbers<[1], [0], [0], [1], [0, 0, 1, 1], [], []>} : vector<8x72xf32>, vector<72x256xf32>, vector<8x256xf32> -> vector<8x256xf32>
    %c0_43 = arith.constant 0 : index
    %c2_44 = arith.constant 2 : index
    %90 = vector.load %arg3[%c0_43, %c2_44] : memref<8x18xf32, #tpu.memory_space<vmem>>, vector<8x1xf32>
    %c0_45 = arith.constant 0 : index
    %c2_46 = arith.constant 2 : index
    %91 = vector.load %arg4[%c0_45, %c2_46] : memref<8x18xf32, #tpu.memory_space<vmem>>, vector<8x1xf32>
    %92 = vector.broadcast %90 : vector<8x1xf32> to vector<8x256xf32>
    %93 = arith.mulf %89, %92 : vector<8x256xf32>
    %94 = vector.broadcast %91 : vector<8x1xf32> to vector<8x256xf32>
    %95 = arith.addf %93, %94 : vector<8x256xf32>
    %cst_47 = arith.constant 0.000000e+00 : f32
    %96 = vector.broadcast %cst_47 : f32 to vector<8x256xf32>
    %97 = arith.maximumf %95, %96 : vector<8x256xf32>
    %c0_48 = arith.constant 0 : index
    %c384 = arith.constant 384 : index
    %98 = vector.load %arg2[%c0_48, %c384] : memref<8x2432xf32, #tpu.memory_space<vmem>>, vector<8x72xf32>
    %c17_i32_49 = arith.constant 17 : i32
    %99 = tpu.dynamic_rotate %52 by %c17_i32_49 dim 1 : vector<8x256xf32>, i32 -> vector<8x256xf32>
    %100 = vector.broadcast %0 : vector<1x256xf32> to vector<8x256xf32>
    %101 = arith.mulf %99, %100 : vector<8x256xf32>
    %c16_i32_50 = arith.constant 16 : i32
    %102 = tpu.dynamic_rotate %52 by %c16_i32_50 dim 1 : vector<8x256xf32>, i32 -> vector<8x256xf32>
    %103 = vector.broadcast %1 : vector<1x256xf32> to vector<8x256xf32>
    %104 = arith.mulf %102, %103 : vector<8x256xf32>
    %c15_i32_51 = arith.constant 15 : i32
    %105 = tpu.dynamic_rotate %52 by %c15_i32_51 dim 1 : vector<8x256xf32>, i32 -> vector<8x256xf32>
    %106 = vector.broadcast %2 : vector<1x256xf32> to vector<8x256xf32>
    %107 = arith.mulf %105, %106 : vector<8x256xf32>
    %c1_i32_52 = arith.constant 1 : i32
    %108 = tpu.dynamic_rotate %52 by %c1_i32_52 dim 1 : vector<8x256xf32>, i32 -> vector<8x256xf32>
    %109 = vector.broadcast %3 : vector<1x256xf32> to vector<8x256xf32>
    %110 = arith.mulf %108, %109 : vector<8x256xf32>
    %c255_i32_53 = arith.constant 255 : i32
    %111 = tpu.dynamic_rotate %52 by %c255_i32_53 dim 1 : vector<8x256xf32>, i32 -> vector<8x256xf32>
    %112 = vector.broadcast %4 : vector<1x256xf32> to vector<8x256xf32>
    %113 = arith.mulf %111, %112 : vector<8x256xf32>
    %c241_i32_54 = arith.constant 241 : i32
    %114 = tpu.dynamic_rotate %52 by %c241_i32_54 dim 1 : vector<8x256xf32>, i32 -> vector<8x256xf32>
    %115 = vector.broadcast %5 : vector<1x256xf32> to vector<8x256xf32>
    %116 = arith.mulf %114, %115 : vector<8x256xf32>
    %c240_i32_55 = arith.constant 240 : i32
    %117 = tpu.dynamic_rotate %52 by %c240_i32_55 dim 1 : vector<8x256xf32>, i32 -> vector<8x256xf32>
    %118 = vector.broadcast %6 : vector<1x256xf32> to vector<8x256xf32>
    %119 = arith.mulf %117, %118 : vector<8x256xf32>
    %c239_i32_56 = arith.constant 239 : i32
    %120 = tpu.dynamic_rotate %52 by %c239_i32_56 dim 1 : vector<8x256xf32>, i32 -> vector<8x256xf32>
    %121 = vector.broadcast %7 : vector<1x256xf32> to vector<8x256xf32>
    %122 = arith.mulf %120, %121 : vector<8x256xf32>
    %123 = tpu.concatenate %101, %104, %107, %110, %52, %113, %116, %119, %122 in 0 : vector<8x256xf32>, vector<8x256xf32>, vector<8x256xf32>, vector<8x256xf32>, vector<8x256xf32>, vector<8x256xf32>, vector<8x256xf32>, vector<8x256xf32>, vector<8x256xf32> -> vector<72x256xf32>
    %cst_57 = arith.constant dense<0.000000e+00> : vector<8x256xf32>
    %124 = tpu.matmul %98, %123, %cst_57 {dimension_numbers = #tpu.dot_dimension_numbers<[1], [0], [0], [1], [0, 0, 1, 1], [], []>} : vector<8x72xf32>, vector<72x256xf32>, vector<8x256xf32> -> vector<8x256xf32>
    %c0_58 = arith.constant 0 : index
    %c3_59 = arith.constant 3 : index
    %125 = vector.load %arg3[%c0_58, %c3_59] : memref<8x18xf32, #tpu.memory_space<vmem>>, vector<8x1xf32>
    %c0_60 = arith.constant 0 : index
    %c3_61 = arith.constant 3 : index
    %126 = vector.load %arg4[%c0_60, %c3_61] : memref<8x18xf32, #tpu.memory_space<vmem>>, vector<8x1xf32>
    %127 = vector.broadcast %125 : vector<8x1xf32> to vector<8x256xf32>
    %128 = arith.mulf %124, %127 : vector<8x256xf32>
    %129 = vector.broadcast %126 : vector<8x1xf32> to vector<8x256xf32>
    %130 = arith.addf %128, %129 : vector<8x256xf32>
    %cst_62 = arith.constant 0.000000e+00 : f32
    %131 = vector.broadcast %cst_62 : f32 to vector<8x256xf32>
    %132 = arith.maximumf %130, %131 : vector<8x256xf32>
    %c0_63 = arith.constant 0 : index
    %c512 = arith.constant 512 : index
    %133 = vector.load %arg2[%c0_63, %c512] : memref<8x2432xf32, #tpu.memory_space<vmem>>, vector<8x72xf32>
    %c17_i32_64 = arith.constant 17 : i32
    %134 = tpu.dynamic_rotate %132 by %c17_i32_64 dim 1 : vector<8x256xf32>, i32 -> vector<8x256xf32>
    %135 = vector.broadcast %0 : vector<1x256xf32> to vector<8x256xf32>
    %136 = arith.mulf %134, %135 : vector<8x256xf32>
    %c16_i32_65 = arith.constant 16 : i32
    %137 = tpu.dynamic_rotate %132 by %c16_i32_65 dim 1 : vector<8x256xf32>, i32 -> vector<8x256xf32>
    %138 = vector.broadcast %1 : vector<1x256xf32> to vector<8x256xf32>
    %139 = arith.mulf %137, %138 : vector<8x256xf32>
    %c15_i32_66 = arith.constant 15 : i32
    %140 = tpu.dynamic_rotate %132 by %c15_i32_66 dim 1 : vector<8x256xf32>, i32 -> vector<8x256xf32>
    %141 = vector.broadcast %2 : vector<1x256xf32> to vector<8x256xf32>
    %142 = arith.mulf %140, %141 : vector<8x256xf32>
    %c1_i32_67 = arith.constant 1 : i32
    %143 = tpu.dynamic_rotate %132 by %c1_i32_67 dim 1 : vector<8x256xf32>, i32 -> vector<8x256xf32>
    %144 = vector.broadcast %3 : vector<1x256xf32> to vector<8x256xf32>
    %145 = arith.mulf %143, %144 : vector<8x256xf32>
    %c255_i32_68 = arith.constant 255 : i32
    %146 = tpu.dynamic_rotate %132 by %c255_i32_68 dim 1 : vector<8x256xf32>, i32 -> vector<8x256xf32>
    %147 = vector.broadcast %4 : vector<1x256xf32> to vector<8x256xf32>
    %148 = arith.mulf %146, %147 : vector<8x256xf32>
    %c241_i32_69 = arith.constant 241 : i32
    %149 = tpu.dynamic_rotate %132 by %c241_i32_69 dim 1 : vector<8x256xf32>, i32 -> vector<8x256xf32>
    %150 = vector.broadcast %5 : vector<1x256xf32> to vector<8x256xf32>
    %151 = arith.mulf %149, %150 : vector<8x256xf32>
    %c240_i32_70 = arith.constant 240 : i32
    %152 = tpu.dynamic_rotate %132 by %c240_i32_70 dim 1 : vector<8x256xf32>, i32 -> vector<8x256xf32>
    %153 = vector.broadcast %6 : vector<1x256xf32> to vector<8x256xf32>
    %154 = arith.mulf %152, %153 : vector<8x256xf32>
    %c239_i32_71 = arith.constant 239 : i32
    %155 = tpu.dynamic_rotate %132 by %c239_i32_71 dim 1 : vector<8x256xf32>, i32 -> vector<8x256xf32>
    %156 = vector.broadcast %7 : vector<1x256xf32> to vector<8x256xf32>
    %157 = arith.mulf %155, %156 : vector<8x256xf32>
    %158 = tpu.concatenate %136, %139, %142, %145, %132, %148, %151, %154, %157 in 0 : vector<8x256xf32>, vector<8x256xf32>, vector<8x256xf32>, vector<8x256xf32>, vector<8x256xf32>, vector<8x256xf32>, vector<8x256xf32>, vector<8x256xf32>, vector<8x256xf32> -> vector<72x256xf32>
    %cst_72 = arith.constant dense<0.000000e+00> : vector<8x256xf32>
    %159 = tpu.matmul %133, %158, %cst_72 {dimension_numbers = #tpu.dot_dimension_numbers<[1], [0], [0], [1], [0, 0, 1, 1], [], []>} : vector<8x72xf32>, vector<72x256xf32>, vector<8x256xf32> -> vector<8x256xf32>
    %c0_73 = arith.constant 0 : index
    %c4 = arith.constant 4 : index
    %160 = vector.load %arg3[%c0_73, %c4] : memref<8x18xf32, #tpu.memory_space<vmem>>, vector<8x1xf32>
    %c0_74 = arith.constant 0 : index
    %c4_75 = arith.constant 4 : index
    %161 = vector.load %arg4[%c0_74, %c4_75] : memref<8x18xf32, #tpu.memory_space<vmem>>, vector<8x1xf32>
    %162 = vector.broadcast %160 : vector<8x1xf32> to vector<8x256xf32>
    %163 = arith.mulf %159, %162 : vector<8x256xf32>
    %164 = vector.broadcast %161 : vector<8x1xf32> to vector<8x256xf32>
    %165 = arith.addf %163, %164 : vector<8x256xf32>
    %cst_76 = arith.constant 0.000000e+00 : f32
    %166 = vector.broadcast %cst_76 : f32 to vector<8x256xf32>
    %167 = arith.maximumf %165, %166 : vector<8x256xf32>
    %168 = tpu.concatenate %62, %97, %167 in 0 : vector<8x256xf32>, vector<8x256xf32>, vector<8x256xf32> -> vector<24x256xf32>
    %c0_77 = arith.constant 0 : index
    %c640 = arith.constant 640 : index
    %169 = vector.load %arg2[%c0_77, %c640] : memref<8x2432xf32, #tpu.memory_space<vmem>>, vector<8x24xf32>
    %cst_78 = arith.constant dense<0.000000e+00> : vector<8x256xf32>
    %170 = tpu.matmul %169, %168, %cst_78 {dimension_numbers = #tpu.dot_dimension_numbers<[1], [0], [0], [1], [0, 0, 1, 1], [], []>} : vector<8x24xf32>, vector<24x256xf32>, vector<8x256xf32> -> vector<8x256xf32>
    %c0_79 = arith.constant 0 : index
    %c5_80 = arith.constant 5 : index
    %171 = vector.load %arg3[%c0_79, %c5_80] : memref<8x18xf32, #tpu.memory_space<vmem>>, vector<8x1xf32>
    %c0_81 = arith.constant 0 : index
    %c5_82 = arith.constant 5 : index
    %172 = vector.load %arg4[%c0_81, %c5_82] : memref<8x18xf32, #tpu.memory_space<vmem>>, vector<8x1xf32>
    %173 = vector.broadcast %171 : vector<8x1xf32> to vector<8x256xf32>
    %174 = arith.mulf %170, %173 : vector<8x256xf32>
    %175 = vector.broadcast %172 : vector<8x1xf32> to vector<8x256xf32>
    %176 = arith.addf %174, %175 : vector<8x256xf32>
    %cst_83 = arith.constant 0.000000e+00 : f32
    %177 = vector.broadcast %cst_83 : f32 to vector<8x256xf32>
    %178 = arith.maximumf %176, %177 : vector<8x256xf32>
    %179 = arith.addf %178, %52 : vector<8x256xf32>
    %c0_84 = arith.constant 0 : index
    %c768 = arith.constant 768 : index
    %180 = vector.load %arg2[%c0_84, %c768] : memref<8x2432xf32, #tpu.memory_space<vmem>>, vector<8x72xf32>
    %c34_i32 = arith.constant 34 : i32
    %181 = tpu.dynamic_rotate %179 by %c34_i32 dim 1 : vector<8x256xf32>, i32 -> vector<8x256xf32>
    %182 = vector.broadcast %8 : vector<1x256xf32> to vector<8x256xf32>
    %183 = arith.mulf %181, %182 : vector<8x256xf32>
    %c32_i32 = arith.constant 32 : i32
    %184 = tpu.dynamic_rotate %179 by %c32_i32 dim 1 : vector<8x256xf32>, i32 -> vector<8x256xf32>
    %185 = vector.broadcast %9 : vector<1x256xf32> to vector<8x256xf32>
    %186 = arith.mulf %184, %185 : vector<8x256xf32>
    %c30_i32 = arith.constant 30 : i32
    %187 = tpu.dynamic_rotate %179 by %c30_i32 dim 1 : vector<8x256xf32>, i32 -> vector<8x256xf32>
    %188 = vector.broadcast %10 : vector<1x256xf32> to vector<8x256xf32>
    %189 = arith.mulf %187, %188 : vector<8x256xf32>
    %c2_i32 = arith.constant 2 : i32
    %190 = tpu.dynamic_rotate %179 by %c2_i32 dim 1 : vector<8x256xf32>, i32 -> vector<8x256xf32>
    %191 = vector.broadcast %11 : vector<1x256xf32> to vector<8x256xf32>
    %192 = arith.mulf %190, %191 : vector<8x256xf32>
    %c254_i32 = arith.constant 254 : i32
    %193 = tpu.dynamic_rotate %179 by %c254_i32 dim 1 : vector<8x256xf32>, i32 -> vector<8x256xf32>
    %194 = vector.broadcast %12 : vector<1x256xf32> to vector<8x256xf32>
    %195 = arith.mulf %193, %194 : vector<8x256xf32>
    %c226_i32 = arith.constant 226 : i32
    %196 = tpu.dynamic_rotate %179 by %c226_i32 dim 1 : vector<8x256xf32>, i32 -> vector<8x256xf32>
    %197 = vector.broadcast %13 : vector<1x256xf32> to vector<8x256xf32>
    %198 = arith.mulf %196, %197 : vector<8x256xf32>
    %c224_i32 = arith.constant 224 : i32
    %199 = tpu.dynamic_rotate %179 by %c224_i32 dim 1 : vector<8x256xf32>, i32 -> vector<8x256xf32>
    %200 = vector.broadcast %14 : vector<1x256xf32> to vector<8x256xf32>
    %201 = arith.mulf %199, %200 : vector<8x256xf32>
    %c222_i32 = arith.constant 222 : i32
    %202 = tpu.dynamic_rotate %179 by %c222_i32 dim 1 : vector<8x256xf32>, i32 -> vector<8x256xf32>
    %203 = vector.broadcast %15 : vector<1x256xf32> to vector<8x256xf32>
    %204 = arith.mulf %202, %203 : vector<8x256xf32>
    %205 = tpu.concatenate %183, %186, %189, %192, %179, %195, %198, %201, %204 in 0 : vector<8x256xf32>, vector<8x256xf32>, vector<8x256xf32>, vector<8x256xf32>, vector<8x256xf32>, vector<8x256xf32>, vector<8x256xf32>, vector<8x256xf32>, vector<8x256xf32> -> vector<72x256xf32>
    %cst_85 = arith.constant dense<0.000000e+00> : vector<8x256xf32>
    %206 = tpu.matmul %180, %205, %cst_85 {dimension_numbers = #tpu.dot_dimension_numbers<[1], [0], [0], [1], [0, 0, 1, 1], [], []>} : vector<8x72xf32>, vector<72x256xf32>, vector<8x256xf32> -> vector<8x256xf32>
    %c0_86 = arith.constant 0 : index
    %c6_87 = arith.constant 6 : index
    %207 = vector.load %arg3[%c0_86, %c6_87] : memref<8x18xf32, #tpu.memory_space<vmem>>, vector<8x1xf32>
    %c0_88 = arith.constant 0 : index
    %c6_89 = arith.constant 6 : index
    %208 = vector.load %arg4[%c0_88, %c6_89] : memref<8x18xf32, #tpu.memory_space<vmem>>, vector<8x1xf32>
    %209 = vector.broadcast %207 : vector<8x1xf32> to vector<8x256xf32>
    %210 = arith.mulf %206, %209 : vector<8x256xf32>
    %211 = vector.broadcast %208 : vector<8x1xf32> to vector<8x256xf32>
    %212 = arith.addf %210, %211 : vector<8x256xf32>
    %cst_90 = arith.constant 0.000000e+00 : f32
    %213 = vector.broadcast %cst_90 : f32 to vector<8x256xf32>
    %214 = arith.maximumf %212, %213 : vector<8x256xf32>
    %c0_91 = arith.constant 0 : index
    %c896 = arith.constant 896 : index
    %215 = vector.load %arg2[%c0_91, %c896] : memref<8x2432xf32, #tpu.memory_space<vmem>>, vector<8x8xf32>
    %cst_92 = arith.constant dense<0.000000e+00> : vector<8x256xf32>
    %216 = tpu.matmul %215, %214, %cst_92 {dimension_numbers = #tpu.dot_dimension_numbers<[1], [0], [0], [1], [0, 0, 1, 1], [], []>} : vector<8x8xf32>, vector<8x256xf32>, vector<8x256xf32> -> vector<8x256xf32>
    %c0_93 = arith.constant 0 : index
    %c7_94 = arith.constant 7 : index
    %217 = vector.load %arg3[%c0_93, %c7_94] : memref<8x18xf32, #tpu.memory_space<vmem>>, vector<8x1xf32>
    %c0_95 = arith.constant 0 : index
    %c7_96 = arith.constant 7 : index
    %218 = vector.load %arg4[%c0_95, %c7_96] : memref<8x18xf32, #tpu.memory_space<vmem>>, vector<8x1xf32>
    %219 = vector.broadcast %217 : vector<8x1xf32> to vector<8x256xf32>
    %220 = arith.mulf %216, %219 : vector<8x256xf32>
    %221 = vector.broadcast %218 : vector<8x1xf32> to vector<8x256xf32>
    %222 = arith.addf %220, %221 : vector<8x256xf32>
    %cst_97 = arith.constant 0.000000e+00 : f32
    %223 = vector.broadcast %cst_97 : f32 to vector<8x256xf32>
    %224 = arith.maximumf %222, %223 : vector<8x256xf32>
    %c0_98 = arith.constant 0 : index
    %c1024 = arith.constant 1024 : index
    %225 = vector.load %arg2[%c0_98, %c1024] : memref<8x2432xf32, #tpu.memory_space<vmem>>, vector<8x72xf32>
    %c34_i32_99 = arith.constant 34 : i32
    %226 = tpu.dynamic_rotate %214 by %c34_i32_99 dim 1 : vector<8x256xf32>, i32 -> vector<8x256xf32>
    %227 = vector.broadcast %8 : vector<1x256xf32> to vector<8x256xf32>
    %228 = arith.mulf %226, %227 : vector<8x256xf32>
    %c32_i32_100 = arith.constant 32 : i32
    %229 = tpu.dynamic_rotate %214 by %c32_i32_100 dim 1 : vector<8x256xf32>, i32 -> vector<8x256xf32>
    %230 = vector.broadcast %9 : vector<1x256xf32> to vector<8x256xf32>
    %231 = arith.mulf %229, %230 : vector<8x256xf32>
    %c30_i32_101 = arith.constant 30 : i32
    %232 = tpu.dynamic_rotate %214 by %c30_i32_101 dim 1 : vector<8x256xf32>, i32 -> vector<8x256xf32>
    %233 = vector.broadcast %10 : vector<1x256xf32> to vector<8x256xf32>
    %234 = arith.mulf %232, %233 : vector<8x256xf32>
    %c2_i32_102 = arith.constant 2 : i32
    %235 = tpu.dynamic_rotate %214 by %c2_i32_102 dim 1 : vector<8x256xf32>, i32 -> vector<8x256xf32>
    %236 = vector.broadcast %11 : vector<1x256xf32> to vector<8x256xf32>
    %237 = arith.mulf %235, %236 : vector<8x256xf32>
    %c254_i32_103 = arith.constant 254 : i32
    %238 = tpu.dynamic_rotate %214 by %c254_i32_103 dim 1 : vector<8x256xf32>, i32 -> vector<8x256xf32>
    %239 = vector.broadcast %12 : vector<1x256xf32> to vector<8x256xf32>
    %240 = arith.mulf %238, %239 : vector<8x256xf32>
    %c226_i32_104 = arith.constant 226 : i32
    %241 = tpu.dynamic_rotate %214 by %c226_i32_104 dim 1 : vector<8x256xf32>, i32 -> vector<8x256xf32>
    %242 = vector.broadcast %13 : vector<1x256xf32> to vector<8x256xf32>
    %243 = arith.mulf %241, %242 : vector<8x256xf32>
    %c224_i32_105 = arith.constant 224 : i32
    %244 = tpu.dynamic_rotate %214 by %c224_i32_105 dim 1 : vector<8x256xf32>, i32 -> vector<8x256xf32>
    %245 = vector.broadcast %14 : vector<1x256xf32> to vector<8x256xf32>
    %246 = arith.mulf %244, %245 : vector<8x256xf32>
    %c222_i32_106 = arith.constant 222 : i32
    %247 = tpu.dynamic_rotate %214 by %c222_i32_106 dim 1 : vector<8x256xf32>, i32 -> vector<8x256xf32>
    %248 = vector.broadcast %15 : vector<1x256xf32> to vector<8x256xf32>
    %249 = arith.mulf %247, %248 : vector<8x256xf32>
    %250 = tpu.concatenate %228, %231, %234, %237, %214, %240, %243, %246, %249 in 0 : vector<8x256xf32>, vector<8x256xf32>, vector<8x256xf32>, vector<8x256xf32>, vector<8x256xf32>, vector<8x256xf32>, vector<8x256xf32>, vector<8x256xf32>, vector<8x256xf32> -> vector<72x256xf32>
    %cst_107 = arith.constant dense<0.000000e+00> : vector<8x256xf32>
    %251 = tpu.matmul %225, %250, %cst_107 {dimension_numbers = #tpu.dot_dimension_numbers<[1], [0], [0], [1], [0, 0, 1, 1], [], []>} : vector<8x72xf32>, vector<72x256xf32>, vector<8x256xf32> -> vector<8x256xf32>
    %c0_108 = arith.constant 0 : index
    %c8_109 = arith.constant 8 : index
    %252 = vector.load %arg3[%c0_108, %c8_109] : memref<8x18xf32, #tpu.memory_space<vmem>>, vector<8x1xf32>
    %c0_110 = arith.constant 0 : index
    %c8_111 = arith.constant 8 : index
    %253 = vector.load %arg4[%c0_110, %c8_111] : memref<8x18xf32, #tpu.memory_space<vmem>>, vector<8x1xf32>
    %254 = vector.broadcast %252 : vector<8x1xf32> to vector<8x256xf32>
    %255 = arith.mulf %251, %254 : vector<8x256xf32>
    %256 = vector.broadcast %253 : vector<8x1xf32> to vector<8x256xf32>
    %257 = arith.addf %255, %256 : vector<8x256xf32>
    %cst_112 = arith.constant 0.000000e+00 : f32
    %258 = vector.broadcast %cst_112 : f32 to vector<8x256xf32>
    %259 = arith.maximumf %257, %258 : vector<8x256xf32>
    %c0_113 = arith.constant 0 : index
    %c1152 = arith.constant 1152 : index
    %260 = vector.load %arg2[%c0_113, %c1152] : memref<8x2432xf32, #tpu.memory_space<vmem>>, vector<8x72xf32>
    %c34_i32_114 = arith.constant 34 : i32
    %261 = tpu.dynamic_rotate %214 by %c34_i32_114 dim 1 : vector<8x256xf32>, i32 -> vector<8x256xf32>
    %262 = vector.broadcast %8 : vector<1x256xf32> to vector<8x256xf32>
    %263 = arith.mulf %261, %262 : vector<8x256xf32>
    %c32_i32_115 = arith.constant 32 : i32
    %264 = tpu.dynamic_rotate %214 by %c32_i32_115 dim 1 : vector<8x256xf32>, i32 -> vector<8x256xf32>
    %265 = vector.broadcast %9 : vector<1x256xf32> to vector<8x256xf32>
    %266 = arith.mulf %264, %265 : vector<8x256xf32>
    %c30_i32_116 = arith.constant 30 : i32
    %267 = tpu.dynamic_rotate %214 by %c30_i32_116 dim 1 : vector<8x256xf32>, i32 -> vector<8x256xf32>
    %268 = vector.broadcast %10 : vector<1x256xf32> to vector<8x256xf32>
    %269 = arith.mulf %267, %268 : vector<8x256xf32>
    %c2_i32_117 = arith.constant 2 : i32
    %270 = tpu.dynamic_rotate %214 by %c2_i32_117 dim 1 : vector<8x256xf32>, i32 -> vector<8x256xf32>
    %271 = vector.broadcast %11 : vector<1x256xf32> to vector<8x256xf32>
    %272 = arith.mulf %270, %271 : vector<8x256xf32>
    %c254_i32_118 = arith.constant 254 : i32
    %273 = tpu.dynamic_rotate %214 by %c254_i32_118 dim 1 : vector<8x256xf32>, i32 -> vector<8x256xf32>
    %274 = vector.broadcast %12 : vector<1x256xf32> to vector<8x256xf32>
    %275 = arith.mulf %273, %274 : vector<8x256xf32>
    %c226_i32_119 = arith.constant 226 : i32
    %276 = tpu.dynamic_rotate %214 by %c226_i32_119 dim 1 : vector<8x256xf32>, i32 -> vector<8x256xf32>
    %277 = vector.broadcast %13 : vector<1x256xf32> to vector<8x256xf32>
    %278 = arith.mulf %276, %277 : vector<8x256xf32>
    %c224_i32_120 = arith.constant 224 : i32
    %279 = tpu.dynamic_rotate %214 by %c224_i32_120 dim 1 : vector<8x256xf32>, i32 -> vector<8x256xf32>
    %280 = vector.broadcast %14 : vector<1x256xf32> to vector<8x256xf32>
    %281 = arith.mulf %279, %280 : vector<8x256xf32>
    %c222_i32_121 = arith.constant 222 : i32
    %282 = tpu.dynamic_rotate %214 by %c222_i32_121 dim 1 : vector<8x256xf32>, i32 -> vector<8x256xf32>
    %283 = vector.broadcast %15 : vector<1x256xf32> to vector<8x256xf32>
    %284 = arith.mulf %282, %283 : vector<8x256xf32>
    %285 = tpu.concatenate %263, %266, %269, %272, %214, %275, %278, %281, %284 in 0 : vector<8x256xf32>, vector<8x256xf32>, vector<8x256xf32>, vector<8x256xf32>, vector<8x256xf32>, vector<8x256xf32>, vector<8x256xf32>, vector<8x256xf32>, vector<8x256xf32> -> vector<72x256xf32>
    %cst_122 = arith.constant dense<0.000000e+00> : vector<8x256xf32>
    %286 = tpu.matmul %260, %285, %cst_122 {dimension_numbers = #tpu.dot_dimension_numbers<[1], [0], [0], [1], [0, 0, 1, 1], [], []>} : vector<8x72xf32>, vector<72x256xf32>, vector<8x256xf32> -> vector<8x256xf32>
    %c0_123 = arith.constant 0 : index
    %c9_124 = arith.constant 9 : index
    %287 = vector.load %arg3[%c0_123, %c9_124] : memref<8x18xf32, #tpu.memory_space<vmem>>, vector<8x1xf32>
    %c0_125 = arith.constant 0 : index
    %c9_126 = arith.constant 9 : index
    %288 = vector.load %arg4[%c0_125, %c9_126] : memref<8x18xf32, #tpu.memory_space<vmem>>, vector<8x1xf32>
    %289 = vector.broadcast %287 : vector<8x1xf32> to vector<8x256xf32>
    %290 = arith.mulf %286, %289 : vector<8x256xf32>
    %291 = vector.broadcast %288 : vector<8x1xf32> to vector<8x256xf32>
    %292 = arith.addf %290, %291 : vector<8x256xf32>
    %cst_127 = arith.constant 0.000000e+00 : f32
    %293 = vector.broadcast %cst_127 : f32 to vector<8x256xf32>
    %294 = arith.maximumf %292, %293 : vector<8x256xf32>
    %c0_128 = arith.constant 0 : index
    %c1280 = arith.constant 1280 : index
    %295 = vector.load %arg2[%c0_128, %c1280] : memref<8x2432xf32, #tpu.memory_space<vmem>>, vector<8x72xf32>
    %c34_i32_129 = arith.constant 34 : i32
    %296 = tpu.dynamic_rotate %294 by %c34_i32_129 dim 1 : vector<8x256xf32>, i32 -> vector<8x256xf32>
    %297 = vector.broadcast %8 : vector<1x256xf32> to vector<8x256xf32>
    %298 = arith.mulf %296, %297 : vector<8x256xf32>
    %c32_i32_130 = arith.constant 32 : i32
    %299 = tpu.dynamic_rotate %294 by %c32_i32_130 dim 1 : vector<8x256xf32>, i32 -> vector<8x256xf32>
    %300 = vector.broadcast %9 : vector<1x256xf32> to vector<8x256xf32>
    %301 = arith.mulf %299, %300 : vector<8x256xf32>
    %c30_i32_131 = arith.constant 30 : i32
    %302 = tpu.dynamic_rotate %294 by %c30_i32_131 dim 1 : vector<8x256xf32>, i32 -> vector<8x256xf32>
    %303 = vector.broadcast %10 : vector<1x256xf32> to vector<8x256xf32>
    %304 = arith.mulf %302, %303 : vector<8x256xf32>
    %c2_i32_132 = arith.constant 2 : i32
    %305 = tpu.dynamic_rotate %294 by %c2_i32_132 dim 1 : vector<8x256xf32>, i32 -> vector<8x256xf32>
    %306 = vector.broadcast %11 : vector<1x256xf32> to vector<8x256xf32>
    %307 = arith.mulf %305, %306 : vector<8x256xf32>
    %c254_i32_133 = arith.constant 254 : i32
    %308 = tpu.dynamic_rotate %294 by %c254_i32_133 dim 1 : vector<8x256xf32>, i32 -> vector<8x256xf32>
    %309 = vector.broadcast %12 : vector<1x256xf32> to vector<8x256xf32>
    %310 = arith.mulf %308, %309 : vector<8x256xf32>
    %c226_i32_134 = arith.constant 226 : i32
    %311 = tpu.dynamic_rotate %294 by %c226_i32_134 dim 1 : vector<8x256xf32>, i32 -> vector<8x256xf32>
    %312 = vector.broadcast %13 : vector<1x256xf32> to vector<8x256xf32>
    %313 = arith.mulf %311, %312 : vector<8x256xf32>
    %c224_i32_135 = arith.constant 224 : i32
    %314 = tpu.dynamic_rotate %294 by %c224_i32_135 dim 1 : vector<8x256xf32>, i32 -> vector<8x256xf32>
    %315 = vector.broadcast %14 : vector<1x256xf32> to vector<8x256xf32>
    %316 = arith.mulf %314, %315 : vector<8x256xf32>
    %c222_i32_136 = arith.constant 222 : i32
    %317 = tpu.dynamic_rotate %294 by %c222_i32_136 dim 1 : vector<8x256xf32>, i32 -> vector<8x256xf32>
    %318 = vector.broadcast %15 : vector<1x256xf32> to vector<8x256xf32>
    %319 = arith.mulf %317, %318 : vector<8x256xf32>
    %320 = tpu.concatenate %298, %301, %304, %307, %294, %310, %313, %316, %319 in 0 : vector<8x256xf32>, vector<8x256xf32>, vector<8x256xf32>, vector<8x256xf32>, vector<8x256xf32>, vector<8x256xf32>, vector<8x256xf32>, vector<8x256xf32>, vector<8x256xf32> -> vector<72x256xf32>
    %cst_137 = arith.constant dense<0.000000e+00> : vector<8x256xf32>
    %321 = tpu.matmul %295, %320, %cst_137 {dimension_numbers = #tpu.dot_dimension_numbers<[1], [0], [0], [1], [0, 0, 1, 1], [], []>} : vector<8x72xf32>, vector<72x256xf32>, vector<8x256xf32> -> vector<8x256xf32>
    %c0_138 = arith.constant 0 : index
    %c10_139 = arith.constant 10 : index
    %322 = vector.load %arg3[%c0_138, %c10_139] : memref<8x18xf32, #tpu.memory_space<vmem>>, vector<8x1xf32>
    %c0_140 = arith.constant 0 : index
    %c10_141 = arith.constant 10 : index
    %323 = vector.load %arg4[%c0_140, %c10_141] : memref<8x18xf32, #tpu.memory_space<vmem>>, vector<8x1xf32>
    %324 = vector.broadcast %322 : vector<8x1xf32> to vector<8x256xf32>
    %325 = arith.mulf %321, %324 : vector<8x256xf32>
    %326 = vector.broadcast %323 : vector<8x1xf32> to vector<8x256xf32>
    %327 = arith.addf %325, %326 : vector<8x256xf32>
    %cst_142 = arith.constant 0.000000e+00 : f32
    %328 = vector.broadcast %cst_142 : f32 to vector<8x256xf32>
    %329 = arith.maximumf %327, %328 : vector<8x256xf32>
    %330 = tpu.concatenate %224, %259, %329 in 0 : vector<8x256xf32>, vector<8x256xf32>, vector<8x256xf32> -> vector<24x256xf32>
    %c0_143 = arith.constant 0 : index
    %c1408 = arith.constant 1408 : index
    %331 = vector.load %arg2[%c0_143, %c1408] : memref<8x2432xf32, #tpu.memory_space<vmem>>, vector<8x24xf32>
    %cst_144 = arith.constant dense<0.000000e+00> : vector<8x256xf32>
    %332 = tpu.matmul %331, %330, %cst_144 {dimension_numbers = #tpu.dot_dimension_numbers<[1], [0], [0], [1], [0, 0, 1, 1], [], []>} : vector<8x24xf32>, vector<24x256xf32>, vector<8x256xf32> -> vector<8x256xf32>
    %c0_145 = arith.constant 0 : index
    %c11_146 = arith.constant 11 : index
    %333 = vector.load %arg3[%c0_145, %c11_146] : memref<8x18xf32, #tpu.memory_space<vmem>>, vector<8x1xf32>
    %c0_147 = arith.constant 0 : index
    %c11_148 = arith.constant 11 : index
    %334 = vector.load %arg4[%c0_147, %c11_148] : memref<8x18xf32, #tpu.memory_space<vmem>>, vector<8x1xf32>
    %335 = vector.broadcast %333 : vector<8x1xf32> to vector<8x256xf32>
    %336 = arith.mulf %332, %335 : vector<8x256xf32>
    %337 = vector.broadcast %334 : vector<8x1xf32> to vector<8x256xf32>
    %338 = arith.addf %336, %337 : vector<8x256xf32>
    %cst_149 = arith.constant 0.000000e+00 : f32
    %339 = vector.broadcast %cst_149 : f32 to vector<8x256xf32>
    %340 = arith.maximumf %338, %339 : vector<8x256xf32>
    %341 = arith.addf %340, %214 : vector<8x256xf32>
    %342 = tpu.concatenate %178, %341 in 0 : vector<8x256xf32>, vector<8x256xf32> -> vector<16x256xf32>
    %c0_150 = arith.constant 0 : index
    %c1536 = arith.constant 1536 : index
    %343 = vector.load %arg2[%c0_150, %c1536] : memref<8x2432xf32, #tpu.memory_space<vmem>>, vector<8x144xf32>
    %c34_i32_151 = arith.constant 34 : i32
    %344 = tpu.dynamic_rotate %342 by %c34_i32_151 dim 1 : vector<16x256xf32>, i32 -> vector<16x256xf32>
    %345 = vector.broadcast %8 : vector<1x256xf32> to vector<16x256xf32>
    %346 = arith.mulf %344, %345 : vector<16x256xf32>
    %c32_i32_152 = arith.constant 32 : i32
    %347 = tpu.dynamic_rotate %342 by %c32_i32_152 dim 1 : vector<16x256xf32>, i32 -> vector<16x256xf32>
    %348 = vector.broadcast %9 : vector<1x256xf32> to vector<16x256xf32>
    %349 = arith.mulf %347, %348 : vector<16x256xf32>
    %c30_i32_153 = arith.constant 30 : i32
    %350 = tpu.dynamic_rotate %342 by %c30_i32_153 dim 1 : vector<16x256xf32>, i32 -> vector<16x256xf32>
    %351 = vector.broadcast %10 : vector<1x256xf32> to vector<16x256xf32>
    %352 = arith.mulf %350, %351 : vector<16x256xf32>
    %c2_i32_154 = arith.constant 2 : i32
    %353 = tpu.dynamic_rotate %342 by %c2_i32_154 dim 1 : vector<16x256xf32>, i32 -> vector<16x256xf32>
    %354 = vector.broadcast %11 : vector<1x256xf32> to vector<16x256xf32>
    %355 = arith.mulf %353, %354 : vector<16x256xf32>
    %c254_i32_155 = arith.constant 254 : i32
    %356 = tpu.dynamic_rotate %342 by %c254_i32_155 dim 1 : vector<16x256xf32>, i32 -> vector<16x256xf32>
    %357 = vector.broadcast %12 : vector<1x256xf32> to vector<16x256xf32>
    %358 = arith.mulf %356, %357 : vector<16x256xf32>
    %c226_i32_156 = arith.constant 226 : i32
    %359 = tpu.dynamic_rotate %342 by %c226_i32_156 dim 1 : vector<16x256xf32>, i32 -> vector<16x256xf32>
    %360 = vector.broadcast %13 : vector<1x256xf32> to vector<16x256xf32>
    %361 = arith.mulf %359, %360 : vector<16x256xf32>
    %c224_i32_157 = arith.constant 224 : i32
    %362 = tpu.dynamic_rotate %342 by %c224_i32_157 dim 1 : vector<16x256xf32>, i32 -> vector<16x256xf32>
    %363 = vector.broadcast %14 : vector<1x256xf32> to vector<16x256xf32>
    %364 = arith.mulf %362, %363 : vector<16x256xf32>
    %c222_i32_158 = arith.constant 222 : i32
    %365 = tpu.dynamic_rotate %342 by %c222_i32_158 dim 1 : vector<16x256xf32>, i32 -> vector<16x256xf32>
    %366 = vector.broadcast %15 : vector<1x256xf32> to vector<16x256xf32>
    %367 = arith.mulf %365, %366 : vector<16x256xf32>
    %368 = tpu.concatenate %346, %349, %352, %355, %342, %358, %361, %364, %367 in 0 : vector<16x256xf32>, vector<16x256xf32>, vector<16x256xf32>, vector<16x256xf32>, vector<16x256xf32>, vector<16x256xf32>, vector<16x256xf32>, vector<16x256xf32>, vector<16x256xf32> -> vector<144x256xf32>
    %cst_159 = arith.constant dense<0.000000e+00> : vector<8x256xf32>
    %369 = tpu.matmul %343, %368, %cst_159 {dimension_numbers = #tpu.dot_dimension_numbers<[1], [0], [0], [1], [0, 0, 1, 1], [], []>} : vector<8x144xf32>, vector<144x256xf32>, vector<8x256xf32> -> vector<8x256xf32>
    %c0_160 = arith.constant 0 : index
    %c12_161 = arith.constant 12 : index
    %370 = vector.load %arg3[%c0_160, %c12_161] : memref<8x18xf32, #tpu.memory_space<vmem>>, vector<8x1xf32>
    %c0_162 = arith.constant 0 : index
    %c12_163 = arith.constant 12 : index
    %371 = vector.load %arg4[%c0_162, %c12_163] : memref<8x18xf32, #tpu.memory_space<vmem>>, vector<8x1xf32>
    %372 = vector.broadcast %370 : vector<8x1xf32> to vector<8x256xf32>
    %373 = arith.mulf %369, %372 : vector<8x256xf32>
    %374 = vector.broadcast %371 : vector<8x1xf32> to vector<8x256xf32>
    %375 = arith.addf %373, %374 : vector<8x256xf32>
    %cst_164 = arith.constant 0.000000e+00 : f32
    %376 = vector.broadcast %cst_164 : f32 to vector<8x256xf32>
    %377 = arith.maximumf %375, %376 : vector<8x256xf32>
    %c0_165 = arith.constant 0 : index
    %c1792 = arith.constant 1792 : index
    %378 = vector.load %arg2[%c0_165, %c1792] : memref<8x2432xf32, #tpu.memory_space<vmem>>, vector<8x8xf32>
    %cst_166 = arith.constant dense<0.000000e+00> : vector<8x256xf32>
    %379 = tpu.matmul %378, %377, %cst_166 {dimension_numbers = #tpu.dot_dimension_numbers<[1], [0], [0], [1], [0, 0, 1, 1], [], []>} : vector<8x8xf32>, vector<8x256xf32>, vector<8x256xf32> -> vector<8x256xf32>
    %c0_167 = arith.constant 0 : index
    %c13 = arith.constant 13 : index
    %380 = vector.load %arg3[%c0_167, %c13] : memref<8x18xf32, #tpu.memory_space<vmem>>, vector<8x1xf32>
    %c0_168 = arith.constant 0 : index
    %c13_169 = arith.constant 13 : index
    %381 = vector.load %arg4[%c0_168, %c13_169] : memref<8x18xf32, #tpu.memory_space<vmem>>, vector<8x1xf32>
    %382 = vector.broadcast %380 : vector<8x1xf32> to vector<8x256xf32>
    %383 = arith.mulf %379, %382 : vector<8x256xf32>
    %384 = vector.broadcast %381 : vector<8x1xf32> to vector<8x256xf32>
    %385 = arith.addf %383, %384 : vector<8x256xf32>
    %cst_170 = arith.constant 0.000000e+00 : f32
    %386 = vector.broadcast %cst_170 : f32 to vector<8x256xf32>
    %387 = arith.maximumf %385, %386 : vector<8x256xf32>
    %c0_171 = arith.constant 0 : index
    %c1920 = arith.constant 1920 : index
    %388 = vector.load %arg2[%c0_171, %c1920] : memref<8x2432xf32, #tpu.memory_space<vmem>>, vector<8x72xf32>
    %c34_i32_172 = arith.constant 34 : i32
    %389 = tpu.dynamic_rotate %377 by %c34_i32_172 dim 1 : vector<8x256xf32>, i32 -> vector<8x256xf32>
    %390 = vector.broadcast %8 : vector<1x256xf32> to vector<8x256xf32>
    %391 = arith.mulf %389, %390 : vector<8x256xf32>
    %c32_i32_173 = arith.constant 32 : i32
    %392 = tpu.dynamic_rotate %377 by %c32_i32_173 dim 1 : vector<8x256xf32>, i32 -> vector<8x256xf32>
    %393 = vector.broadcast %9 : vector<1x256xf32> to vector<8x256xf32>
    %394 = arith.mulf %392, %393 : vector<8x256xf32>
    %c30_i32_174 = arith.constant 30 : i32
    %395 = tpu.dynamic_rotate %377 by %c30_i32_174 dim 1 : vector<8x256xf32>, i32 -> vector<8x256xf32>
    %396 = vector.broadcast %10 : vector<1x256xf32> to vector<8x256xf32>
    %397 = arith.mulf %395, %396 : vector<8x256xf32>
    %c2_i32_175 = arith.constant 2 : i32
    %398 = tpu.dynamic_rotate %377 by %c2_i32_175 dim 1 : vector<8x256xf32>, i32 -> vector<8x256xf32>
    %399 = vector.broadcast %11 : vector<1x256xf32> to vector<8x256xf32>
    %400 = arith.mulf %398, %399 : vector<8x256xf32>
    %c254_i32_176 = arith.constant 254 : i32
    %401 = tpu.dynamic_rotate %377 by %c254_i32_176 dim 1 : vector<8x256xf32>, i32 -> vector<8x256xf32>
    %402 = vector.broadcast %12 : vector<1x256xf32> to vector<8x256xf32>
    %403 = arith.mulf %401, %402 : vector<8x256xf32>
    %c226_i32_177 = arith.constant 226 : i32
    %404 = tpu.dynamic_rotate %377 by %c226_i32_177 dim 1 : vector<8x256xf32>, i32 -> vector<8x256xf32>
    %405 = vector.broadcast %13 : vector<1x256xf32> to vector<8x256xf32>
    %406 = arith.mulf %404, %405 : vector<8x256xf32>
    %c224_i32_178 = arith.constant 224 : i32
    %407 = tpu.dynamic_rotate %377 by %c224_i32_178 dim 1 : vector<8x256xf32>, i32 -> vector<8x256xf32>
    %408 = vector.broadcast %14 : vector<1x256xf32> to vector<8x256xf32>
    %409 = arith.mulf %407, %408 : vector<8x256xf32>
    %c222_i32_179 = arith.constant 222 : i32
    %410 = tpu.dynamic_rotate %377 by %c222_i32_179 dim 1 : vector<8x256xf32>, i32 -> vector<8x256xf32>
    %411 = vector.broadcast %15 : vector<1x256xf32> to vector<8x256xf32>
    %412 = arith.mulf %410, %411 : vector<8x256xf32>
    %413 = tpu.concatenate %391, %394, %397, %400, %377, %403, %406, %409, %412 in 0 : vector<8x256xf32>, vector<8x256xf32>, vector<8x256xf32>, vector<8x256xf32>, vector<8x256xf32>, vector<8x256xf32>, vector<8x256xf32>, vector<8x256xf32>, vector<8x256xf32> -> vector<72x256xf32>
    %cst_180 = arith.constant dense<0.000000e+00> : vector<8x256xf32>
    %414 = tpu.matmul %388, %413, %cst_180 {dimension_numbers = #tpu.dot_dimension_numbers<[1], [0], [0], [1], [0, 0, 1, 1], [], []>} : vector<8x72xf32>, vector<72x256xf32>, vector<8x256xf32> -> vector<8x256xf32>
    %c0_181 = arith.constant 0 : index
    %c14_182 = arith.constant 14 : index
    %415 = vector.load %arg3[%c0_181, %c14_182] : memref<8x18xf32, #tpu.memory_space<vmem>>, vector<8x1xf32>
    %c0_183 = arith.constant 0 : index
    %c14_184 = arith.constant 14 : index
    %416 = vector.load %arg4[%c0_183, %c14_184] : memref<8x18xf32, #tpu.memory_space<vmem>>, vector<8x1xf32>
    %417 = vector.broadcast %415 : vector<8x1xf32> to vector<8x256xf32>
    %418 = arith.mulf %414, %417 : vector<8x256xf32>
    %419 = vector.broadcast %416 : vector<8x1xf32> to vector<8x256xf32>
    %420 = arith.addf %418, %419 : vector<8x256xf32>
    %cst_185 = arith.constant 0.000000e+00 : f32
    %421 = vector.broadcast %cst_185 : f32 to vector<8x256xf32>
    %422 = arith.maximumf %420, %421 : vector<8x256xf32>
    %c0_186 = arith.constant 0 : index
    %c2048 = arith.constant 2048 : index
    %423 = vector.load %arg2[%c0_186, %c2048] : memref<8x2432xf32, #tpu.memory_space<vmem>>, vector<8x72xf32>
    %c34_i32_187 = arith.constant 34 : i32
    %424 = tpu.dynamic_rotate %377 by %c34_i32_187 dim 1 : vector<8x256xf32>, i32 -> vector<8x256xf32>
    %425 = vector.broadcast %8 : vector<1x256xf32> to vector<8x256xf32>
    %426 = arith.mulf %424, %425 : vector<8x256xf32>
    %c32_i32_188 = arith.constant 32 : i32
    %427 = tpu.dynamic_rotate %377 by %c32_i32_188 dim 1 : vector<8x256xf32>, i32 -> vector<8x256xf32>
    %428 = vector.broadcast %9 : vector<1x256xf32> to vector<8x256xf32>
    %429 = arith.mulf %427, %428 : vector<8x256xf32>
    %c30_i32_189 = arith.constant 30 : i32
    %430 = tpu.dynamic_rotate %377 by %c30_i32_189 dim 1 : vector<8x256xf32>, i32 -> vector<8x256xf32>
    %431 = vector.broadcast %10 : vector<1x256xf32> to vector<8x256xf32>
    %432 = arith.mulf %430, %431 : vector<8x256xf32>
    %c2_i32_190 = arith.constant 2 : i32
    %433 = tpu.dynamic_rotate %377 by %c2_i32_190 dim 1 : vector<8x256xf32>, i32 -> vector<8x256xf32>
    %434 = vector.broadcast %11 : vector<1x256xf32> to vector<8x256xf32>
    %435 = arith.mulf %433, %434 : vector<8x256xf32>
    %c254_i32_191 = arith.constant 254 : i32
    %436 = tpu.dynamic_rotate %377 by %c254_i32_191 dim 1 : vector<8x256xf32>, i32 -> vector<8x256xf32>
    %437 = vector.broadcast %12 : vector<1x256xf32> to vector<8x256xf32>
    %438 = arith.mulf %436, %437 : vector<8x256xf32>
    %c226_i32_192 = arith.constant 226 : i32
    %439 = tpu.dynamic_rotate %377 by %c226_i32_192 dim 1 : vector<8x256xf32>, i32 -> vector<8x256xf32>
    %440 = vector.broadcast %13 : vector<1x256xf32> to vector<8x256xf32>
    %441 = arith.mulf %439, %440 : vector<8x256xf32>
    %c224_i32_193 = arith.constant 224 : i32
    %442 = tpu.dynamic_rotate %377 by %c224_i32_193 dim 1 : vector<8x256xf32>, i32 -> vector<8x256xf32>
    %443 = vector.broadcast %14 : vector<1x256xf32> to vector<8x256xf32>
    %444 = arith.mulf %442, %443 : vector<8x256xf32>
    %c222_i32_194 = arith.constant 222 : i32
    %445 = tpu.dynamic_rotate %377 by %c222_i32_194 dim 1 : vector<8x256xf32>, i32 -> vector<8x256xf32>
    %446 = vector.broadcast %15 : vector<1x256xf32> to vector<8x256xf32>
    %447 = arith.mulf %445, %446 : vector<8x256xf32>
    %448 = tpu.concatenate %426, %429, %432, %435, %377, %438, %441, %444, %447 in 0 : vector<8x256xf32>, vector<8x256xf32>, vector<8x256xf32>, vector<8x256xf32>, vector<8x256xf32>, vector<8x256xf32>, vector<8x256xf32>, vector<8x256xf32>, vector<8x256xf32> -> vector<72x256xf32>
    %cst_195 = arith.constant dense<0.000000e+00> : vector<8x256xf32>
    %449 = tpu.matmul %423, %448, %cst_195 {dimension_numbers = #tpu.dot_dimension_numbers<[1], [0], [0], [1], [0, 0, 1, 1], [], []>} : vector<8x72xf32>, vector<72x256xf32>, vector<8x256xf32> -> vector<8x256xf32>
    %c0_196 = arith.constant 0 : index
    %c15_197 = arith.constant 15 : index
    %450 = vector.load %arg3[%c0_196, %c15_197] : memref<8x18xf32, #tpu.memory_space<vmem>>, vector<8x1xf32>
    %c0_198 = arith.constant 0 : index
    %c15_199 = arith.constant 15 : index
    %451 = vector.load %arg4[%c0_198, %c15_199] : memref<8x18xf32, #tpu.memory_space<vmem>>, vector<8x1xf32>
    %452 = vector.broadcast %450 : vector<8x1xf32> to vector<8x256xf32>
    %453 = arith.mulf %449, %452 : vector<8x256xf32>
    %454 = vector.broadcast %451 : vector<8x1xf32> to vector<8x256xf32>
    %455 = arith.addf %453, %454 : vector<8x256xf32>
    %cst_200 = arith.constant 0.000000e+00 : f32
    %456 = vector.broadcast %cst_200 : f32 to vector<8x256xf32>
    %457 = arith.maximumf %455, %456 : vector<8x256xf32>
    %c0_201 = arith.constant 0 : index
    %c2176 = arith.constant 2176 : index
    %458 = vector.load %arg2[%c0_201, %c2176] : memref<8x2432xf32, #tpu.memory_space<vmem>>, vector<8x72xf32>
    %c34_i32_202 = arith.constant 34 : i32
    %459 = tpu.dynamic_rotate %457 by %c34_i32_202 dim 1 : vector<8x256xf32>, i32 -> vector<8x256xf32>
    %460 = vector.broadcast %8 : vector<1x256xf32> to vector<8x256xf32>
    %461 = arith.mulf %459, %460 : vector<8x256xf32>
    %c32_i32_203 = arith.constant 32 : i32
    %462 = tpu.dynamic_rotate %457 by %c32_i32_203 dim 1 : vector<8x256xf32>, i32 -> vector<8x256xf32>
    %463 = vector.broadcast %9 : vector<1x256xf32> to vector<8x256xf32>
    %464 = arith.mulf %462, %463 : vector<8x256xf32>
    %c30_i32_204 = arith.constant 30 : i32
    %465 = tpu.dynamic_rotate %457 by %c30_i32_204 dim 1 : vector<8x256xf32>, i32 -> vector<8x256xf32>
    %466 = vector.broadcast %10 : vector<1x256xf32> to vector<8x256xf32>
    %467 = arith.mulf %465, %466 : vector<8x256xf32>
    %c2_i32_205 = arith.constant 2 : i32
    %468 = tpu.dynamic_rotate %457 by %c2_i32_205 dim 1 : vector<8x256xf32>, i32 -> vector<8x256xf32>
    %469 = vector.broadcast %11 : vector<1x256xf32> to vector<8x256xf32>
    %470 = arith.mulf %468, %469 : vector<8x256xf32>
    %c254_i32_206 = arith.constant 254 : i32
    %471 = tpu.dynamic_rotate %457 by %c254_i32_206 dim 1 : vector<8x256xf32>, i32 -> vector<8x256xf32>
    %472 = vector.broadcast %12 : vector<1x256xf32> to vector<8x256xf32>
    %473 = arith.mulf %471, %472 : vector<8x256xf32>
    %c226_i32_207 = arith.constant 226 : i32
    %474 = tpu.dynamic_rotate %457 by %c226_i32_207 dim 1 : vector<8x256xf32>, i32 -> vector<8x256xf32>
    %475 = vector.broadcast %13 : vector<1x256xf32> to vector<8x256xf32>
    %476 = arith.mulf %474, %475 : vector<8x256xf32>
    %c224_i32_208 = arith.constant 224 : i32
    %477 = tpu.dynamic_rotate %457 by %c224_i32_208 dim 1 : vector<8x256xf32>, i32 -> vector<8x256xf32>
    %478 = vector.broadcast %14 : vector<1x256xf32> to vector<8x256xf32>
    %479 = arith.mulf %477, %478 : vector<8x256xf32>
    %c222_i32_209 = arith.constant 222 : i32
    %480 = tpu.dynamic_rotate %457 by %c222_i32_209 dim 1 : vector<8x256xf32>, i32 -> vector<8x256xf32>
    %481 = vector.broadcast %15 : vector<1x256xf32> to vector<8x256xf32>
    %482 = arith.mulf %480, %481 : vector<8x256xf32>
    %483 = tpu.concatenate %461, %464, %467, %470, %457, %473, %476, %479, %482 in 0 : vector<8x256xf32>, vector<8x256xf32>, vector<8x256xf32>, vector<8x256xf32>, vector<8x256xf32>, vector<8x256xf32>, vector<8x256xf32>, vector<8x256xf32>, vector<8x256xf32> -> vector<72x256xf32>
    %cst_210 = arith.constant dense<0.000000e+00> : vector<8x256xf32>
    %484 = tpu.matmul %458, %483, %cst_210 {dimension_numbers = #tpu.dot_dimension_numbers<[1], [0], [0], [1], [0, 0, 1, 1], [], []>} : vector<8x72xf32>, vector<72x256xf32>, vector<8x256xf32> -> vector<8x256xf32>
    %c0_211 = arith.constant 0 : index
    %c16_212 = arith.constant 16 : index
    %485 = vector.load %arg3[%c0_211, %c16_212] : memref<8x18xf32, #tpu.memory_space<vmem>>, vector<8x1xf32>
    %c0_213 = arith.constant 0 : index
    %c16_214 = arith.constant 16 : index
    %486 = vector.load %arg4[%c0_213, %c16_214] : memref<8x18xf32, #tpu.memory_space<vmem>>, vector<8x1xf32>
    %487 = vector.broadcast %485 : vector<8x1xf32> to vector<8x256xf32>
    %488 = arith.mulf %484, %487 : vector<8x256xf32>
    %489 = vector.broadcast %486 : vector<8x1xf32> to vector<8x256xf32>
    %490 = arith.addf %488, %489 : vector<8x256xf32>
    %cst_215 = arith.constant 0.000000e+00 : f32
    %491 = vector.broadcast %cst_215 : f32 to vector<8x256xf32>
    %492 = arith.maximumf %490, %491 : vector<8x256xf32>
    %493 = tpu.concatenate %387, %422, %492 in 0 : vector<8x256xf32>, vector<8x256xf32>, vector<8x256xf32> -> vector<24x256xf32>
    %c0_216 = arith.constant 0 : index
    %c2304 = arith.constant 2304 : index
    %494 = vector.load %arg2[%c0_216, %c2304] : memref<8x2432xf32, #tpu.memory_space<vmem>>, vector<8x24xf32>
    %cst_217 = arith.constant dense<0.000000e+00> : vector<8x256xf32>
    %495 = tpu.matmul %494, %493, %cst_217 {dimension_numbers = #tpu.dot_dimension_numbers<[1], [0], [0], [1], [0, 0, 1, 1], [], []>} : vector<8x24xf32>, vector<24x256xf32>, vector<8x256xf32> -> vector<8x256xf32>
    %c0_218 = arith.constant 0 : index
    %c17_219 = arith.constant 17 : index
    %496 = vector.load %arg3[%c0_218, %c17_219] : memref<8x18xf32, #tpu.memory_space<vmem>>, vector<8x1xf32>
    %c0_220 = arith.constant 0 : index
    %c17_221 = arith.constant 17 : index
    %497 = vector.load %arg4[%c0_220, %c17_221] : memref<8x18xf32, #tpu.memory_space<vmem>>, vector<8x1xf32>
    %498 = vector.broadcast %496 : vector<8x1xf32> to vector<8x256xf32>
    %499 = arith.mulf %495, %498 : vector<8x256xf32>
    %500 = vector.broadcast %497 : vector<8x1xf32> to vector<8x256xf32>
    %501 = arith.addf %499, %500 : vector<8x256xf32>
    %cst_222 = arith.constant 0.000000e+00 : f32
    %502 = vector.broadcast %cst_222 : f32 to vector<8x256xf32>
    %503 = arith.maximumf %501, %502 : vector<8x256xf32>
    %504 = arith.addf %503, %377 : vector<8x256xf32>
    %c0_223 = arith.constant 0 : index
    %c0_224 = arith.constant 0 : index
    %c0_225 = arith.constant 0 : index
    %505 = vector.load %arg6[%c0_223, %c0_224, %c0_225] : memref<1x8x256xf32, #tpu.memory_space<vmem>>, vector<1x8x256xf32>
    %506 = vector.shape_cast %505 : vector<1x8x256xf32> to vector<8x256xf32>
    %507 = vector.shape_cast %504 : vector<8x256xf32> to vector<1x8x256xf32>
    tpu.vector_store %arg6[%c0_223, %c0_224, %c0_225], %507 {strides = array<i32>} : memref<1x8x256xf32, #tpu.memory_space<vmem>>, vector<1x8x256xf32>,
    return
  }
  func.func @transform_0(%arg0: i32) -> (i32, i32, i32) {
    %c0_i32 = arith.constant 0 : i32
    %c0_i32_0 = arith.constant 0 : i32
    %c0_i32_1 = arith.constant 0 : i32
    return %arg0, %c0_i32, %c0_i32_0 : i32, i32, i32
  }
  func.func @transform_1(%arg0: i32) -> (i32, i32) {
    %c0_i32 = arith.constant 0 : i32
    %c0_i32_0 = arith.constant 0 : i32
    %c0_i32_1 = arith.constant 0 : i32
    return %c0_i32, %c0_i32_0 : i32, i32
  }
  func.func @transform_2(%arg0: i32) -> (i32, i32) {
    %c0_i32 = arith.constant 0 : i32
    %c0_i32_0 = arith.constant 0 : i32
    %c0_i32_1 = arith.constant 0 : i32
    return %c0_i32, %c0_i32_0 : i32, i32
  }
  func.func @transform_3(%arg0: i32) -> (i32, i32) {
    %c0_i32 = arith.constant 0 : i32
    %c0_i32_0 = arith.constant 0 : i32
    %c0_i32_1 = arith.constant 0 : i32
    return %c0_i32, %c0_i32_0 : i32, i32
  }
  func.func @transform_4(%arg0: i32) -> (i32, i32) {
    %c0_i32 = arith.constant 0 : i32
    %c0_i32_0 = arith.constant 0 : i32
    %c0_i32_1 = arith.constant 0 : i32
    return %c0_i32, %c0_i32_0 : i32, i32
  }
  func.func @transform_5(%arg0: i32) -> (i32, i32, i32) {
    %c0_i32 = arith.constant 0 : i32
    %c0_i32_0 = arith.constant 0 : i32
    %c0_i32_1 = arith.constant 0 : i32
    return %arg0, %c0_i32, %c0_i32_0 : i32, i32, i32
  }
}

</mosaic_0001>

<llo_original>
// kernel: mfrf_dila_submeter.1
$region0: #{mfrf_dila_submeter.1}
  #allocation0 [shape = 'u32[]', space=smem, size = 0x4, offset = 0x4, fixed_abs, tag = 'smem constant byte address 0x4 - core index']
  #allocation1 [shape = 'u32[144,128]{1,0:T(1,128)}', space=vmem, size = 0x12000, scoped, tag = 'internal scratch']
  %s0 = inlined_call_operand.vmem [shape: f32[2,8,256], index: 0, kind: input, shape index: {}]
  %s1 = inlined_call_operand.vmem [shape: f32[8,2432], index: 1, kind: input, shape index: {}]
  %s2 = inlined_call_operand.hbm [shape: f32[8,18], index: 2, kind: input, shape index: {}]
  %s3 = inlined_call_operand.hbm [shape: f32[8,18], index: 3, kind: input, shape index: {}]
  %s4 = inlined_call_operand.vmem [shape: f32[18,256], index: 4, kind: input, shape index: {}]
  %s5 = inlined_call_operand.vmem [shape: f32[2,8,256], index: 5, kind: output, shape index: {}]
  %s6 = sld [smem:[#allocation0]]
  $region61: #{mfrf_dila_submeter.1} parent=0
    _
  %s8 = ssub.s32 1, %s6
  %s9 = scalar_select 0, %s8, %s6
  $region1: #{mfrf_dila_submeter.1} parent=0
    #allocation2 [shape = 'u8[4096]{0}', space=vmem, size = 0x1000, scoped, tag = 'input window, operand 2, single buffered']
    #allocation3 [shape = 's32[2]{0}', space=sflag, size = 0x8, scoped, tag = 'scoped memory for mfrf_dila_submeter.1']
    #allocation4 [shape = 'u8[4096]{0}', space=vmem, size = 0x1000, scoped, tag = 'input window, operand 3, single buffered']
    #allocation5 [shape = 's32[1]{0}', space=sflag, size = 0x4, scoped, tag = 'scoped memory for mfrf_dila_submeter.1']
    %10 = vsyncpa [#allocation3], 0
    %11 = vsyncpa [#allocation5], 0
    loop: start=0, step=1, limit=4
    $region2: #{mfrf_dila_submeter.1} parent=1 // loop_pre_header
      _
    $region3: #{mfrf_dila_submeter.1} parent=1 // loop_header
      %s13 = sphi 0, %s17
      %p14 = scmp.ge.s32.totalorder %s13, 4
      %s23 = sphi 0, %s25
      %s26 = sphi 0, %s23
      %s27 = sphi 0, %s26
      %s43 = sphi 0, %s27
      %s47 = sphi 0, %s47
      %s49 = sphi 0, %s47
      %s50 = sphi 0, %s49
      %s64 = sphi 0, %s50
      %s68 = sphi 0, %s68
      %s70 = sphi 0, %s68
      %s71 = sphi 0, %s70
      %s85 = sphi 0, %s71
      %s89 = sphi 0, %s89
      %s91 = sphi 0, %s89
      %s92 = sphi 0, %s91
      %s106 = sphi 0, %s92
      %s110 = sphi 0, %s110
      %s112 = sphi 0, %s110
      %s113 = sphi 0, %s112
      %s127 = sphi 0, %s113
      %s133 = sphi 0, %s135
      %s136 = sphi 0, %s133
      %s137 = sphi 0, %s136
      %s153 = sphi 0, %s137
    $region4: #{mfrf_dila_submeter.1} parent=1 // loop_header_branch
      %16 = sbr.rel (%p14) target = $region8
    $region5: #{mfrf_dila_submeter.1} parent=1 // loop_body
      %s18 = ssub.s32 %s13, 1
      %s19 = ssub.s32 %s13, 2
      %s20 = sadd.s32 %s13, 1
      %s21 = ssub.s32 %s13, %s20
      %p22 = scmp.eq.s32.totalorder %s21, 0
      %s24 = sadd.s32 %s23, 1
      %s25 = scalar_select %p22, %s23, %s24
      %p28 = pneg %p22
      %p29 = scmp.eq.s32.totalorder %s13, 1
      %p30 = por %p28, %p29
      %p31 = scmp.ne.s32.totalorder %s23, %s26
      %p32 = scmp.eq.s32.totalorder %s13, 0
      %p33 = por %p31, %p32
      %p34 = scmp.ne.s32.totalorder %s23, %s26
      %p35 = scmp.eq.s32.totalorder %s18, 1
      %p36 = por %p34, %p35
      %p37 = scmp.ne.s32.totalorder %s26, %s27
      %p38 = scmp.eq.s32.totalorder %s18, 0
      %p39 = por %p37, %p38
      %p40 = scmp.ne.s32.totalorder %s26, %s27
      %p41 = scmp.eq.s32.totalorder %s19, 1
      %p42 = por %p40, %p41
      %p44 = scmp.ne.s32.totalorder %s27, %s43
      %p45 = scmp.eq.s32.totalorder %s19, 0
      %p46 = por %p44, %p45
      %s48 = sadd.s32 %s47, 1
      %p51 = scmp.eq.s32.totalorder %s13, 1
      %p52 = scmp.ne.s32.totalorder %s47, %s49
      %p53 = scmp.eq.s32.totalorder %s13, 0
      %p54 = por %p52, %p53
      %p55 = scmp.ne.s32.totalorder %s47, %s49
      %p56 = scmp.eq.s32.totalorder %s18, 1
      %p57 = por %p55, %p56
      %p58 = scmp.ne.s32.totalorder %s49, %s50
      %p59 = scmp.eq.s32.totalorder %s18, 0
      %p60 = por %p58, %p59
      %p61 = scmp.ne.s32.totalorder %s49, %s50
      %p62 = scmp.eq.s32.totalorder %s19, 1
      %p63 = por %p61, %p62
      %p65 = scmp.ne.s32.totalorder %s50, %s64
      %p66 = scmp.eq.s32.totalorder %s19, 0
      %p67 = por %p65, %p66
      %s69 = sadd.s32 %s68, 1
      %p72 = scmp.eq.s32.totalorder %s13, 1
      %p73 = scmp.ne.s32.totalorder %s68, %s70
      %p74 = scmp.eq.s32.totalorder %s13, 0
      %p75 = por %p73, %p74
      %p76 = scmp.ne.s32.totalorder %s68, %s70
      %p77 = scmp.eq.s32.totalorder %s18, 1
      %p78 = por %p76, %p77
      %p79 = scmp.ne.s32.totalorder %s70, %s71
      %p80 = scmp.eq.s32.totalorder %s18, 0
      %p81 = por %p79, %p80
      %p82 = scmp.ne.s32.totalorder %s70, %s71
      %p83 = scmp.eq.s32.totalorder %s19, 1
      %p84 = por %p82, %p83
      %p86 = scmp.ne.s32.totalorder %s71, %s85
      %p87 = scmp.eq.s32.totalorder %s19, 0
      %p88 = por %p86, %p87
      %s90 = sadd.s32 %s89, 1
      %p93 = scmp.eq.s32.totalorder %s13, 1
      %p94 = scmp.ne.s32.totalorder %s89, %s91
      %p95 = scmp.eq.s32.totalorder %s13, 0
      %p96 = por %p94, %p95
      %p97 = scmp.ne.s32.totalorder %s89, %s91
      %p98 = scmp.eq.s32.totalorder %s18, 1
      %p99 = por %p97, %p98
      %p100 = scmp.ne.s32.totalorder %s91, %s92
      %p101 = scmp.eq.s32.totalorder %s18, 0
      %p102 = por %p100, %p101
      %p103 = scmp.ne.s32.totalorder %s91, %s92
      %p104 = scmp.eq.s32.totalorder %s19, 1
      %p105 = por %p103, %p104
      %p107 = scmp.ne.s32.totalorder %s92, %s106
      %p108 = scmp.eq.s32.totalorder %s19, 0
      %p109 = por %p107, %p108
      %s111 = sadd.s32 %s110, 1
      %p114 = scmp.eq.s32.totalorder %s13, 1
      %p115 = scmp.ne.s32.totalorder %s110, %s112
      %p116 = scmp.eq.s32.totalorder %s13, 0
      %p117 = por %p115, %p116
      %p118 = scmp.ne.s32.totalorder %s110, %s112
      %p119 = scmp.eq.s32.totalorder %s18, 1
      %p120 = por %p118, %p119
      %p121 = scmp.ne.s32.totalorder %s112, %s113
      %p122 = scmp.eq.s32.totalorder %s18, 0
      %p123 = por %p121, %p122
      %p124 = scmp.ne.s32.totalorder %s112, %s113
      %p125 = scmp.eq.s32.totalorder %s19, 1
      %p126 = por %p124, %p125
      %p128 = scmp.ne.s32.totalorder %s113, %s127
      %p129 = scmp.eq.s32.totalorder %s19, 0
      %p130 = por %p128, %p129
      %s131 = ssub.s32 %s13, %s20
      %p132 = scmp.eq.s32.totalorder %s131, 0
      %s134 = sadd.s32 %s133, 1
      %s135 = scalar_select %p132, %s133, %s134
      %p138 = pneg %p132
      %p139 = scmp.eq.s32.totalorder %s13, 1
      %p140 = por %p138, %p139
      %p141 = scmp.ne.s32.totalorder %s133, %s136
      %p142 = scmp.eq.s32.totalorder %s13, 0
      %p143 = por %p141, %p142
      %p144 = scmp.ne.s32.totalorder %s133, %s136
      %p145 = scmp.eq.s32.totalorder %s18, 1
      %p146 = por %p144, %p145
      %p147 = scmp.ne.s32.totalorder %s136, %s137
      %p148 = scmp.eq.s32.totalorder %s18, 0
      %p149 = por %p147, %p148
      %p150 = scmp.ne.s32.totalorder %s136, %s137
      %p151 = scmp.eq.s32.totalorder %s19, 1
      %p152 = por %p150, %p151
      %p154 = scmp.ne.s32.totalorder %s137, %s153
      %p155 = scmp.eq.s32.totalorder %s19, 0
      %p156 = por %p154, %p155
      %p157 = scmp.le.s32.totalorder 1, %s13
      %p158 = scmp.lt.s32.totalorder %s13, 3
      %p159 = pnand %p157, %p158
      %p160 = pneg %p159
      // Predicated region
      $region9: #{mfrf_dila_submeter.1} parent=5 // pred_check
        _
      $region10: #{mfrf_dila_submeter.1} parent=5 // pred_check_branch
        %162 = sbr.rel (%p159) target = $region12
      $region11: #{mfrf_dila_submeter.1} parent=5 // pred_region
        %s163 = ssub.s32 %s13, 1
        // Predicated region
        $region13: #{mfrf_dila_submeter.1} parent=11 // pred_check
          %p164 = pneg %p60
        $region14: #{mfrf_dila_submeter.1} parent=11 // pred_check_branch
          %166 = sbr.rel (%p164) target = $region16
        $region15: #{mfrf_dila_submeter.1} parent=11 // pred_region
          _
        $region16: #{mfrf_dila_submeter.1} parent=11 // pred_fallthru
          _
        // Predicated region
        $region17: #{mfrf_dila_submeter.1} parent=11 // pred_check
          %p167 = pneg %p81
        $region18: #{mfrf_dila_submeter.1} parent=11 // pred_check_branch
          %169 = sbr.rel (%p167) target = $region20
        $region19: #{mfrf_dila_submeter.1} parent=11 // pred_region
          %s171 = ssub.s32 128, 128
          %172 = vsyncadd [#allocation3], %s171
          %s174 = sshll.u32 [#allocation2], 4
          %s175 = int_to_ptr.vmem [resolvable:$true] %s174
          %177 = dma.hbm_to_vmem [thread:$0]  %s2, 128, %s175, [#allocation3]
        $region20: #{mfrf_dila_submeter.1} parent=11 // pred_fallthru
          _
        // Predicated region
        $region21: #{mfrf_dila_submeter.1} parent=11 // pred_check
          %p178 = pneg %p102
        $region22: #{mfrf_dila_submeter.1} parent=11 // pred_check_branch
          %180 = sbr.rel (%p178) target = $region24
        $region23: #{mfrf_dila_submeter.1} parent=11 // pred_region
          %s182 = ssub.s32 128, 128
          %183 = vsyncadd [#allocation5], %s182
          %s185 = sshll.u32 [#allocation4], 4
          %s186 = int_to_ptr.vmem [resolvable:$true] %s185
          %188 = dma.hbm_to_vmem [thread:$0]  %s3, 128, %s186, [#allocation5]
        $region24: #{mfrf_dila_submeter.1} parent=11 // pred_fallthru
          _
        // Predicated region
        $region25: #{mfrf_dila_submeter.1} parent=11 // pred_check
          %p189 = pneg %p123
        $region26: #{mfrf_dila_submeter.1} parent=11 // pred_check_branch
          %191 = sbr.rel (%p189) target = $region28
        $region27: #{mfrf_dila_submeter.1} parent=11 // pred_region
          _
        $region28: #{mfrf_dila_submeter.1} parent=11 // pred_fallthru
          _
      $region12: #{mfrf_dila_submeter.1} parent=5 // pred_fallthru
        _
      %p192 = scmp.lt.s32.totalorder %s13, 2
      // Predicated region
      $region29: #{mfrf_dila_submeter.1} parent=5 // pred_check
        %p193 = pneg %p192
      $region30: #{mfrf_dila_submeter.1} parent=5 // pred_check_branch
        %195 = sbr.rel (%p193) target = $region32
      $region31: #{mfrf_dila_submeter.1} parent=5 // pred_region
        // Predicated region
        $region33: #{mfrf_dila_submeter.1} parent=31 // pred_check
          %p196 = pneg %p33
        $region34: #{mfrf_dila_submeter.1} parent=31 // pred_check_branch
          %198 = sbr.rel (%p196) target = $region36
        $region35: #{mfrf_dila_submeter.1} parent=31 // pred_region
          %p199 = scmp.lt.s32.totalorder %s13, 1
          %s200 = scalar_select %p199, %s13, 1
          %s201 = smul.addr %s200, 2
          %s202 = smul.addr %s201, 8
          %s203 = scalar_lea.vmem %s0, %s202
        $region36: #{mfrf_dila_submeter.1} parent=31 // pred_fallthru
          _
      $region32: #{mfrf_dila_submeter.1} parent=5 // pred_fallthru
        _
      %p204 = scmp.le.s32.totalorder 1, %s13
      %p205 = scmp.lt.s32.totalorder %s13, 3
      %p206 = pnand %p204, %p205
      %p207 = pneg %p206
      // Predicated region
      $region37: #{mfrf_dila_submeter.1} parent=5 // pred_check
        _
      $region38: #{mfrf_dila_submeter.1} parent=5 // pred_check_branch
        %209 = sbr.rel (%p206) target = $region40
      $region39: #{mfrf_dila_submeter.1} parent=5 // pred_region
        %s210 = ssub.s32 %s13, 1
        // Predicated region
        $region41: #{mfrf_dila_submeter.1} parent=39 // pred_check
          %p211 = pneg %p81
        $region42: #{mfrf_dila_submeter.1} parent=39 // pred_check_branch
          %213 = sbr.rel (%p211) target = $region44
        $region43: #{mfrf_dila_submeter.1} parent=39 // pred_region
          %214 = dma.done [#allocation3], 128
        $region44: #{mfrf_dila_submeter.1} parent=39 // pred_fallthru
          _
        // Predicated region
        $region45: #{mfrf_dila_submeter.1} parent=39 // pred_check
          %p215 = pneg %p102
        $region46: #{mfrf_dila_submeter.1} parent=39 // pred_check_branch
          %217 = sbr.rel (%p215) target = $region48
        $region47: #{mfrf_dila_submeter.1} parent=39 // pred_region
          %218 = dma.done [#allocation5], 128
        $region48: #{mfrf_dila_submeter.1} parent=39 // pred_fallthru
          _
        %p219 = scmp.lt.s32.totalorder %s18, 1
        %s220 = scalar_select %p219, %s18, 1
        %s221 = smul.addr %s220, 2
        %s222 = smul.addr %s221, 8
        %s223 = scalar_lea.vmem %s0, %s222
        %p224 = pneg %p39
        %p225 = pneg %p36
        %p226 = pneg %p60
        %p227 = pneg %p57
        %p228 = pneg %p81
        %p229 = pneg %p78
        %p230 = pneg %p102
        %p231 = pneg %p99
        %p232 = pneg %p123
        %p233 = pneg %p120
        %p234 = pneg %p149
        %p235 = pneg %p146
        %p236 = scmp.lt.s32.totalorder %s18, 1
        %s237 = scalar_select %p236, %s18, 1
        %s238 = smul.addr %s237, 2
        %s239 = smul.addr %s238, 8
        %s240 = scalar_lea.vmem %s5, %s239
        %p241 = scmp.lt.s32.totalorder %s18, 1
        %s242 = scalar_select %p241, %s18, 1
        %s243 = smul.addr %s242, 2
        %s244 = smul.addr %s243, 8
        %s245 = scalar_lea.vmem %s0, %s244
        %p246 = scmp.lt.s32.totalorder %s18, 1
        %s247 = scalar_select %p246, %s18, 1
        %s248 = smul.addr %s247, 2
        %s249 = smul.addr %s248, 8
        %s250 = scalar_lea.vmem %s5, %s249
        %v251 = vld [vmem:[%s4] ss:$8 sm:$0x3]
        %s252 = scalar_lea.vmem %s4, 1
        %v253 = vld [vmem:[%s252] ss:$8 sm:$0x3]
        %s254 = scalar_lea.vmem %s4, 2
        %v255 = vld [vmem:[%s254] ss:$8 sm:$0x3]
        %s256 = scalar_lea.vmem %s4, 3
        %v257 = vld [vmem:[%s256] ss:$8 sm:$0x3]
        %s258 = scalar_lea.vmem %s4, 5
        %v259 = vld [vmem:[%s258] ss:$8 sm:$0x3]
        %s260 = scalar_lea.vmem %s4, 6
        %v261 = vld [vmem:[%s260] ss:$8 sm:$0x3]
        %s262 = scalar_lea.vmem %s4, 7
        %v263 = vld [vmem:[%s262] ss:$8 sm:$0x3]
        %s264 = scalar_lea.vmem %s4, 16
        %v265 = vld [vmem:[%s264] ss:$8 sm:$0x3]
        %s266 = scalar_lea.vmem %s4, 17
        %v267 = vld [vmem:[%s266] ss:$8 sm:$0x3]
        %s268 = scalar_lea.vmem %s4, 18
        %v269 = vld [vmem:[%s268] ss:$8 sm:$0x3]
        %s270 = scalar_lea.vmem %s4, 19
        %v271 = vld [vmem:[%s270] ss:$8 sm:$0x3]
        %s272 = scalar_lea.vmem %s4, 20
        %v273 = vld [vmem:[%s272] ss:$8 sm:$0x3]
        %s274 = scalar_lea.vmem %s4, 22
        %v275 = vld [vmem:[%s274] ss:$8 sm:$0x3]
        %s276 = scalar_lea.vmem %s4, 23
        %v277 = vld [vmem:[%s276] ss:$8 sm:$0x3]
        %s278 = scalar_lea.vmem %s4, 32
        %v279 = vld [vmem:[%s278] ss:$8 sm:$0x3]
        %s280 = scalar_lea.vmem %s4, 33
        %v281 = vld [vmem:[%s280] ss:$8 sm:$0x3]
        %v282 = vld [vmem:[%s245] sm:$0xff]
        %v283 = vld [vmem:[%s245 + $0x8] sm:$0xff]
        %v284 = vld [vmem:[%s1] sm:$0xff]
        %285 = vrot.lane.b32.xlu0 %v282, 17
        %v286 = vpop.permute.xlu0 %285
        %287 = vrot.lane.b32.xlu0 %v283, 17
        %v288 = vpop.permute.xlu0 %287
        %v289 = vlaneseq
        %v290 = vand.u32 %v289, 127
        %vm291 = vcmp.lt.s32.totalorder %v290, 17
        %v292 = vsel %vm291, %v286, %v288
        %v293 = vsel %vm291, %v288, %v286
        %v295 = vlaneseq
        %v296 = vshrl.u32 %v295, 7
        %v297 = vsub.s32 0, %v296
        %v298 = vrot.slane %v251, %v297
        %v299 = vlaneseq
        %v300 = vshrl.u32 %v299, 7
        %v301 = vsub.s32 1, %v300
        %v302 = vrot.slane %v251, %v301
        %v305 = vmul.f32 %v293, %v298
        %v306 = vmul.f32 %v292, %v302
        %307 = vrot.lane.b32.xlu0 %v282, 16
        %v308 = vpop.permute.xlu0 %307
        %309 = vrot.lane.b32.xlu0 %v283, 16
        %v310 = vpop.permute.xlu0 %309
        %vm311 = vcmp.lt.s32.totalorder %v290, 16
        %v312 = vsel %vm311, %v308, %v310
        %v313 = vsel %vm311, %v310, %v308
        %v315 = vlaneseq
        %v316 = vshrl.u32 %v315, 7
        %v317 = vsub.s32 0, %v316
        %v318 = vrot.slane %v253, %v317
        %v319 = vlaneseq
        %v320 = vshrl.u32 %v319, 7
        %v321 = vsub.s32 1, %v320
        %v322 = vrot.slane %v253, %v321
        %v325 = vmul.f32 %v313, %v318
        %v326 = vmul.f32 %v312, %v322
        %327 = vrot.lane.b32.xlu0 %v282, 15
        %v328 = vpop.permute.xlu0 %327
        %329 = vrot.lane.b32.xlu0 %v283, 15
        %v330 = vpop.permute.xlu0 %329
        %vm331 = vcmp.lt.s32.totalorder %v290, 15
        %v332 = vsel %vm331, %v328, %v330
        %v333 = vsel %vm331, %v330, %v328
        %v335 = vlaneseq
        %v336 = vshrl.u32 %v335, 7
        %v337 = vsub.s32 0, %v336
        %v338 = vrot.slane %v255, %v337
        %v339 = vlaneseq
        %v340 = vshrl.u32 %v339, 7
        %v341 = vsub.s32 1, %v340
        %v342 = vrot.slane %v255, %v341
        %v345 = vmul.f32 %v333, %v338
        %v346 = vmul.f32 %v332, %v342
        %347 = vrot.lane.b32.xlu0 %v282, 1
        %v348 = vpop.permute.xlu0 %347
        %349 = vrot.lane.b32.xlu0 %v283, 1
        %v350 = vpop.permute.xlu0 %349
        %vm351 = vcmp.lt.s32.totalorder %v290, 1
        %v352 = vsel %vm351, %v348, %v350
        %v353 = vsel %vm351, %v350, %v348
        %v355 = vlaneseq
        %v356 = vshrl.u32 %v355, 7
        %v357 = vsub.s32 0, %v356
        %v358 = vrot.slane %v257, %v357
        %v359 = vlaneseq
        %v360 = vshrl.u32 %v359, 7
        %v361 = vsub.s32 1, %v360
        %v362 = vrot.slane %v257, %v361
        %v365 = vmul.f32 %v353, %v358
        %v366 = vmul.f32 %v352, %v362
        %367 = vrot.lane.b32.xlu0 %v282, 127
        %v368 = vpop.permute.xlu0 %367
        %369 = vrot.lane.b32.xlu0 %v283, 127
        %v370 = vpop.permute.xlu0 %369
        %vm371 = vcmp.lt.s32.totalorder %v290, 127
        %v372 = vsel %vm371, %v368, %v370
        %v373 = vsel %vm371, %v370, %v368
        %v375 = vlaneseq
        %v376 = vshrl.u32 %v375, 7
        %v377 = vsub.s32 0, %v376
        %v378 = vrot.slane %v259, %v377
        %v379 = vlaneseq
        %v380 = vshrl.u32 %v379, 7
        %v381 = vsub.s32 1, %v380
        %v382 = vrot.slane %v259, %v381
        %v385 = vmul.f32 %v372, %v378
        %v386 = vmul.f32 %v373, %v382
        %387 = vrot.lane.b32.xlu0 %v282, 113
        %v388 = vpop.permute.xlu0 %387
        %389 = vrot.lane.b32.xlu0 %v283, 113
        %v390 = vpop.permute.xlu0 %389
        %vm391 = vcmp.lt.s32.totalorder %v290, 113
        %v392 = vsel %vm391, %v388, %v390
        %v393 = vsel %vm391, %v390, %v388
        %v395 = vlaneseq
        %v396 = vshrl.u32 %v395, 7
        %v397 = vsub.s32 0, %v396
        %v398 = vrot.slane %v261, %v397
        %v399 = vlaneseq
        %v400 = vshrl.u32 %v399, 7
        %v401 = vsub.s32 1, %v400
        %v402 = vrot.slane %v261, %v401
        %v405 = vmul.f32 %v392, %v398
        %v406 = vmul.f32 %v393, %v402
        %407 = vrot.lane.b32.xlu0 %v282, 112
        %v408 = vpop.permute.xlu0 %407
        %409 = vrot.lane.b32.xlu0 %v283, 112
        %v410 = vpop.permute.xlu0 %409
        %vm411 = vcmp.lt.s32.totalorder %v290, 112
        %v412 = vsel %vm411, %v408, %v410
        %v413 = vsel %vm411, %v410, %v408
        %v415 = vlaneseq
        %v416 = vshrl.u32 %v415, 7
        %v417 = vsub.s32 0, %v416
        %v418 = vrot.slane %v263, %v417
        %v419 = vlaneseq
        %v420 = vshrl.u32 %v419, 7
        %v421 = vsub.s32 1, %v420
        %v422 = vrot.slane %v263, %v421
        %v425 = vmul.f32 %v412, %v418
        %v426 = vmul.f32 %v413, %v422
        %427 = vrot.lane.b32.xlu0 %v282, 111
        %v428 = vpop.permute.xlu0 %427
        %429 = vrot.lane.b32.xlu0 %v283, 111
        %v430 = vpop.permute.xlu0 %429
        %vm431 = vcmp.lt.s32.totalorder %v290, 111
        %v432 = vsel %vm431, %v428, %v430
        %v433 = vsel %vm431, %v430, %v428
        %v435 = vlaneseq
        %v436 = vshrl.u32 %v435, 7
        %v437 = vsub.s32 0, %v436
        %v438 = vrot.slane %v265, %v437
        %v439 = vlaneseq
        %v440 = vshrl.u32 %v439, 7
        %v441 = vsub.s32 1, %v440
        %v442 = vrot.slane %v265, %v441
        %v445 = vmul.f32 %v432, %v438
        %v446 = vmul.f32 %v433, %v442
        %vm447 = vcmask 588800
        %v449 = vsel %vm447, %v284, 0
        %451 = vmatprep.subr.mxu0 %v306
        %452 = vmatpush1.msra.mxu0 %v305
        %453 = vmatprep.subr.mxu0 %v326
        %454 = vmatpush1.msra.mxu0 %v325
        %455 = vmatprep.subr.mxu0 %v346
        %456 = vmatpush1.msra.mxu0 %v345
        %457 = vmatprep.subr.mxu0 %v366
        %458 = vmatpush1.msra.mxu0 %v365
        %459 = vmatprep.subr.mxu0 %v283
        %460 = vmatpush1.msra.mxu0 %v282
        %461 = vmatprep.subr.mxu0 %v386
        %462 = vmatpush1.msra.mxu0 %v385
        %463 = vmatprep.subr.mxu0 %v406
        %464 = vmatpush1.msra.mxu0 %v405
        %465 = vmatprep.subr.mxu0 %v426
        %466 = vmatpush1.msra.mxu0 %v425
        %467 = vmatprep.subr.mxu0 %v446
        %468 = vmatpush1.msra.mxu0 %v445
        %469 = vmatprep.subr.mxu0 0.0
        %470 = vmatpush1.msra.mxu0 0.0
        %471 = vmatprep.subr.mxu0 0.0
        %472 = vmatpush1.msra.mxu0 0.0
        %473 = vmatprep.subr.mxu0 0.0
        %474 = vmatpush1.msra.mxu0 0.0
        %475 = vmatprep.subr.mxu0 0.0
        %476 = vmatpush1.msra.mxu0 0.0
        %477 = vmatprep.subr.mxu0 0.0
        %478 = vmatpush1.msra.mxu0 0.0
        %479 = vmatprep.subr.mxu0 0.0
        %480 = vmatpush1.msra.mxu0 0.0
        %481 = vmatprep.subr.mxu0 0.0
        %482 = vmatpush1.msra.mxu0 0.0
        %483 = vmatprep.subr.mxu0 0.0
        %484 = vmatpush1.msra.mxu0 0.0
        %485 = vmatprep.subr.mxu0 0.0
        %486 = vmatpush1.msra.mxu0 0.0
        %487 = vmatprep.subr.mxu0 0.0
        %488 = vmatpush1.msra.mxu0 0.0
        %489 = vmatprep.subr.mxu0 0.0
        %490 = vmatpush1.msra.mxu0 0.0
        %491 = vmatprep.subr.mxu0 0.0
        %492 = vmatpush1.msra.mxu0 0.0
        %493 = vmatprep.subr.mxu0 0.0
        %494 = vmatpush1.msra.mxu0 0.0
        %495 = vmatprep.subr.mxu0 0.0
        %496 = vmatpush1.msra.mxu0 0.0
        %497 = vmatprep.subr.mxu0 0.0
        %498 = vmatpush1.msra.mxu0 0.0
        %499 = vmatprep.subr.mxu0 0.0
        %500 = vmatpush1.msra.mxu0 0.0
        %501 = vmatprep.subr.mxu0 0.0
        %502 = vmatpush1.msra.mxu0 0.0
        %503 = vmatprep.subr.mxu0 0.0
        %504 = vmatpush1.msra.mxu0 0.0
        %505 = vmatprep.subr.mxu0 0.0
        %506 = vmatpush1.msra.mxu0 0.0
        %507 = vmatprep.subr.mxu0 0.0
        %508 = vmatpush1.msra.mxu0 0.0
        %509 = vmatprep.subr.mxu0 0.0
        %510 = vmatpush1.msra.mxu0 0.0
        %511 = vmatprep.subr.mxu0 0.0
        %512 = vmatpush1.msra.mxu0 0.0
        %513 = vmatprep.subr.mxu0 0.0
        %514 = vmatpush1.msra.mxu0 0.0
        %515 = vmatprep.mubr.f32.mxu0 0.0
        %516 = vmatmul.mubr.f32.gmra.mrb[0].mxu0 %v449
        %v517 = vpop.f32.mrb[0].mxu0
        %v518 = vadd.f32 0.0, %v517
        %v519 = vpop.f32.mrb[0].mxu0
        %v520 = vadd.f32 0.0, %v519
        %521 = vdwg.mxu0
        %v522 = vld [vmem:[#allocation2] sm:$0xff]
        %v523 = vld [vmem:[#allocation4] sm:$0xff]
        %525 = vset.pattern.permute.xlu0 0
        %526 = vperm.xlu0 %525, %v522
        %v527 = vpop.permute.xlu0 %526
        %v529 = vmul.f32 %v518, %v527
        %v530 = vmul.f32 %v520, %v527
        %532 = vset.pattern.permute.xlu0 0
        %533 = vperm.xlu0 %532, %v523
        %v534 = vpop.permute.xlu0 %533
        %v536 = vadd.f32 %v529, %v534
        %v537 = vadd.f32 %v530, %v534
        %v538 = vmax.f32 %v536, 0.0
        %v539 = vmax.f32 %v537, 0.0
        %v540 = vld [vmem:[%s1 + $0x8] sm:$0xff]
        %vm541 = vcmask 64512
        %v543 = vsel %vm541, %v540, 0
        %545 = vmatprep.subr.mxu0 %v539
        %546 = vmatpush1.msra.mxu0 %v538
        %547 = vmatprep.subr.mxu0 0.0
        %548 = vmatpush1.msra.mxu0 0.0
        %549 = vmatprep.subr.mxu0 0.0
        %550 = vmatpush1.msra.mxu0 0.0
        %551 = vmatprep.subr.mxu0 0.0
        %552 = vmatpush1.msra.mxu0 0.0
        %553 = vmatprep.subr.mxu0 0.0
        %554 = vmatpush1.msra.mxu0 0.0
        %555 = vmatprep.subr.mxu0 0.0
        %556 = vmatpush1.msra.mxu0 0.0
        %557 = vmatprep.subr.mxu0 0.0
        %558 = vmatpush1.msra.mxu0 0.0
        %559 = vmatprep.subr.mxu0 0.0
        %560 = vmatpush1.msra.mxu0 0.0
        %561 = vmatprep.subr.mxu0 0.0
        %562 = vmatpush1.msra.mxu0 0.0
        %563 = vmatprep.subr.mxu0 0.0
        %564 = vmatpush1.msra.mxu0 0.0
        %565 = vmatprep.subr.mxu0 0.0
        %566 = vmatpush1.msra.mxu0 0.0
        %567 = vmatprep.subr.mxu0 0.0
        %568 = vmatpush1.msra.mxu0 0.0
        %569 = vmatprep.subr.mxu0 0.0
        %570 = vmatpush1.msra.mxu0 0.0
        %571 = vmatprep.subr.mxu0 0.0
        %572 = vmatpush1.msra.mxu0 0.0
        %573 = vmatprep.subr.mxu0 0.0
        %574 = vmatpush1.msra.mxu0 0.0
        %575 = vmatprep.subr.mxu0 0.0
        %576 = vmatpush1.msra.mxu0 0.0
        %577 = vmatprep.subr.mxu0 0.0
        %578 = vmatpush1.msra.mxu0 0.0
        %579 = vmatprep.subr.mxu0 0.0
        %580 = vmatpush1.msra.mxu0 0.0
        %581 = vmatprep.subr.mxu0 0.0
        %582 = vmatpush1.msra.mxu0 0.0
        %583 = vmatprep.subr.mxu0 0.0
        %584 = vmatpush1.msra.mxu0 0.0
        %585 = vmatprep.subr.mxu0 0.0
        %586 = vmatpush1.msra.mxu0 0.0
        %587 = vmatprep.subr.mxu0 0.0
        %588 = vmatpush1.msra.mxu0 0.0
        %589 = vmatprep.subr.mxu0 0.0
        %590 = vmatpush1.msra.mxu0 0.0
        %591 = vmatprep.subr.mxu0 0.0
        %592 = vmatpush1.msra.mxu0 0.0
        %593 = vmatprep.subr.mxu0 0.0
        %594 = vmatpush1.msra.mxu0 0.0
        %595 = vmatprep.subr.mxu0 0.0
        %596 = vmatpush1.msra.mxu0 0.0
        %597 = vmatprep.subr.mxu0 0.0
        %598 = vmatpush1.msra.mxu0 0.0
        %599 = vmatprep.subr.mxu0 0.0
        %600 = vmatpush1.msra.mxu0 0.0
        %601 = vmatprep.subr.mxu0 0.0
        %602 = vmatpush1.msra.mxu0 0.0
        %603 = vmatprep.subr.mxu0 0.0
        %604 = vmatpush1.msra.mxu0 0.0
        %605 = vmatprep.subr.mxu0 0.0
        %606 = vmatpush1.msra.mxu0 0.0
        %607 = vmatprep.subr.mxu0 0.0
        %608 = vmatpush1.msra.mxu0 0.0
        %609 = vmatprep.mubr.f32.mxu0 0.0
        %610 = vmatmul.mubr.f32.gmra.mrb[0].mxu0 %v543
        %v611 = vpop.f32.mrb[0].mxu0
        %v612 = vadd.f32 0.0, %v611
        %v613 = vpop.f32.mrb[0].mxu0
        %v614 = vadd.f32 0.0, %v613
        %615 = vdwg.mxu0
        %616 = vset.pattern.permute.xlu0 1
        %617 = vperm.xlu0 %616, %v522
        %v618 = vpop.permute.xlu0 %617
        %v620 = vmul.f32 %v612, %v618
        %v621 = vmul.f32 %v614, %v618
        %622 = vset.pattern.permute.xlu0 1
        %623 = vperm.xlu0 %622, %v523
        %v624 = vpop.permute.xlu0 %623
        %v626 = vadd.f32 %v620, %v624
        %v627 = vadd.f32 %v621, %v624
        %v628 = vmax.f32 %v626, 0.0
        %v629 = vmax.f32 %v627, 0.0
        %v630 = vld [vmem:[%s1 + $0x10] sm:$0xff]
        %631 = vrot.lane.b32.xlu0 %v538, 17
        %v632 = vpop.permute.xlu0 %631
        %633 = vrot.lane.b32.xlu0 %v539, 17
        %v634 = vpop.permute.xlu0 %633
        %v635 = vsel %vm291, %v632, %v634
        %v636 = vsel %vm291, %v634, %v632
        %v637 = vmul.f32 %v636, %v298
        %v638 = vmul.f32 %v635, %v302
        %639 = vrot.lane.b32.xlu0 %v538, 16
        %v640 = vpop.permute.xlu0 %639
        %641 = vrot.lane.b32.xlu0 %v539, 16
        %v642 = vpop.permute.xlu0 %641
        %v643 = vsel %vm311, %v640, %v642
        %v644 = vsel %vm311, %v642, %v640
        %v645 = vmul.f32 %v644, %v318
        %v646 = vmul.f32 %v643, %v322
        %647 = vrot.lane.b32.xlu0 %v538, 15
        %v648 = vpop.permute.xlu0 %647
        %649 = vrot.lane.b32.xlu0 %v539, 15
        %v650 = vpop.permute.xlu0 %649
        %v651 = vsel %vm331, %v648, %v650
        %v652 = vsel %vm331, %v650, %v648
        %v653 = vmul.f32 %v652, %v338
        %v654 = vmul.f32 %v651, %v342
        %655 = vrot.lane.b32.xlu0 %v538, 1
        %v656 = vpop.permute.xlu0 %655
        %657 = vrot.lane.b32.xlu0 %v539, 1
        %v658 = vpop.permute.xlu0 %657
        %v659 = vsel %vm351, %v656, %v658
        %v660 = vsel %vm351, %v658, %v656
        %v661 = vmul.f32 %v660, %v358
        %v662 = vmul.f32 %v659, %v362
        %663 = vrot.lane.b32.xlu0 %v538, 127
        %v664 = vpop.permute.xlu0 %663
        %665 = vrot.lane.b32.xlu0 %v539, 127
        %v666 = vpop.permute.xlu0 %665
        %v667 = vsel %vm371, %v664, %v666
        %v668 = vsel %vm371, %v666, %v664
        %v669 = vmul.f32 %v667, %v378
        %v670 = vmul.f32 %v668, %v382
        %671 = vrot.lane.b32.xlu0 %v538, 113
        %v672 = vpop.permute.xlu0 %671
        %673 = vrot.lane.b32.xlu0 %v539, 113
        %v674 = vpop.permute.xlu0 %673
        %v675 = vsel %vm391, %v672, %v674
        %v676 = vsel %vm391, %v674, %v672
        %v677 = vmul.f32 %v675, %v398
        %v678 = vmul.f32 %v676, %v402
        %679 = vrot.lane.b32.xlu0 %v538, 112
        %v680 = vpop.permute.xlu0 %679
        %681 = vrot.lane.b32.xlu0 %v539, 112
        %v682 = vpop.permute.xlu0 %681
        %v683 = vsel %vm411, %v680, %v682
        %v684 = vsel %vm411, %v682, %v680
        %v685 = vmul.f32 %v683, %v418
        %v686 = vmul.f32 %v684, %v422
        %687 = vrot.lane.b32.xlu0 %v538, 111
        %v688 = vpop.permute.xlu0 %687
        %689 = vrot.lane.b32.xlu0 %v539, 111
        %v690 = vpop.permute.xlu0 %689
        %v691 = vsel %vm431, %v688, %v690
        %v692 = vsel %vm431, %v690, %v688
        %v693 = vmul.f32 %v691, %v438
        %v694 = vmul.f32 %v692, %v442
        %v696 = vsel %vm447, %v630, 0
        %698 = vmatprep.subr.mxu0 %v638
        %699 = vmatpush1.msra.mxu0 %v637
        %700 = vmatprep.subr.mxu0 %v646
        %701 = vmatpush1.msra.mxu0 %v645
        %702 = vmatprep.subr.mxu0 %v654
        %703 = vmatpush1.msra.mxu0 %v653
        %704 = vmatprep.subr.mxu0 %v662
        %705 = vmatpush1.msra.mxu0 %v661
        %706 = vmatprep.subr.mxu0 %v539
        %707 = vmatpush1.msra.mxu0 %v538
        %708 = vmatprep.subr.mxu0 %v670
        %709 = vmatpush1.msra.mxu0 %v669
        %710 = vmatprep.subr.mxu0 %v678
        %711 = vmatpush1.msra.mxu0 %v677
        %712 = vmatprep.subr.mxu0 %v686
        %713 = vmatpush1.msra.mxu0 %v685
        %714 = vmatprep.subr.mxu0 %v694
        %715 = vmatpush1.msra.mxu0 %v693
        %716 = vmatprep.subr.mxu0 0.0
        %717 = vmatpush1.msra.mxu0 0.0
        %718 = vmatprep.subr.mxu0 0.0
        %719 = vmatpush1.msra.mxu0 0.0
        %720 = vmatprep.subr.mxu0 0.0
        %721 = vmatpush1.msra.mxu0 0.0
        %722 = vmatprep.subr.mxu0 0.0
        %723 = vmatpush1.msra.mxu0 0.0
        %724 = vmatprep.subr.mxu0 0.0
        %725 = vmatpush1.msra.mxu0 0.0
        %726 = vmatprep.subr.mxu0 0.0
        %727 = vmatpush1.msra.mxu0 0.0
        %728 = vmatprep.subr.mxu0 0.0
        %729 = vmatpush1.msra.mxu0 0.0
        %730 = vmatprep.subr.mxu0 0.0
        %731 = vmatpush1.msra.mxu0 0.0
        %732 = vmatprep.subr.mxu0 0.0
        %733 = vmatpush1.msra.mxu0 0.0
        %734 = vmatprep.subr.mxu0 0.0
        %735 = vmatpush1.msra.mxu0 0.0
        %736 = vmatprep.subr.mxu0 0.0
        %737 = vmatpush1.msra.mxu0 0.0
        %738 = vmatprep.subr.mxu0 0.0
        %739 = vmatpush1.msra.mxu0 0.0
        %740 = vmatprep.subr.mxu0 0.0
        %741 = vmatpush1.msra.mxu0 0.0
        %742 = vmatprep.subr.mxu0 0.0
        %743 = vmatpush1.msra.mxu0 0.0
        %744 = vmatprep.subr.mxu0 0.0
        %745 = vmatpush1.msra.mxu0 0.0
        %746 = vmatprep.subr.mxu0 0.0
        %747 = vmatpush1.msra.mxu0 0.0
        %748 = vmatprep.subr.mxu0 0.0
        %749 = vmatpush1.msra.mxu0 0.0
        %750 = vmatprep.subr.mxu0 0.0
        %751 = vmatpush1.msra.mxu0 0.0
        %752 = vmatprep.subr.mxu0 0.0
        %753 = vmatpush1.msra.mxu0 0.0
        %754 = vmatprep.subr.mxu0 0.0
        %755 = vmatpush1.msra.mxu0 0.0
        %756 = vmatprep.subr.mxu0 0.0
        %757 = vmatpush1.msra.mxu0 0.0
        %758 = vmatprep.subr.mxu0 0.0
        %759 = vmatpush1.msra.mxu0 0.0
        %760 = vmatprep.subr.mxu0 0.0
        %761 = vmatpush1.msra.mxu0 0.0
        %762 = vmatprep.mubr.f32.mxu0 0.0
        %763 = vmatmul.mubr.f32.gmra.mrb[0].mxu0 %v696
        %v764 = vpop.f32.mrb[0].mxu0
        %v765 = vadd.f32 0.0, %v764
        %v766 = vpop.f32.mrb[0].mxu0
        %v767 = vadd.f32 0.0, %v766
        %768 = vdwg.mxu0
        %769 = vset.pattern.permute.xlu0 2
        %770 = vperm.xlu0 %769, %v522
        %v771 = vpop.permute.xlu0 %770
        %v773 = vmul.f32 %v765, %v771
        %v774 = vmul.f32 %v767, %v771
        %775 = vset.pattern.permute.xlu0 2
        %776 = vperm.xlu0 %775, %v523
        %v777 = vpop.permute.xlu0 %776
        %v779 = vadd.f32 %v773, %v777
        %v780 = vadd.f32 %v774, %v777
        %v781 = vmax.f32 %v779, 0.0
        %v782 = vmax.f32 %v780, 0.0
        %v783 = vld [vmem:[%s1 + $0x18] sm:$0xff]
        %v785 = vsel %vm447, %v783, 0
        %787 = vmatprep.subr.mxu0 %v638
        %788 = vmatpush1.msra.mxu0 %v637
        %789 = vmatprep.subr.mxu0 %v646
        %790 = vmatpush1.msra.mxu0 %v645
        %791 = vmatprep.subr.mxu0 %v654
        %792 = vmatpush1.msra.mxu0 %v653
        %793 = vmatprep.subr.mxu0 %v662
        %794 = vmatpush1.msra.mxu0 %v661
        %795 = vmatprep.subr.mxu0 %v539
        %796 = vmatpush1.msra.mxu0 %v538
        %797 = vmatprep.subr.mxu0 %v670
        %798 = vmatpush1.msra.mxu0 %v669
        %799 = vmatprep.subr.mxu0 %v678
        %800 = vmatpush1.msra.mxu0 %v677
        %801 = vmatprep.subr.mxu0 %v686
        %802 = vmatpush1.msra.mxu0 %v685
        %803 = vmatprep.subr.mxu0 %v694
        %804 = vmatpush1.msra.mxu0 %v693
        %805 = vmatprep.subr.mxu0 0.0
        %806 = vmatpush1.msra.mxu0 0.0
        %807 = vmatprep.subr.mxu0 0.0
        %808 = vmatpush1.msra.mxu0 0.0
        %809 = vmatprep.subr.mxu0 0.0
        %810 = vmatpush1.msra.mxu0 0.0
        %811 = vmatprep.subr.mxu0 0.0
        %812 = vmatpush1.msra.mxu0 0.0
        %813 = vmatprep.subr.mxu0 0.0
        %814 = vmatpush1.msra.mxu0 0.0
        %815 = vmatprep.subr.mxu0 0.0
        %816 = vmatpush1.msra.mxu0 0.0
        %817 = vmatprep.subr.mxu0 0.0
        %818 = vmatpush1.msra.mxu0 0.0
        %819 = vmatprep.subr.mxu0 0.0
        %820 = vmatpush1.msra.mxu0 0.0
        %821 = vmatprep.subr.mxu0 0.0
        %822 = vmatpush1.msra.mxu0 0.0
        %823 = vmatprep.subr.mxu0 0.0
        %824 = vmatpush1.msra.mxu0 0.0
        %825 = vmatprep.subr.mxu0 0.0
        %826 = vmatpush1.msra.mxu0 0.0
        %827 = vmatprep.subr.mxu0 0.0
        %828 = vmatpush1.msra.mxu0 0.0
        %829 = vmatprep.subr.mxu0 0.0
        %830 = vmatpush1.msra.mxu0 0.0
        %831 = vmatprep.subr.mxu0 0.0
        %832 = vmatpush1.msra.mxu0 0.0
        %833 = vmatprep.subr.mxu0 0.0
        %834 = vmatpush1.msra.mxu0 0.0
        %835 = vmatprep.subr.mxu0 0.0
        %836 = vmatpush1.msra.mxu0 0.0
        %837 = vmatprep.subr.mxu0 0.0
        %838 = vmatpush1.msra.mxu0 0.0
        %839 = vmatprep.subr.mxu0 0.0
        %840 = vmatpush1.msra.mxu0 0.0
        %841 = vmatprep.subr.mxu0 0.0
        %842 = vmatpush1.msra.mxu0 0.0
        %843 = vmatprep.subr.mxu0 0.0
        %844 = vmatpush1.msra.mxu0 0.0
        %845 = vmatprep.subr.mxu0 0.0
        %846 = vmatpush1.msra.mxu0 0.0
        %847 = vmatprep.subr.mxu0 0.0
        %848 = vmatpush1.msra.mxu0 0.0
        %849 = vmatprep.subr.mxu0 0.0
        %850 = vmatpush1.msra.mxu0 0.0
        %851 = vmatprep.mubr.f32.mxu0 0.0
        %852 = vmatmul.mubr.f32.gmra.mrb[0].mxu0 %v785
        %v853 = vpop.f32.mrb[0].mxu0
        %v854 = vadd.f32 0.0, %v853
        %v855 = vpop.f32.mrb[0].mxu0
        %v856 = vadd.f32 0.0, %v855
        %857 = vdwg.mxu0
        %858 = vset.pattern.permute.xlu0 3
        %859 = vperm.xlu0 %858, %v522
        %v860 = vpop.permute.xlu0 %859
        %v862 = vmul.f32 %v854, %v860
        %v863 = vmul.f32 %v856, %v860
        %864 = vset.pattern.permute.xlu0 3
        %865 = vperm.xlu0 %864, %v523
        %v866 = vpop.permute.xlu0 %865
        %v868 = vadd.f32 %v862, %v866
        %v869 = vadd.f32 %v863, %v866
        %v870 = vmax.f32 %v868, 0.0
        %v871 = vmax.f32 %v869, 0.0
        %v872 = vld [vmem:[%s1 + $0x20] sm:$0xff]
        %873 = vrot.lane.b32.xlu0 %v870, 17
        %v874 = vpop.permute.xlu0 %873
        %875 = vrot.lane.b32.xlu0 %v871, 17
        %v876 = vpop.permute.xlu0 %875
        %v877 = vsel %vm291, %v874, %v876
        %v878 = vsel %vm291, %v876, %v874
        %v879 = vmul.f32 %v878, %v298
        %v880 = vmul.f32 %v877, %v302
        %881 = vrot.lane.b32.xlu0 %v870, 16
        %v882 = vpop.permute.xlu0 %881
        %883 = vrot.lane.b32.xlu0 %v871, 16
        %v884 = vpop.permute.xlu0 %883
        %v885 = vsel %vm311, %v882, %v884
        %v886 = vsel %vm311, %v884, %v882
        %v887 = vmul.f32 %v886, %v318
        %v888 = vmul.f32 %v885, %v322
        %889 = vrot.lane.b32.xlu0 %v870, 15
        %v890 = vpop.permute.xlu0 %889
        %891 = vrot.lane.b32.xlu0 %v871, 15
        %v892 = vpop.permute.xlu0 %891
        %v893 = vsel %vm331, %v890, %v892
        %v894 = vsel %vm331, %v892, %v890
        %v895 = vmul.f32 %v894, %v338
        %v896 = vmul.f32 %v893, %v342
        %897 = vrot.lane.b32.xlu0 %v870, 1
        %v898 = vpop.permute.xlu0 %897
        %899 = vrot.lane.b32.xlu0 %v871, 1
        %v900 = vpop.permute.xlu0 %899
        %v901 = vsel %vm351, %v898, %v900
        %v902 = vsel %vm351, %v900, %v898
        %v903 = vmul.f32 %v902, %v358
        %v904 = vmul.f32 %v901, %v362
        %905 = vrot.lane.b32.xlu0 %v870, 127
        %v906 = vpop.permute.xlu0 %905
        %907 = vrot.lane.b32.xlu0 %v871, 127
        %v908 = vpop.permute.xlu0 %907
        %v909 = vsel %vm371, %v906, %v908
        %v910 = vsel %vm371, %v908, %v906
        %v911 = vmul.f32 %v909, %v378
        %v912 = vmul.f32 %v910, %v382
        %913 = vrot.lane.b32.xlu0 %v870, 113
        %v914 = vpop.permute.xlu0 %913
        %915 = vrot.lane.b32.xlu0 %v871, 113
        %v916 = vpop.permute.xlu0 %915
        %v917 = vsel %vm391, %v914, %v916
        %v918 = vsel %vm391, %v916, %v914
        %v919 = vmul.f32 %v917, %v398
        %v920 = vmul.f32 %v918, %v402
        %921 = vrot.lane.b32.xlu0 %v870, 112
        %v922 = vpop.permute.xlu0 %921
        %923 = vrot.lane.b32.xlu0 %v871, 112
        %v924 = vpop.permute.xlu0 %923
        %v925 = vsel %vm411, %v922, %v924
        %v926 = vsel %vm411, %v924, %v922
        %v927 = vmul.f32 %v925, %v418
        %v928 = vmul.f32 %v926, %v422
        %929 = vrot.lane.b32.xlu0 %v870, 111
        %v930 = vpop.permute.xlu0 %929
        %931 = vrot.lane.b32.xlu0 %v871, 111
        %v932 = vpop.permute.xlu0 %931
        %v933 = vsel %vm431, %v930, %v932
        %v934 = vsel %vm431, %v932, %v930
        %v935 = vmul.f32 %v933, %v438
        %v936 = vmul.f32 %v934, %v442
        %v938 = vsel %vm447, %v872, 0
        %940 = vmatprep.subr.mxu0 %v880
        %941 = vmatpush1.msra.mxu0 %v879
        %942 = vmatprep.subr.mxu0 %v888
        %943 = vmatpush1.msra.mxu0 %v887
        %944 = vmatprep.subr.mxu0 %v896
        %945 = vmatpush1.msra.mxu0 %v895
        %946 = vmatprep.subr.mxu0 %v904
        %947 = vmatpush1.msra.mxu0 %v903
        %948 = vmatprep.subr.mxu0 %v871
        %949 = vmatpush1.msra.mxu0 %v870
        %950 = vmatprep.subr.mxu0 %v912
        %951 = vmatpush1.msra.mxu0 %v911
        %952 = vmatprep.subr.mxu0 %v920
        %953 = vmatpush1.msra.mxu0 %v919
        %954 = vmatprep.subr.mxu0 %v928
        %955 = vmatpush1.msra.mxu0 %v927
        %956 = vmatprep.subr.mxu0 %v936
        %957 = vmatpush1.msra.mxu0 %v935
        %958 = vmatprep.subr.mxu0 0.0
        %959 = vmatpush1.msra.mxu0 0.0
        %960 = vmatprep.subr.mxu0 0.0
        %961 = vmatpush1.msra.mxu0 0.0
        %962 = vmatprep.subr.mxu0 0.0
        %963 = vmatpush1.msra.mxu0 0.0
        %964 = vmatprep.subr.mxu0 0.0
        %965 = vmatpush1.msra.mxu0 0.0
        %966 = vmatprep.subr.mxu0 0.0
        %967 = vmatpush1.msra.mxu0 0.0
        %968 = vmatprep.subr.mxu0 0.0
        %969 = vmatpush1.msra.mxu0 0.0
        %970 = vmatprep.subr.mxu0 0.0
        %971 = vmatpush1.msra.mxu0 0.0
        %972 = vmatprep.subr.mxu0 0.0
        %973 = vmatpush1.msra.mxu0 0.0
        %974 = vmatprep.subr.mxu0 0.0
        %975 = vmatpush1.msra.mxu0 0.0
        %976 = vmatprep.subr.mxu0 0.0
        %977 = vmatpush1.msra.mxu0 0.0
        %978 = vmatprep.subr.mxu0 0.0
        %979 = vmatpush1.msra.mxu0 0.0
        %980 = vmatprep.subr.mxu0 0.0
        %981 = vmatpush1.msra.mxu0 0.0
        %982 = vmatprep.subr.mxu0 0.0
        %983 = vmatpush1.msra.mxu0 0.0
        %984 = vmatprep.subr.mxu0 0.0
        %985 = vmatpush1.msra.mxu0 0.0
        %986 = vmatprep.subr.mxu0 0.0
        %987 = vmatpush1.msra.mxu0 0.0
        %988 = vmatprep.subr.mxu0 0.0
        %989 = vmatpush1.msra.mxu0 0.0
        %990 = vmatprep.subr.mxu0 0.0
        %991 = vmatpush1.msra.mxu0 0.0
        %992 = vmatprep.subr.mxu0 0.0
        %993 = vmatpush1.msra.mxu0 0.0
        %994 = vmatprep.subr.mxu0 0.0
        %995 = vmatpush1.msra.mxu0 0.0
        %996 = vmatprep.subr.mxu0 0.0
        %997 = vmatpush1.msra.mxu0 0.0
        %998 = vmatprep.subr.mxu0 0.0
        %999 = vmatpush1.msra.mxu0 0.0
        %1000 = vmatprep.subr.mxu0 0.0
        %1001 = vmatpush1.msra.mxu0 0.0
        %1002 = vmatprep.subr.mxu0 0.0
        %1003 = vmatpush1.msra.mxu0 0.0
        %1004 = vmatprep.mubr.f32.mxu0 0.0
        %1005 = vmatmul.mubr.f32.gmra.mrb[0].mxu0 %v938
        %v1006 = vpop.f32.mrb[0].mxu0
        %v1007 = vadd.f32 0.0, %v1006
        %v1008 = vpop.f32.mrb[0].mxu0
        %v1009 = vadd.f32 0.0, %v1008
        %1010 = vdwg.mxu0
        %1011 = vset.pattern.permute.xlu0 4
        %1012 = vperm.xlu0 %1011, %v522
        %v1013 = vpop.permute.xlu0 %1012
        %v1015 = vmul.f32 %v1007, %v1013
        %v1016 = vmul.f32 %v1009, %v1013
        %1017 = vset.pattern.permute.xlu0 4
        %1018 = vperm.xlu0 %1017, %v523
        %v1019 = vpop.permute.xlu0 %1018
        %v1021 = vadd.f32 %v1015, %v1019
        %v1022 = vadd.f32 %v1016, %v1019
        %v1023 = vmax.f32 %v1021, 0.0
        %v1024 = vmax.f32 %v1022, 0.0
        %v1025 = vld [vmem:[%s1 + $0x28] sm:$0xff]
        %vm1026 = vcmask 195584
        %v1028 = vsel %vm1026, %v1025, 0
        %1030 = vmatprep.subr.mxu0 %v629
        %1031 = vmatpush1.msra.mxu0 %v628
        %1032 = vmatprep.subr.mxu0 %v782
        %1033 = vmatpush1.msra.mxu0 %v781
        %1034 = vmatprep.subr.mxu0 %v1024
        %1035 = vmatpush1.msra.mxu0 %v1023
        %1036 = vmatprep.subr.mxu0 0.0
        %1037 = vmatpush1.msra.mxu0 0.0
        %1038 = vmatprep.subr.mxu0 0.0
        %1039 = vmatpush1.msra.mxu0 0.0
        %1040 = vmatprep.subr.mxu0 0.0
        %1041 = vmatpush1.msra.mxu0 0.0
        %1042 = vmatprep.subr.mxu0 0.0
        %1043 = vmatpush1.msra.mxu0 0.0
        %1044 = vmatprep.subr.mxu0 0.0
        %1045 = vmatpush1.msra.mxu0 0.0
        %1046 = vmatprep.subr.mxu0 0.0
        %1047 = vmatpush1.msra.mxu0 0.0
        %1048 = vmatprep.subr.mxu0 0.0
        %1049 = vmatpush1.msra.mxu0 0.0
        %1050 = vmatprep.subr.mxu0 0.0
        %1051 = vmatpush1.msra.mxu0 0.0
        %1052 = vmatprep.subr.mxu0 0.0
        %1053 = vmatpush1.msra.mxu0 0.0
        %1054 = vmatprep.subr.mxu0 0.0
        %1055 = vmatpush1.msra.mxu0 0.0
        %1056 = vmatprep.subr.mxu0 0.0
        %1057 = vmatpush1.msra.mxu0 0.0
        %1058 = vmatprep.subr.mxu0 0.0
        %1059 = vmatpush1.msra.mxu0 0.0
        %1060 = vmatprep.subr.mxu0 0.0
        %1061 = vmatpush1.msra.mxu0 0.0
        %1062 = vmatprep.subr.mxu0 0.0
        %1063 = vmatpush1.msra.mxu0 0.0
        %1064 = vmatprep.subr.mxu0 0.0
        %1065 = vmatpush1.msra.mxu0 0.0
        %1066 = vmatprep.subr.mxu0 0.0
        %1067 = vmatpush1.msra.mxu0 0.0
        %1068 = vmatprep.subr.mxu0 0.0
        %1069 = vmatpush1.msra.mxu0 0.0
        %1070 = vmatprep.subr.mxu0 0.0
        %1071 = vmatpush1.msra.mxu0 0.0
        %1072 = vmatprep.subr.mxu0 0.0
        %1073 = vmatpush1.msra.mxu0 0.0
        %1074 = vmatprep.subr.mxu0 0.0
        %1075 = vmatpush1.msra.mxu0 0.0
        %1076 = vmatprep.subr.mxu0 0.0
        %1077 = vmatpush1.msra.mxu0 0.0
        %1078 = vmatprep.subr.mxu0 0.0
        %1079 = vmatpush1.msra.mxu0 0.0
        %1080 = vmatprep.subr.mxu0 0.0
        %1081 = vmatpush1.msra.mxu0 0.0
        %1082 = vmatprep.subr.mxu0 0.0
        %1083 = vmatpush1.msra.mxu0 0.0
        %1084 = vmatprep.subr.mxu0 0.0
        %1085 = vmatpush1.msra.mxu0 0.0
        %1086 = vmatprep.subr.mxu0 0.0
        %1087 = vmatpush1.msra.mxu0 0.0
        %1088 = vmatprep.subr.mxu0 0.0
        %1089 = vmatpush1.msra.mxu0 0.0
        %1090 = vmatprep.subr.mxu0 0.0
        %1091 = vmatpush1.msra.mxu0 0.0
        %1092 = vmatprep.subr.mxu0 0.0
        %1093 = vmatpush1.msra.mxu0 0.0
        %1094 = vmatprep.mubr.f32.mxu0 0.0
        %1095 = vmatmul.mubr.f32.gmra.mrb[0].mxu0 %v1028
        %v1096 = vpop.f32.mrb[0].mxu0
        %v1097 = vadd.f32 0.0, %v1096
        %v1098 = vpop.f32.mrb[0].mxu0
        %v1099 = vadd.f32 0.0, %v1098
        %1100 = vdwg.mxu0
        %1101 = vset.pattern.permute.xlu0 5
        %1102 = vperm.xlu0 %1101, %v522
        %v1103 = vpop.permute.xlu0 %1102
        %v1105 = vmul.f32 %v1097, %v1103
        %v1106 = vmul.f32 %v1099, %v1103
        %1107 = vset.pattern.permute.xlu0 5
        %1108 = vperm.xlu0 %1107, %v523
        %v1109 = vpop.permute.xlu0 %1108
        %v1111 = vadd.f32 %v1105, %v1109
        %v1112 = vadd.f32 %v1106, %v1109
        %v1113 = vmax.f32 %v1111, 0.0
        %v1114 = vmax.f32 %v1112, 0.0
        %v1115 = vadd.f32 %v1113, %v538
        %v1116 = vadd.f32 %v1114, %v539
        %v1117 = vld [vmem:[%s1 + $0x30] sm:$0xff]
        %1118 = vrot.lane.b32.xlu0 %v1115, 34
        %v1119 = vpop.permute.xlu0 %1118
        %1120 = vrot.lane.b32.xlu0 %v1116, 34
        %v1121 = vpop.permute.xlu0 %1120
        %vm1122 = vcmp.lt.s32.totalorder %v290, 34
        %v1123 = vsel %vm1122, %v1119, %v1121
        %v1124 = vsel %vm1122, %v1121, %v1119
        %v1126 = vlaneseq
        %v1127 = vshrl.u32 %v1126, 7
        %v1128 = vsub.s32 0, %v1127
        %v1129 = vrot.slane %v267, %v1128
        %v1130 = vlaneseq
        %v1131 = vshrl.u32 %v1130, 7
        %v1132 = vsub.s32 1, %v1131
        %v1133 = vrot.slane %v267, %v1132
        %v1136 = vmul.f32 %v1124, %v1129
        %v1137 = vmul.f32 %v1123, %v1133
        %1138 = vrot.lane.b32.xlu0 %v1115, 32
        %v1139 = vpop.permute.xlu0 %1138
        %1140 = vrot.lane.b32.xlu0 %v1116, 32
        %v1141 = vpop.permute.xlu0 %1140
        %vm1142 = vcmp.lt.s32.totalorder %v290, 32
        %v1143 = vsel %vm1142, %v1139, %v1141
        %v1144 = vsel %vm1142, %v1141, %v1139
        %v1146 = vlaneseq
        %v1147 = vshrl.u32 %v1146, 7
        %v1148 = vsub.s32 0, %v1147
        %v1149 = vrot.slane %v269, %v1148
        %v1150 = vlaneseq
        %v1151 = vshrl.u32 %v1150, 7
        %v1152 = vsub.s32 1, %v1151
        %v1153 = vrot.slane %v269, %v1152
        %v1156 = vmul.f32 %v1144, %v1149
        %v1157 = vmul.f32 %v1143, %v1153
        %1158 = vrot.lane.b32.xlu0 %v1115, 30
        %v1159 = vpop.permute.xlu0 %1158
        %1160 = vrot.lane.b32.xlu0 %v1116, 30
        %v1161 = vpop.permute.xlu0 %1160
        %vm1162 = vcmp.lt.s32.totalorder %v290, 30
        %v1163 = vsel %vm1162, %v1159, %v1161
        %v1164 = vsel %vm1162, %v1161, %v1159
        %v1166 = vlaneseq
        %v1167 = vshrl.u32 %v1166, 7
        %v1168 = vsub.s32 0, %v1167
        %v1169 = vrot.slane %v271, %v1168
        %v1170 = vlaneseq
        %v1171 = vshrl.u32 %v1170, 7
        %v1172 = vsub.s32 1, %v1171
        %v1173 = vrot.slane %v271, %v1172
        %v1176 = vmul.f32 %v1164, %v1169
        %v1177 = vmul.f32 %v1163, %v1173
        %1178 = vrot.lane.b32.xlu0 %v1115, 2
        %v1179 = vpop.permute.xlu0 %1178
        %1180 = vrot.lane.b32.xlu0 %v1116, 2
        %v1181 = vpop.permute.xlu0 %1180
        %vm1182 = vcmp.lt.s32.totalorder %v290, 2
        %v1183 = vsel %vm1182, %v1179, %v1181
        %v1184 = vsel %vm1182, %v1181, %v1179
        %v1186 = vlaneseq
        %v1187 = vshrl.u32 %v1186, 7
        %v1188 = vsub.s32 0, %v1187
        %v1189 = vrot.slane %v273, %v1188
        %v1190 = vlaneseq
        %v1191 = vshrl.u32 %v1190, 7
        %v1192 = vsub.s32 1, %v1191
        %v1193 = vrot.slane %v273, %v1192
        %v1196 = vmul.f32 %v1184, %v1189
        %v1197 = vmul.f32 %v1183, %v1193
        %1198 = vrot.lane.b32.xlu0 %v1115, 126
        %v1199 = vpop.permute.xlu0 %1198
        %1200 = vrot.lane.b32.xlu0 %v1116, 126
        %v1201 = vpop.permute.xlu0 %1200
        %vm1202 = vcmp.lt.s32.totalorder %v290, 126
        %v1203 = vsel %vm1202, %v1199, %v1201
        %v1204 = vsel %vm1202, %v1201, %v1199
        %v1206 = vlaneseq
        %v1207 = vshrl.u32 %v1206, 7
        %v1208 = vsub.s32 0, %v1207
        %v1209 = vrot.slane %v275, %v1208
        %v1210 = vlaneseq
        %v1211 = vshrl.u32 %v1210, 7
        %v1212 = vsub.s32 1, %v1211
        %v1213 = vrot.slane %v275, %v1212
        %v1216 = vmul.f32 %v1203, %v1209
        %v1217 = vmul.f32 %v1204, %v1213
        %1218 = vrot.lane.b32.xlu0 %v1115, 98
        %v1219 = vpop.permute.xlu0 %1218
        %1220 = vrot.lane.b32.xlu0 %v1116, 98
        %v1221 = vpop.permute.xlu0 %1220
        %vm1222 = vcmp.lt.s32.totalorder %v290, 98
        %v1223 = vsel %vm1222, %v1219, %v1221
        %v1224 = vsel %vm1222, %v1221, %v1219
        %v1226 = vlaneseq
        %v1227 = vshrl.u32 %v1226, 7
        %v1228 = vsub.s32 0, %v1227
        %v1229 = vrot.slane %v277, %v1228
        %v1230 = vlaneseq
        %v1231 = vshrl.u32 %v1230, 7
        %v1232 = vsub.s32 1, %v1231
        %v1233 = vrot.slane %v277, %v1232
        %v1236 = vmul.f32 %v1223, %v1229
        %v1237 = vmul.f32 %v1224, %v1233
        %1238 = vrot.lane.b32.xlu0 %v1115, 96
        %v1239 = vpop.permute.xlu0 %1238
        %1240 = vrot.lane.b32.xlu0 %v1116, 96
        %v1241 = vpop.permute.xlu0 %1240
        %vm1242 = vcmp.lt.s32.totalorder %v290, 96
        %v1243 = vsel %vm1242, %v1239, %v1241
        %v1244 = vsel %vm1242, %v1241, %v1239
        %v1246 = vlaneseq
        %v1247 = vshrl.u32 %v1246, 7
        %v1248 = vsub.s32 0, %v1247
        %v1249 = vrot.slane %v279, %v1248
        %v1250 = vlaneseq
        %v1251 = vshrl.u32 %v1250, 7
        %v1252 = vsub.s32 1, %v1251
        %v1253 = vrot.slane %v279, %v1252
        %v1256 = vmul.f32 %v1243, %v1249
        %v1257 = vmul.f32 %v1244, %v1253
        %1258 = vrot.lane.b32.xlu0 %v1115, 94
        %v1259 = vpop.permute.xlu0 %1258
        %1260 = vrot.lane.b32.xlu0 %v1116, 94
        %v1261 = vpop.permute.xlu0 %1260
        %vm1262 = vcmp.lt.s32.totalorder %v290, 94
        %v1263 = vsel %vm1262, %v1259, %v1261
        %v1264 = vsel %vm1262, %v1261, %v1259
        %v1266 = vlaneseq
        %v1267 = vshrl.u32 %v1266, 7
        %v1268 = vsub.s32 0, %v1267
        %v1269 = vrot.slane %v281, %v1268
        %v1270 = vlaneseq
        %v1271 = vshrl.u32 %v1270, 7
        %v1272 = vsub.s32 1, %v1271
        %v1273 = vrot.slane %v281, %v1272
        %v1276 = vmul.f32 %v1263, %v1269
        %v1277 = vmul.f32 %v1264, %v1273
        %v1279 = vsel %vm447, %v1117, 0
        %1281 = vmatprep.subr.mxu0 %v1137
        %1282 = vmatpush1.msra.mxu0 %v1136
        %1283 = vmatprep.subr.mxu0 %v1157
        %1284 = vmatpush1.msra.mxu0 %v1156
        %1285 = vmatprep.subr.mxu0 %v1177
        %1286 = vmatpush1.msra.mxu0 %v1176
        %1287 = vmatprep.subr.mxu0 %v1197
        %1288 = vmatpush1.msra.mxu0 %v1196
        %1289 = vmatprep.subr.mxu0 %v1116
        %1290 = vmatpush1.msra.mxu0 %v1115
        %1291 = vmatprep.subr.mxu0 %v1217
        %1292 = vmatpush1.msra.mxu0 %v1216
        %1293 = vmatprep.subr.mxu0 %v1237
        %1294 = vmatpush1.msra.mxu0 %v1236
        %1295 = vmatprep.subr.mxu0 %v1257
        %1296 = vmatpush1.msra.mxu0 %v1256
        %1297 = vmatprep.subr.mxu0 %v1277
        %1298 = vmatpush1.msra.mxu0 %v1276
        %1299 = vmatprep.subr.mxu0 0.0
        %1300 = vmatpush1.msra.mxu0 0.0
        %1301 = vmatprep.subr.mxu0 0.0
        %1302 = vmatpush1.msra.mxu0 0.0
        %1303 = vmatprep.subr.mxu0 0.0
        %1304 = vmatpush1.msra.mxu0 0.0
        %1305 = vmatprep.subr.mxu0 0.0
        %1306 = vmatpush1.msra.mxu0 0.0
        %1307 = vmatprep.subr.mxu0 0.0
        %1308 = vmatpush1.msra.mxu0 0.0
        %1309 = vmatprep.subr.mxu0 0.0
        %1310 = vmatpush1.msra.mxu0 0.0
        %1311 = vmatprep.subr.mxu0 0.0
        %1312 = vmatpush1.msra.mxu0 0.0
        %1313 = vmatprep.subr.mxu0 0.0
        %1314 = vmatpush1.msra.mxu0 0.0
        %1315 = vmatprep.subr.mxu0 0.0
        %1316 = vmatpush1.msra.mxu0 0.0
        %1317 = vmatprep.subr.mxu0 0.0
        %1318 = vmatpush1.msra.mxu0 0.0
        %1319 = vmatprep.subr.mxu0 0.0
        %1320 = vmatpush1.msra.mxu0 0.0
        %1321 = vmatprep.subr.mxu0 0.0
        %1322 = vmatpush1.msra.mxu0 0.0
        %1323 = vmatprep.subr.mxu0 0.0
        %1324 = vmatpush1.msra.mxu0 0.0
        %1325 = vmatprep.subr.mxu0 0.0
        %1326 = vmatpush1.msra.mxu0 0.0
        %1327 = vmatprep.subr.mxu0 0.0
        %1328 = vmatpush1.msra.mxu0 0.0
        %1329 = vmatprep.subr.mxu0 0.0
        %1330 = vmatpush1.msra.mxu0 0.0
        %1331 = vmatprep.subr.mxu0 0.0
        %1332 = vmatpush1.msra.mxu0 0.0
        %1333 = vmatprep.subr.mxu0 0.0
        %1334 = vmatpush1.msra.mxu0 0.0
        %1335 = vmatprep.subr.mxu0 0.0
        %1336 = vmatpush1.msra.mxu0 0.0
        %1337 = vmatprep.subr.mxu0 0.0
        %1338 = vmatpush1.msra.mxu0 0.0
        %1339 = vmatprep.subr.mxu0 0.0
        %1340 = vmatpush1.msra.mxu0 0.0
        %1341 = vmatprep.subr.mxu0 0.0
        %1342 = vmatpush1.msra.mxu0 0.0
        %1343 = vmatprep.subr.mxu0 0.0
        %1344 = vmatpush1.msra.mxu0 0.0
        %1345 = vmatprep.mubr.f32.mxu0 0.0
        %1346 = vmatmul.mubr.f32.gmra.mrb[0].mxu0 %v1279
        %v1347 = vpop.f32.mrb[0].mxu0
        %v1348 = vadd.f32 0.0, %v1347
        %v1349 = vpop.f32.mrb[0].mxu0
        %v1350 = vadd.f32 0.0, %v1349
        %1351 = vdwg.mxu0
        %1352 = vset.pattern.permute.xlu0 6
        %1353 = vperm.xlu0 %1352, %v522
        %v1354 = vpop.permute.xlu0 %1353
        %v1356 = vmul.f32 %v1348, %v1354
        %v1357 = vmul.f32 %v1350, %v1354
        %1358 = vset.pattern.permute.xlu0 6
        %1359 = vperm.xlu0 %1358, %v523
        %v1360 = vpop.permute.xlu0 %1359
        %v1362 = vadd.f32 %v1356, %v1360
        %v1363 = vadd.f32 %v1357, %v1360
        %v1364 = vmax.f32 %v1362, 0.0
        %v1365 = vmax.f32 %v1363, 0.0
        %v1366 = vld [vmem:[%s1 + $0x38] sm:$0xff]
        %v1368 = vsel %vm541, %v1366, 0
        %1370 = vmatprep.subr.mxu0 %v1365
        %1371 = vmatpush1.msra.mxu0 %v1364
        %1372 = vmatprep.subr.mxu0 0.0
        %1373 = vmatpush1.msra.mxu0 0.0
        %1374 = vmatprep.subr.mxu0 0.0
        %1375 = vmatpush1.msra.mxu0 0.0
        %1376 = vmatprep.subr.mxu0 0.0
        %1377 = vmatpush1.msra.mxu0 0.0
        %1378 = vmatprep.subr.mxu0 0.0
        %1379 = vmatpush1.msra.mxu0 0.0
        %1380 = vmatprep.subr.mxu0 0.0
        %1381 = vmatpush1.msra.mxu0 0.0
        %1382 = vmatprep.subr.mxu0 0.0
        %1383 = vmatpush1.msra.mxu0 0.0
        %1384 = vmatprep.subr.mxu0 0.0
        %1385 = vmatpush1.msra.mxu0 0.0
        %1386 = vmatprep.subr.mxu0 0.0
        %1387 = vmatpush1.msra.mxu0 0.0
        %1388 = vmatprep.subr.mxu0 0.0
        %1389 = vmatpush1.msra.mxu0 0.0
        %1390 = vmatprep.subr.mxu0 0.0
        %1391 = vmatpush1.msra.mxu0 0.0
        %1392 = vmatprep.subr.mxu0 0.0
        %1393 = vmatpush1.msra.mxu0 0.0
        %1394 = vmatprep.subr.mxu0 0.0
        %1395 = vmatpush1.msra.mxu0 0.0
        %1396 = vmatprep.subr.mxu0 0.0
        %1397 = vmatpush1.msra.mxu0 0.0
        %1398 = vmatprep.subr.mxu0 0.0
        %1399 = vmatpush1.msra.mxu0 0.0
        %1400 = vmatprep.subr.mxu0 0.0
        %1401 = vmatpush1.msra.mxu0 0.0
        %1402 = vmatprep.subr.mxu0 0.0
        %1403 = vmatpush1.msra.mxu0 0.0
        %1404 = vmatprep.subr.mxu0 0.0
        %1405 = vmatpush1.msra.mxu0 0.0
        %1406 = vmatprep.subr.mxu0 0.0
        %1407 = vmatpush1.msra.mxu0 0.0
        %1408 = vmatprep.subr.mxu0 0.0
        %1409 = vmatpush1.msra.mxu0 0.0
        %1410 = vmatprep.subr.mxu0 0.0
        %1411 = vmatpush1.msra.mxu0 0.0
        %1412 = vmatprep.subr.mxu0 0.0
        %1413 = vmatpush1.msra.mxu0 0.0
        %1414 = vmatprep.subr.mxu0 0.0
        %1415 = vmatpush1.msra.mxu0 0.0
        %1416 = vmatprep.subr.mxu0 0.0
        %1417 = vmatpush1.msra.mxu0 0.0
        %1418 = vmatprep.subr.mxu0 0.0
        %1419 = vmatpush1.msra.mxu0 0.0
        %1420 = vmatprep.subr.mxu0 0.0
        %1421 = vmatpush1.msra.mxu0 0.0
        %1422 = vmatprep.subr.mxu0 0.0
        %1423 = vmatpush1.msra.mxu0 0.0
        %1424 = vmatprep.subr.mxu0 0.0
        %1425 = vmatpush1.msra.mxu0 0.0
        %1426 = vmatprep.subr.mxu0 0.0
        %1427 = vmatpush1.msra.mxu0 0.0
        %1428 = vmatprep.subr.mxu0 0.0
        %1429 = vmatpush1.msra.mxu0 0.0
        %1430 = vmatprep.subr.mxu0 0.0
        %1431 = vmatpush1.msra.mxu0 0.0
        %1432 = vmatprep.subr.mxu0 0.0
        %1433 = vmatpush1.msra.mxu0 0.0
        %1434 = vmatprep.mubr.f32.mxu0 0.0
        %1435 = vmatmul.mubr.f32.gmra.mrb[0].mxu0 %v1368
        %v1436 = vpop.f32.mrb[0].mxu0
        %v1437 = vadd.f32 0.0, %v1436
        %v1438 = vpop.f32.mrb[0].mxu0
        %v1439 = vadd.f32 0.0, %v1438
        %1440 = vdwg.mxu0
        %1441 = vset.pattern.permute.xlu0 7
        %1442 = vperm.xlu0 %1441, %v522
        %v1443 = vpop.permute.xlu0 %1442
        %v1445 = vmul.f32 %v1437, %v1443
        %v1446 = vmul.f32 %v1439, %v1443
        %1447 = vset.pattern.permute.xlu0 7
        %1448 = vperm.xlu0 %1447, %v523
        %v1449 = vpop.permute.xlu0 %1448
        %v1451 = vadd.f32 %v1445, %v1449
        %v1452 = vadd.f32 %v1446, %v1449
        %v1453 = vmax.f32 %v1451, 0.0
        %v1454 = vmax.f32 %v1452, 0.0
        %v1455 = vld [vmem:[%s1 + $0x40] sm:$0xff]
        %1456 = vrot.lane.b32.xlu0 %v1364, 34
        %v1457 = vpop.permute.xlu0 %1456
        %1458 = vrot.lane.b32.xlu0 %v1365, 34
        %v1459 = vpop.permute.xlu0 %1458
        %v1460 = vsel %vm1122, %v1457, %v1459
        %v1461 = vsel %vm1122, %v1459, %v1457
        %v1462 = vmul.f32 %v1461, %v1129
        %v1463 = vmul.f32 %v1460, %v1133
        %1464 = vrot.lane.b32.xlu0 %v1364, 32
        %v1465 = vpop.permute.xlu0 %1464
        %1466 = vrot.lane.b32.xlu0 %v1365, 32
        %v1467 = vpop.permute.xlu0 %1466
        %v1468 = vsel %vm1142, %v1465, %v1467
        %v1469 = vsel %vm1142, %v1467, %v1465
        %v1470 = vmul.f32 %v1469, %v1149
        %v1471 = vmul.f32 %v1468, %v1153
        %1472 = vrot.lane.b32.xlu0 %v1364, 30
        %v1473 = vpop.permute.xlu0 %1472
        %1474 = vrot.lane.b32.xlu0 %v1365, 30
        %v1475 = vpop.permute.xlu0 %1474
        %v1476 = vsel %vm1162, %v1473, %v1475
        %v1477 = vsel %vm1162, %v1475, %v1473
        %v1478 = vmul.f32 %v1477, %v1169
        %v1479 = vmul.f32 %v1476, %v1173
        %1480 = vrot.lane.b32.xlu0 %v1364, 2
        %v1481 = vpop.permute.xlu0 %1480
        %1482 = vrot.lane.b32.xlu0 %v1365, 2
        %v1483 = vpop.permute.xlu0 %1482
        %v1484 = vsel %vm1182, %v1481, %v1483
        %v1485 = vsel %vm1182, %v1483, %v1481
        %v1486 = vmul.f32 %v1485, %v1189
        %v1487 = vmul.f32 %v1484, %v1193
        %1488 = vrot.lane.b32.xlu0 %v1364, 126
        %v1489 = vpop.permute.xlu0 %1488
        %1490 = vrot.lane.b32.xlu0 %v1365, 126
        %v1491 = vpop.permute.xlu0 %1490
        %v1492 = vsel %vm1202, %v1489, %v1491
        %v1493 = vsel %vm1202, %v1491, %v1489
        %v1494 = vmul.f32 %v1492, %v1209
        %v1495 = vmul.f32 %v1493, %v1213
        %1496 = vrot.lane.b32.xlu0 %v1364, 98
        %v1497 = vpop.permute.xlu0 %1496
        %1498 = vrot.lane.b32.xlu0 %v1365, 98
        %v1499 = vpop.permute.xlu0 %1498
        %v1500 = vsel %vm1222, %v1497, %v1499
        %v1501 = vsel %vm1222, %v1499, %v1497
        %v1502 = vmul.f32 %v1500, %v1229
        %v1503 = vmul.f32 %v1501, %v1233
        %1504 = vrot.lane.b32.xlu0 %v1364, 96
        %v1505 = vpop.permute.xlu0 %1504
        %1506 = vrot.lane.b32.xlu0 %v1365, 96
        %v1507 = vpop.permute.xlu0 %1506
        %v1508 = vsel %vm1242, %v1505, %v1507
        %v1509 = vsel %vm1242, %v1507, %v1505
        %v1510 = vmul.f32 %v1508, %v1249
        %v1511 = vmul.f32 %v1509, %v1253
        %1512 = vrot.lane.b32.xlu0 %v1364, 94
        %v1513 = vpop.permute.xlu0 %1512
        %1514 = vrot.lane.b32.xlu0 %v1365, 94
        %v1515 = vpop.permute.xlu0 %1514
        %v1516 = vsel %vm1262, %v1513, %v1515
        %v1517 = vsel %vm1262, %v1515, %v1513
        %v1518 = vmul.f32 %v1516, %v1269
        %v1519 = vmul.f32 %v1517, %v1273
        %v1521 = vsel %vm447, %v1455, 0
        %1523 = vmatprep.subr.mxu0 %v1463
        %1524 = vmatpush1.msra.mxu0 %v1462
        %1525 = vmatprep.subr.mxu0 %v1471
        %1526 = vmatpush1.msra.mxu0 %v1470
        %1527 = vmatprep.subr.mxu0 %v1479
        %1528 = vmatpush1.msra.mxu0 %v1478
        %1529 = vmatprep.subr.mxu0 %v1487
        %1530 = vmatpush1.msra.mxu0 %v1486
        %1531 = vmatprep.subr.mxu0 %v1365
        %1532 = vmatpush1.msra.mxu0 %v1364
        %1533 = vmatprep.subr.mxu0 %v1495
        %1534 = vmatpush1.msra.mxu0 %v1494
        %1535 = vmatprep.subr.mxu0 %v1503
        %1536 = vmatpush1.msra.mxu0 %v1502
        %1537 = vmatprep.subr.mxu0 %v1511
        %1538 = vmatpush1.msra.mxu0 %v1510
        %1539 = vmatprep.subr.mxu0 %v1519
        %1540 = vmatpush1.msra.mxu0 %v1518
        %1541 = vmatprep.subr.mxu0 0.0
        %1542 = vmatpush1.msra.mxu0 0.0
        %1543 = vmatprep.subr.mxu0 0.0
        %1544 = vmatpush1.msra.mxu0 0.0
        %1545 = vmatprep.subr.mxu0 0.0
        %1546 = vmatpush1.msra.mxu0 0.0
        %1547 = vmatprep.subr.mxu0 0.0
        %1548 = vmatpush1.msra.mxu0 0.0
        %1549 = vmatprep.subr.mxu0 0.0
        %1550 = vmatpush1.msra.mxu0 0.0
        %1551 = vmatprep.subr.mxu0 0.0
        %1552 = vmatpush1.msra.mxu0 0.0
        %1553 = vmatprep.subr.mxu0 0.0
        %1554 = vmatpush1.msra.mxu0 0.0
        %1555 = vmatprep.subr.mxu0 0.0
        %1556 = vmatpush1.msra.mxu0 0.0
        %1557 = vmatprep.subr.mxu0 0.0
        %1558 = vmatpush1.msra.mxu0 0.0
        %1559 = vmatprep.subr.mxu0 0.0
        %1560 = vmatpush1.msra.mxu0 0.0
        %1561 = vmatprep.subr.mxu0 0.0
        %1562 = vmatpush1.msra.mxu0 0.0
        %1563 = vmatprep.subr.mxu0 0.0
        %1564 = vmatpush1.msra.mxu0 0.0
        %1565 = vmatprep.subr.mxu0 0.0
        %1566 = vmatpush1.msra.mxu0 0.0
        %1567 = vmatprep.subr.mxu0 0.0
        %1568 = vmatpush1.msra.mxu0 0.0
        %1569 = vmatprep.subr.mxu0 0.0
        %1570 = vmatpush1.msra.mxu0 0.0
        %1571 = vmatprep.subr.mxu0 0.0
        %1572 = vmatpush1.msra.mxu0 0.0
        %1573 = vmatprep.subr.mxu0 0.0
        %1574 = vmatpush1.msra.mxu0 0.0
        %1575 = vmatprep.subr.mxu0 0.0
        %1576 = vmatpush1.msra.mxu0 0.0
        %1577 = vmatprep.subr.mxu0 0.0
        %1578 = vmatpush1.msra.mxu0 0.0
        %1579 = vmatprep.subr.mxu0 0.0
        %1580 = vmatpush1.msra.mxu0 0.0
        %1581 = vmatprep.subr.mxu0 0.0
        %1582 = vmatpush1.msra.mxu0 0.0
        %1583 = vmatprep.subr.mxu0 0.0
        %1584 = vmatpush1.msra.mxu0 0.0
        %1585 = vmatprep.subr.mxu0 0.0
        %1586 = vmatpush1.msra.mxu0 0.0
        %1587 = vmatprep.mubr.f32.mxu0 0.0
        %1588 = vmatmul.mubr.f32.gmra.mrb[0].mxu0 %v1521
        %v1589 = vpop.f32.mrb[0].mxu0
        %v1590 = vadd.f32 0.0, %v1589
        %v1591 = vpop.f32.mrb[0].mxu0
        %v1592 = vadd.f32 0.0, %v1591
        %1593 = vdwg.mxu0
        %1594 = vset.pattern.permute.xlu0 8
        %1595 = vperm.xlu0 %1594, %v522
        %v1596 = vpop.permute.xlu0 %1595
        %v1598 = vmul.f32 %v1590, %v1596
        %v1599 = vmul.f32 %v1592, %v1596
        %1600 = vset.pattern.permute.xlu0 8
        %1601 = vperm.xlu0 %1600, %v523
        %v1602 = vpop.permute.xlu0 %1601
        %v1604 = vadd.f32 %v1598, %v1602
        %v1605 = vadd.f32 %v1599, %v1602
        %v1606 = vmax.f32 %v1604, 0.0
        %v1607 = vmax.f32 %v1605, 0.0
        %v1608 = vld [vmem:[%s1 + $0x48] sm:$0xff]
        %v1610 = vsel %vm447, %v1608, 0
        %1612 = vmatprep.subr.mxu0 %v1463
        %1613 = vmatpush1.msra.mxu0 %v1462
        %1614 = vmatprep.subr.mxu0 %v1471
        %1615 = vmatpush1.msra.mxu0 %v1470
        %1616 = vmatprep.subr.mxu0 %v1479
        %1617 = vmatpush1.msra.mxu0 %v1478
        %1618 = vmatprep.subr.mxu0 %v1487
        %1619 = vmatpush1.msra.mxu0 %v1486
        %1620 = vmatprep.subr.mxu0 %v1365
        %1621 = vmatpush1.msra.mxu0 %v1364
        %1622 = vmatprep.subr.mxu0 %v1495
        %1623 = vmatpush1.msra.mxu0 %v1494
        %1624 = vmatprep.subr.mxu0 %v1503
        %1625 = vmatpush1.msra.mxu0 %v1502
        %1626 = vmatprep.subr.mxu0 %v1511
        %1627 = vmatpush1.msra.mxu0 %v1510
        %1628 = vmatprep.subr.mxu0 %v1519
        %1629 = vmatpush1.msra.mxu0 %v1518
        %1630 = vmatprep.subr.mxu0 0.0
        %1631 = vmatpush1.msra.mxu0 0.0
        %1632 = vmatprep.subr.mxu0 0.0
        %1633 = vmatpush1.msra.mxu0 0.0
        %1634 = vmatprep.subr.mxu0 0.0
        %1635 = vmatpush1.msra.mxu0 0.0
        %1636 = vmatprep.subr.mxu0 0.0
        %1637 = vmatpush1.msra.mxu0 0.0
        %1638 = vmatprep.subr.mxu0 0.0
        %1639 = vmatpush1.msra.mxu0 0.0
        %1640 = vmatprep.subr.mxu0 0.0
        %1641 = vmatpush1.msra.mxu0 0.0
        %1642 = vmatprep.subr.mxu0 0.0
        %1643 = vmatpush1.msra.mxu0 0.0
        %1644 = vmatprep.subr.mxu0 0.0
        %1645 = vmatpush1.msra.mxu0 0.0
        %1646 = vmatprep.subr.mxu0 0.0
        %1647 = vmatpush1.msra.mxu0 0.0
        %1648 = vmatprep.subr.mxu0 0.0
        %1649 = vmatpush1.msra.mxu0 0.0
        %1650 = vmatprep.subr.mxu0 0.0
        %1651 = vmatpush1.msra.mxu0 0.0
        %1652 = vmatprep.subr.mxu0 0.0
        %1653 = vmatpush1.msra.mxu0 0.0
        %1654 = vmatprep.subr.mxu0 0.0
        %1655 = vmatpush1.msra.mxu0 0.0
        %1656 = vmatprep.subr.mxu0 0.0
        %1657 = vmatpush1.msra.mxu0 0.0
        %1658 = vmatprep.subr.mxu0 0.0
        %1659 = vmatpush1.msra.mxu0 0.0
        %1660 = vmatprep.subr.mxu0 0.0
        %1661 = vmatpush1.msra.mxu0 0.0
        %1662 = vmatprep.subr.mxu0 0.0
        %1663 = vmatpush1.msra.mxu0 0.0
        %1664 = vmatprep.subr.mxu0 0.0
        %1665 = vmatpush1.msra.mxu0 0.0
        %1666 = vmatprep.subr.mxu0 0.0
        %1667 = vmatpush1.msra.mxu0 0.0
        %1668 = vmatprep.subr.mxu0 0.0
        %1669 = vmatpush1.msra.mxu0 0.0
        %1670 = vmatprep.subr.mxu0 0.0
        %1671 = vmatpush1.msra.mxu0 0.0
        %1672 = vmatprep.subr.mxu0 0.0
        %1673 = vmatpush1.msra.mxu0 0.0
        %1674 = vmatprep.subr.mxu0 0.0
        %1675 = vmatpush1.msra.mxu0 0.0
        %1676 = vmatprep.mubr.f32.mxu0 0.0
        %1677 = vmatmul.mubr.f32.gmra.mrb[0].mxu0 %v1610
        %v1678 = vpop.f32.mrb[0].mxu0
        %v1679 = vadd.f32 0.0, %v1678
        %v1680 = vpop.f32.mrb[0].mxu0
        %v1681 = vadd.f32 0.0, %v1680
        %1682 = vdwg.mxu0
        %1683 = vset.pattern.permute.xlu0 9
        %1684 = vperm.xlu0 %1683, %v522
        %v1685 = vpop.permute.xlu0 %1684
        %v1687 = vmul.f32 %v1679, %v1685
        %v1688 = vmul.f32 %v1681, %v1685
        %1689 = vset.pattern.permute.xlu0 9
        %1690 = vperm.xlu0 %1689, %v523
        %v1691 = vpop.permute.xlu0 %1690
        %v1693 = vadd.f32 %v1687, %v1691
        %v1694 = vadd.f32 %v1688, %v1691
        %v1695 = vmax.f32 %v1693, 0.0
        %v1696 = vmax.f32 %v1694, 0.0
        %v1697 = vld [vmem:[%s1 + $0x50] sm:$0xff]
        %1698 = vrot.lane.b32.xlu0 %v1695, 34
        %v1699 = vpop.permute.xlu0 %1698
        %1700 = vrot.lane.b32.xlu0 %v1696, 34
        %v1701 = vpop.permute.xlu0 %1700
        %v1702 = vsel %vm1122, %v1699, %v1701
        %v1703 = vsel %vm1122, %v1701, %v1699
        %v1704 = vmul.f32 %v1703, %v1129
        %v1705 = vmul.f32 %v1702, %v1133
        %1706 = vrot.lane.b32.xlu0 %v1695, 32
        %v1707 = vpop.permute.xlu0 %1706
        %1708 = vrot.lane.b32.xlu0 %v1696, 32
        %v1709 = vpop.permute.xlu0 %1708
        %v1710 = vsel %vm1142, %v1707, %v1709
        %v1711 = vsel %vm1142, %v1709, %v1707
        %v1712 = vmul.f32 %v1711, %v1149
        %v1713 = vmul.f32 %v1710, %v1153
        %1714 = vrot.lane.b32.xlu0 %v1695, 30
        %v1715 = vpop.permute.xlu0 %1714
        %1716 = vrot.lane.b32.xlu0 %v1696, 30
        %v1717 = vpop.permute.xlu0 %1716
        %v1718 = vsel %vm1162, %v1715, %v1717
        %v1719 = vsel %vm1162, %v1717, %v1715
        %v1720 = vmul.f32 %v1719, %v1169
        %v1721 = vmul.f32 %v1718, %v1173
        %1722 = vrot.lane.b32.xlu0 %v1695, 2
        %v1723 = vpop.permute.xlu0 %1722
        %1724 = vrot.lane.b32.xlu0 %v1696, 2
        %v1725 = vpop.permute.xlu0 %1724
        %v1726 = vsel %vm1182, %v1723, %v1725
        %v1727 = vsel %vm1182, %v1725, %v1723
        %v1728 = vmul.f32 %v1727, %v1189
        %v1729 = vmul.f32 %v1726, %v1193
        %1730 = vrot.lane.b32.xlu0 %v1695, 126
        %v1731 = vpop.permute.xlu0 %1730
        %1732 = vrot.lane.b32.xlu0 %v1696, 126
        %v1733 = vpop.permute.xlu0 %1732
        %v1734 = vsel %vm1202, %v1731, %v1733
        %v1735 = vsel %vm1202, %v1733, %v1731
        %v1736 = vmul.f32 %v1734, %v1209
        %v1737 = vmul.f32 %v1735, %v1213
        %1738 = vrot.lane.b32.xlu0 %v1695, 98
        %v1739 = vpop.permute.xlu0 %1738
        %1740 = vrot.lane.b32.xlu0 %v1696, 98
        %v1741 = vpop.permute.xlu0 %1740
        %v1742 = vsel %vm1222, %v1739, %v1741
        %v1743 = vsel %vm1222, %v1741, %v1739
        %v1744 = vmul.f32 %v1742, %v1229
        %v1745 = vmul.f32 %v1743, %v1233
        %1746 = vrot.lane.b32.xlu0 %v1695, 96
        %v1747 = vpop.permute.xlu0 %1746
        %1748 = vrot.lane.b32.xlu0 %v1696, 96
        %v1749 = vpop.permute.xlu0 %1748
        %v1750 = vsel %vm1242, %v1747, %v1749
        %v1751 = vsel %vm1242, %v1749, %v1747
        %v1752 = vmul.f32 %v1750, %v1249
        %v1753 = vmul.f32 %v1751, %v1253
        %1754 = vrot.lane.b32.xlu0 %v1695, 94
        %v1755 = vpop.permute.xlu0 %1754
        %1756 = vrot.lane.b32.xlu0 %v1696, 94
        %v1757 = vpop.permute.xlu0 %1756
        %v1758 = vsel %vm1262, %v1755, %v1757
        %v1759 = vsel %vm1262, %v1757, %v1755
        %v1760 = vmul.f32 %v1758, %v1269
        %v1761 = vmul.f32 %v1759, %v1273
        %v1763 = vsel %vm447, %v1697, 0
        %1765 = vmatprep.subr.mxu0 %v1705
        %1766 = vmatpush1.msra.mxu0 %v1704
        %1767 = vmatprep.subr.mxu0 %v1713
        %1768 = vmatpush1.msra.mxu0 %v1712
        %1769 = vmatprep.subr.mxu0 %v1721
        %1770 = vmatpush1.msra.mxu0 %v1720
        %1771 = vmatprep.subr.mxu0 %v1729
        %1772 = vmatpush1.msra.mxu0 %v1728
        %1773 = vmatprep.subr.mxu0 %v1696
        %1774 = vmatpush1.msra.mxu0 %v1695
        %1775 = vmatprep.subr.mxu0 %v1737
        %1776 = vmatpush1.msra.mxu0 %v1736
        %1777 = vmatprep.subr.mxu0 %v1745
        %1778 = vmatpush1.msra.mxu0 %v1744
        %1779 = vmatprep.subr.mxu0 %v1753
        %1780 = vmatpush1.msra.mxu0 %v1752
        %1781 = vmatprep.subr.mxu0 %v1761
        %1782 = vmatpush1.msra.mxu0 %v1760
        %1783 = vmatprep.subr.mxu0 0.0
        %1784 = vmatpush1.msra.mxu0 0.0
        %1785 = vmatprep.subr.mxu0 0.0
        %1786 = vmatpush1.msra.mxu0 0.0
        %1787 = vmatprep.subr.mxu0 0.0
        %1788 = vmatpush1.msra.mxu0 0.0
        %1789 = vmatprep.subr.mxu0 0.0
        %1790 = vmatpush1.msra.mxu0 0.0
        %1791 = vmatprep.subr.mxu0 0.0
        %1792 = vmatpush1.msra.mxu0 0.0
        %1793 = vmatprep.subr.mxu0 0.0
        %1794 = vmatpush1.msra.mxu0 0.0
        %1795 = vmatprep.subr.mxu0 0.0
        %1796 = vmatpush1.msra.mxu0 0.0
        %1797 = vmatprep.subr.mxu0 0.0
        %1798 = vmatpush1.msra.mxu0 0.0
        %1799 = vmatprep.subr.mxu0 0.0
        %1800 = vmatpush1.msra.mxu0 0.0
        %1801 = vmatprep.subr.mxu0 0.0
        %1802 = vmatpush1.msra.mxu0 0.0
        %1803 = vmatprep.subr.mxu0 0.0
        %1804 = vmatpush1.msra.mxu0 0.0
        %1805 = vmatprep.subr.mxu0 0.0
        %1806 = vmatpush1.msra.mxu0 0.0
        %1807 = vmatprep.subr.mxu0 0.0
        %1808 = vmatpush1.msra.mxu0 0.0
        %1809 = vmatprep.subr.mxu0 0.0
        %1810 = vmatpush1.msra.mxu0 0.0
        %1811 = vmatprep.subr.mxu0 0.0
        %1812 = vmatpush1.msra.mxu0 0.0
        %1813 = vmatprep.subr.mxu0 0.0
        %1814 = vmatpush1.msra.mxu0 0.0
        %1815 = vmatprep.subr.mxu0 0.0
        %1816 = vmatpush1.msra.mxu0 0.0
        %1817 = vmatprep.subr.mxu0 0.0
        %1818 = vmatpush1.msra.mxu0 0.0
        %1819 = vmatprep.subr.mxu0 0.0
        %1820 = vmatpush1.msra.mxu0 0.0
        %1821 = vmatprep.subr.mxu0 0.0
        %1822 = vmatpush1.msra.mxu0 0.0
        %1823 = vmatprep.subr.mxu0 0.0
        %1824 = vmatpush1.msra.mxu0 0.0
        %1825 = vmatprep.subr.mxu0 0.0
        %1826 = vmatpush1.msra.mxu0 0.0
        %1827 = vmatprep.subr.mxu0 0.0
        %1828 = vmatpush1.msra.mxu0 0.0
        %1829 = vmatprep.mubr.f32.mxu0 0.0
        %1830 = vmatmul.mubr.f32.gmra.mrb[0].mxu0 %v1763
        %v1831 = vpop.f32.mrb[0].mxu0
        %v1832 = vadd.f32 0.0, %v1831
        %v1833 = vpop.f32.mrb[0].mxu0
        %v1834 = vadd.f32 0.0, %v1833
        %1835 = vdwg.mxu0
        %1836 = vset.pattern.permute.xlu0 10
        %1837 = vperm.xlu0 %1836, %v522
        %v1838 = vpop.permute.xlu0 %1837
        %v1840 = vmul.f32 %v1832, %v1838
        %v1841 = vmul.f32 %v1834, %v1838
        %1842 = vset.pattern.permute.xlu0 10
        %1843 = vperm.xlu0 %1842, %v523
        %v1844 = vpop.permute.xlu0 %1843
        %v1846 = vadd.f32 %v1840, %v1844
        %v1847 = vadd.f32 %v1841, %v1844
        %v1848 = vmax.f32 %v1846, 0.0
        %v1849 = vmax.f32 %v1847, 0.0
        %v1850 = vld [vmem:[%s1 + $0x58] sm:$0xff]
        %v1852 = vsel %vm1026, %v1850, 0
        %1854 = vmatprep.subr.mxu0 %v1454
        %1855 = vmatpush1.msra.mxu0 %v1453
        %1856 = vmatprep.subr.mxu0 %v1607
        %1857 = vmatpush1.msra.mxu0 %v1606
        %1858 = vmatprep.subr.mxu0 %v1849
        %1859 = vmatpush1.msra.mxu0 %v1848
        %1860 = vmatprep.subr.mxu0 0.0
        %1861 = vmatpush1.msra.mxu0 0.0
        %1862 = vmatprep.subr.mxu0 0.0
        %1863 = vmatpush1.msra.mxu0 0.0
        %1864 = vmatprep.subr.mxu0 0.0
        %1865 = vmatpush1.msra.mxu0 0.0
        %1866 = vmatprep.subr.mxu0 0.0
        %1867 = vmatpush1.msra.mxu0 0.0
        %1868 = vmatprep.subr.mxu0 0.0
        %1869 = vmatpush1.msra.mxu0 0.0
        %1870 = vmatprep.subr.mxu0 0.0
        %1871 = vmatpush1.msra.mxu0 0.0
        %1872 = vmatprep.subr.mxu0 0.0
        %1873 = vmatpush1.msra.mxu0 0.0
        %1874 = vmatprep.subr.mxu0 0.0
        %1875 = vmatpush1.msra.mxu0 0.0
        %1876 = vmatprep.subr.mxu0 0.0
        %1877 = vmatpush1.msra.mxu0 0.0
        %1878 = vmatprep.subr.mxu0 0.0
        %1879 = vmatpush1.msra.mxu0 0.0
        %1880 = vmatprep.subr.mxu0 0.0
        %1881 = vmatpush1.msra.mxu0 0.0
        %1882 = vmatprep.subr.mxu0 0.0
        %1883 = vmatpush1.msra.mxu0 0.0
        %1884 = vmatprep.subr.mxu0 0.0
        %1885 = vmatpush1.msra.mxu0 0.0
        %1886 = vmatprep.subr.mxu0 0.0
        %1887 = vmatpush1.msra.mxu0 0.0
        %1888 = vmatprep.subr.mxu0 0.0
        %1889 = vmatpush1.msra.mxu0 0.0
        %1890 = vmatprep.subr.mxu0 0.0
        %1891 = vmatpush1.msra.mxu0 0.0
        %1892 = vmatprep.subr.mxu0 0.0
        %1893 = vmatpush1.msra.mxu0 0.0
        %1894 = vmatprep.subr.mxu0 0.0
        %1895 = vmatpush1.msra.mxu0 0.0
        %1896 = vmatprep.subr.mxu0 0.0
        %1897 = vmatpush1.msra.mxu0 0.0
        %1898 = vmatprep.subr.mxu0 0.0
        %1899 = vmatpush1.msra.mxu0 0.0
        %1900 = vmatprep.subr.mxu0 0.0
        %1901 = vmatpush1.msra.mxu0 0.0
        %1902 = vmatprep.subr.mxu0 0.0
        %1903 = vmatpush1.msra.mxu0 0.0
        %1904 = vmatprep.subr.mxu0 0.0
        %1905 = vmatpush1.msra.mxu0 0.0
        %1906 = vmatprep.subr.mxu0 0.0
        %1907 = vmatpush1.msra.mxu0 0.0
        %1908 = vmatprep.subr.mxu0 0.0
        %1909 = vmatpush1.msra.mxu0 0.0
        %1910 = vmatprep.subr.mxu0 0.0
        %1911 = vmatpush1.msra.mxu0 0.0
        %1912 = vmatprep.subr.mxu0 0.0
        %1913 = vmatpush1.msra.mxu0 0.0
        %1914 = vmatprep.subr.mxu0 0.0
        %1915 = vmatpush1.msra.mxu0 0.0
        %1916 = vmatprep.subr.mxu0 0.0
        %1917 = vmatpush1.msra.mxu0 0.0
        %1918 = vmatprep.mubr.f32.mxu0 0.0
        %1919 = vmatmul.mubr.f32.gmra.mrb[0].mxu0 %v1852
        %v1920 = vpop.f32.mrb[0].mxu0
        %v1921 = vadd.f32 0.0, %v1920
        %v1922 = vpop.f32.mrb[0].mxu0
        %v1923 = vadd.f32 0.0, %v1922
        %1924 = vdwg.mxu0
        %1925 = vset.pattern.permute.xlu0 11
        %1926 = vperm.xlu0 %1925, %v522
        %v1927 = vpop.permute.xlu0 %1926
        %v1929 = vmul.f32 %v1921, %v1927
        %v1930 = vmul.f32 %v1923, %v1927
        %1931 = vset.pattern.permute.xlu0 11
        %1932 = vperm.xlu0 %1931, %v523
        %v1933 = vpop.permute.xlu0 %1932
        %v1935 = vadd.f32 %v1929, %v1933
        %v1936 = vadd.f32 %v1930, %v1933
        %v1937 = vmax.f32 %v1935, 0.0
        %v1938 = vmax.f32 %v1936, 0.0
        %v1939 = vadd.f32 %v1937, %v1364
        %v1940 = vadd.f32 %v1938, %v1365
        %v1941 = vld [vmem:[%s1 + $0x60] sm:$0xff]
        %v1942 = vld [vmem:[%s1 + $0x68] sm:$0xff]
        %1943 = vrot.lane.b32.xlu0 %v1113, 34
        %v1944 = vpop.permute.xlu0 %1943
        %1945 = vrot.lane.b32.xlu0 %v1939, 34
        %v1946 = vpop.permute.xlu0 %1945
        %1947 = vrot.lane.b32.xlu0 %v1114, 34
        %v1948 = vpop.permute.xlu0 %1947
        %1949 = vrot.lane.b32.xlu0 %v1940, 34
        %v1950 = vpop.permute.xlu0 %1949
        %v1951 = vsel %vm1122, %v1944, %v1948
        %v1952 = vsel %vm1122, %v1946, %v1950
        %v1953 = vsel %vm1122, %v1948, %v1944
        %v1954 = vsel %vm1122, %v1950, %v1946
        %v1955 = vmul.f32 %v1953, %v1129
        %v1956 = vmul.f32 %v1951, %v1133
        %v1957 = vmul.f32 %v1954, %v1129
        %v1958 = vmul.f32 %v1952, %v1133
        %1959 = vrot.lane.b32.xlu0 %v1113, 32
        %v1960 = vpop.permute.xlu0 %1959
        %1961 = vrot.lane.b32.xlu0 %v1939, 32
        %v1962 = vpop.permute.xlu0 %1961
        %1963 = vrot.lane.b32.xlu0 %v1114, 32
        %v1964 = vpop.permute.xlu0 %1963
        %1965 = vrot.lane.b32.xlu0 %v1940, 32
        %v1966 = vpop.permute.xlu0 %1965
        %v1967 = vsel %vm1142, %v1960, %v1964
        %v1968 = vsel %vm1142, %v1962, %v1966
        %v1969 = vsel %vm1142, %v1964, %v1960
        %v1970 = vsel %vm1142, %v1966, %v1962
        %v1971 = vmul.f32 %v1969, %v1149
        %v1972 = vmul.f32 %v1967, %v1153
        %v1973 = vmul.f32 %v1970, %v1149
        %v1974 = vmul.f32 %v1968, %v1153
        %1975 = vrot.lane.b32.xlu0 %v1113, 30
        %v1976 = vpop.permute.xlu0 %1975
        %1977 = vrot.lane.b32.xlu0 %v1939, 30
        %v1978 = vpop.permute.xlu0 %1977
        %1979 = vrot.lane.b32.xlu0 %v1114, 30
        %v1980 = vpop.permute.xlu0 %1979
        %1981 = vrot.lane.b32.xlu0 %v1940, 30
        %v1982 = vpop.permute.xlu0 %1981
        %v1983 = vsel %vm1162, %v1976, %v1980
        %v1984 = vsel %vm1162, %v1978, %v1982
        %v1985 = vsel %vm1162, %v1980, %v1976
        %v1986 = vsel %vm1162, %v1982, %v1978
        %v1987 = vmul.f32 %v1985, %v1169
        %v1988 = vmul.f32 %v1983, %v1173
        %v1989 = vmul.f32 %v1986, %v1169
        %v1990 = vmul.f32 %v1984, %v1173
        %1991 = vrot.lane.b32.xlu0 %v1113, 2
        %v1992 = vpop.permute.xlu0 %1991
        %1993 = vrot.lane.b32.xlu0 %v1939, 2
        %v1994 = vpop.permute.xlu0 %1993
        %1995 = vrot.lane.b32.xlu0 %v1114, 2
        %v1996 = vpop.permute.xlu0 %1995
        %1997 = vrot.lane.b32.xlu0 %v1940, 2
        %v1998 = vpop.permute.xlu0 %1997
        %v1999 = vsel %vm1182, %v1992, %v1996
        %v2000 = vsel %vm1182, %v1994, %v1998
        %v2001 = vsel %vm1182, %v1996, %v1992
        %v2002 = vsel %vm1182, %v1998, %v1994
        %v2003 = vmul.f32 %v2001, %v1189
        %v2004 = vmul.f32 %v1999, %v1193
        %v2005 = vmul.f32 %v2002, %v1189
        %v2006 = vmul.f32 %v2000, %v1193
        %2007 = vrot.lane.b32.xlu0 %v1113, 126
        %v2008 = vpop.permute.xlu0 %2007
        %2009 = vrot.lane.b32.xlu0 %v1939, 126
        %v2010 = vpop.permute.xlu0 %2009
        %2011 = vrot.lane.b32.xlu0 %v1114, 126
        %v2012 = vpop.permute.xlu0 %2011
        %2013 = vrot.lane.b32.xlu0 %v1940, 126
        %v2014 = vpop.permute.xlu0 %2013
        %v2015 = vsel %vm1202, %v2008, %v2012
        %v2016 = vsel %vm1202, %v2010, %v2014
        %v2017 = vsel %vm1202, %v2012, %v2008
        %v2018 = vsel %vm1202, %v2014, %v2010
        %v2019 = vmul.f32 %v2015, %v1209
        %v2020 = vmul.f32 %v2017, %v1213
        %v2021 = vmul.f32 %v2016, %v1209
        %v2022 = vmul.f32 %v2018, %v1213
        %2023 = vrot.lane.b32.xlu0 %v1113, 98
        %v2024 = vpop.permute.xlu0 %2023
        %2025 = vrot.lane.b32.xlu0 %v1939, 98
        %v2026 = vpop.permute.xlu0 %2025
        %2027 = vrot.lane.b32.xlu0 %v1114, 98
        %v2028 = vpop.permute.xlu0 %2027
        %2029 = vrot.lane.b32.xlu0 %v1940, 98
        %v2030 = vpop.permute.xlu0 %2029
        %v2031 = vsel %vm1222, %v2024, %v2028
        %v2032 = vsel %vm1222, %v2026, %v2030
        %v2033 = vsel %vm1222, %v2028, %v2024
        %v2034 = vsel %vm1222, %v2030, %v2026
        %v2035 = vmul.f32 %v2031, %v1229
        %v2036 = vmul.f32 %v2033, %v1233
        %v2037 = vmul.f32 %v2032, %v1229
        %v2038 = vmul.f32 %v2034, %v1233
        %2039 = vrot.lane.b32.xlu0 %v1113, 96
        %v2040 = vpop.permute.xlu0 %2039
        %2041 = vrot.lane.b32.xlu0 %v1939, 96
        %v2042 = vpop.permute.xlu0 %2041
        %2043 = vrot.lane.b32.xlu0 %v1114, 96
        %v2044 = vpop.permute.xlu0 %2043
        %2045 = vrot.lane.b32.xlu0 %v1940, 96
        %v2046 = vpop.permute.xlu0 %2045
        %v2047 = vsel %vm1242, %v2040, %v2044
        %v2048 = vsel %vm1242, %v2042, %v2046
        %v2049 = vsel %vm1242, %v2044, %v2040
        %v2050 = vsel %vm1242, %v2046, %v2042
        %v2051 = vmul.f32 %v2047, %v1249
        %v2052 = vmul.f32 %v2049, %v1253
        %v2053 = vmul.f32 %v2048, %v1249
        %v2054 = vmul.f32 %v2050, %v1253
        %2055 = vrot.lane.b32.xlu0 %v1113, 94
        %v2056 = vpop.permute.xlu0 %2055
        %2057 = vrot.lane.b32.xlu0 %v1939, 94
        %v2058 = vpop.permute.xlu0 %2057
        %2059 = vrot.lane.b32.xlu0 %v1114, 94
        %v2060 = vpop.permute.xlu0 %2059
        %2061 = vrot.lane.b32.xlu0 %v1940, 94
        %v2062 = vpop.permute.xlu0 %2061
        %v2063 = vsel %vm1262, %v2056, %v2060
        %v2064 = vsel %vm1262, %v2058, %v2062
        %v2065 = vsel %vm1262, %v2060, %v2056
        %v2066 = vsel %vm1262, %v2062, %v2058
        %v2067 = vmul.f32 %v2063, %v1269
        %v2068 = vmul.f32 %v2065, %v1273
        %v2069 = vmul.f32 %v2064, %v1269
        %v2070 = vmul.f32 %v2066, %v1273
        %vm2071 = vcmask 130048
        %v2073 = vsel %vm2071, %v1942, 0
        %2075 = vmatprep.subr.mxu0 %v1956
        %2076 = vmatpush1.msra.mxu0 %v1955
        %2077 = vmatprep.subr.mxu0 %v1958
        %2078 = vmatpush1.msra.mxu0 %v1957
        %2079 = vmatprep.subr.mxu0 %v1972
        %2080 = vmatpush1.msra.mxu0 %v1971
        %2081 = vmatprep.subr.mxu0 %v1974
        %2082 = vmatpush1.msra.mxu0 %v1973
        %2083 = vmatprep.subr.mxu0 %v1988
        %2084 = vmatpush1.msra.mxu0 %v1987
        %2085 = vmatprep.subr.mxu0 %v1990
        %2086 = vmatpush1.msra.mxu0 %v1989
        %2087 = vmatprep.subr.mxu0 %v2004
        %2088 = vmatpush1.msra.mxu0 %v2003
        %2089 = vmatprep.subr.mxu0 %v2006
        %2090 = vmatpush1.msra.mxu0 %v2005
        %2091 = vmatprep.subr.mxu0 %v1114
        %2092 = vmatpush1.msra.mxu0 %v1113
        %2093 = vmatprep.subr.mxu0 %v1940
        %2094 = vmatpush1.msra.mxu0 %v1939
        %2095 = vmatprep.subr.mxu0 %v2020
        %2096 = vmatpush1.msra.mxu0 %v2019
        %2097 = vmatprep.subr.mxu0 %v2022
        %2098 = vmatpush1.msra.mxu0 %v2021
        %2099 = vmatprep.subr.mxu0 %v2036
        %2100 = vmatpush1.msra.mxu0 %v2035
        %2101 = vmatprep.subr.mxu0 %v2038
        %2102 = vmatpush1.msra.mxu0 %v2037
        %2103 = vmatprep.subr.mxu0 %v2052
        %2104 = vmatpush1.msra.mxu0 %v2051
        %2105 = vmatprep.subr.mxu0 %v2054
        %2106 = vmatpush1.msra.mxu0 %v2053
        %2107 = vmatprep.subr.mxu0 %v2068
        %2108 = vmatpush1.msra.mxu0 %v2067
        %2109 = vmatprep.subr.mxu0 %v2070
        %2110 = vmatpush1.msra.mxu0 %v2069
        %2111 = vmatprep.subr.mxu0 0.0
        %2112 = vmatpush1.msra.mxu0 0.0
        %2113 = vmatprep.subr.mxu0 0.0
        %2114 = vmatpush1.msra.mxu0 0.0
        %2115 = vmatprep.subr.mxu0 0.0
        %2116 = vmatpush1.msra.mxu0 0.0
        %2117 = vmatprep.subr.mxu0 0.0
        %2118 = vmatpush1.msra.mxu0 0.0
        %2119 = vmatprep.subr.mxu0 0.0
        %2120 = vmatpush1.msra.mxu0 0.0
        %2121 = vmatprep.subr.mxu0 0.0
        %2122 = vmatpush1.msra.mxu0 0.0
        %2123 = vmatprep.subr.mxu0 0.0
        %2124 = vmatpush1.msra.mxu0 0.0
        %2125 = vmatprep.subr.mxu0 0.0
        %2126 = vmatpush1.msra.mxu0 0.0
        %2127 = vmatprep.subr.mxu0 0.0
        %2128 = vmatpush1.msra.mxu0 0.0
        %2129 = vmatprep.subr.mxu0 0.0
        %2130 = vmatpush1.msra.mxu0 0.0
        %2131 = vmatprep.subr.mxu0 0.0
        %2132 = vmatpush1.msra.mxu0 0.0
        %2133 = vmatprep.subr.mxu0 0.0
        %2134 = vmatpush1.msra.mxu0 0.0
        %2135 = vmatprep.subr.mxu0 0.0
        %2136 = vmatpush1.msra.mxu0 0.0
        %2137 = vmatprep.subr.mxu0 0.0
        %2138 = vmatpush1.msra.mxu0 0.0
        %2139 = vmatprep.mubr.f32.mxu0 %v2073
        %2140 = vmatmul.mubr.f32.gmra.mrb[0].mxu0 %v1941
        %v2141 = vpop.f32.mrb[0].mxu0
        %v2142 = vadd.f32 0.0, %v2141
        %v2143 = vpop.f32.mrb[0].mxu0
        %v2144 = vadd.f32 0.0, %v2143
        %2145 = vdwg.mxu0
        %2146 = vset.pattern.permute.xlu0 12
        %2147 = vperm.xlu0 %2146, %v522
        %v2148 = vpop.permute.xlu0 %2147
        %v2150 = vmul.f32 %v2142, %v2148
        %v2151 = vmul.f32 %v2144, %v2148
        %2152 = vset.pattern.permute.xlu0 12
        %2153 = vperm.xlu0 %2152, %v523
        %v2154 = vpop.permute.xlu0 %2153
        %v2156 = vadd.f32 %v2150, %v2154
        %v2157 = vadd.f32 %v2151, %v2154
        %v2158 = vmax.f32 %v2156, 0.0
        %v2159 = vmax.f32 %v2157, 0.0
        %v2160 = vld [vmem:[%s1 + $0x70] sm:$0xff]
        %v2162 = vsel %vm541, %v2160, 0
        %2164 = vmatprep.subr.mxu0 %v2159
        %2165 = vmatpush1.msra.mxu0 %v2158
        %2166 = vmatprep.subr.mxu0 0.0
        %2167 = vmatpush1.msra.mxu0 0.0
        %2168 = vmatprep.subr.mxu0 0.0
        %2169 = vmatpush1.msra.mxu0 0.0
        %2170 = vmatprep.subr.mxu0 0.0
        %2171 = vmatpush1.msra.mxu0 0.0
        %2172 = vmatprep.subr.mxu0 0.0
        %2173 = vmatpush1.msra.mxu0 0.0
        %2174 = vmatprep.subr.mxu0 0.0
        %2175 = vmatpush1.msra.mxu0 0.0
        %2176 = vmatprep.subr.mxu0 0.0
        %2177 = vmatpush1.msra.mxu0 0.0
        %2178 = vmatprep.subr.mxu0 0.0
        %2179 = vmatpush1.msra.mxu0 0.0
        %2180 = vmatprep.subr.mxu0 0.0
        %2181 = vmatpush1.msra.mxu0 0.0
        %2182 = vmatprep.subr.mxu0 0.0
        %2183 = vmatpush1.msra.mxu0 0.0
        %2184 = vmatprep.subr.mxu0 0.0
        %2185 = vmatpush1.msra.mxu0 0.0
        %2186 = vmatprep.subr.mxu0 0.0
        %2187 = vmatpush1.msra.mxu0 0.0
        %2188 = vmatprep.subr.mxu0 0.0
        %2189 = vmatpush1.msra.mxu0 0.0
        %2190 = vmatprep.subr.mxu0 0.0
        %2191 = vmatpush1.msra.mxu0 0.0
        %2192 = vmatprep.subr.mxu0 0.0
        %2193 = vmatpush1.msra.mxu0 0.0
        %2194 = vmatprep.subr.mxu0 0.0
        %2195 = vmatpush1.msra.mxu0 0.0
        %2196 = vmatprep.subr.mxu0 0.0
        %2197 = vmatpush1.msra.mxu0 0.0
        %2198 = vmatprep.subr.mxu0 0.0
        %2199 = vmatpush1.msra.mxu0 0.0
        %2200 = vmatprep.subr.mxu0 0.0
        %2201 = vmatpush1.msra.mxu0 0.0
        %2202 = vmatprep.subr.mxu0 0.0
        %2203 = vmatpush1.msra.mxu0 0.0
        %2204 = vmatprep.subr.mxu0 0.0
        %2205 = vmatpush1.msra.mxu0 0.0
        %2206 = vmatprep.subr.mxu0 0.0
        %2207 = vmatpush1.msra.mxu0 0.0
        %2208 = vmatprep.subr.mxu0 0.0
        %2209 = vmatpush1.msra.mxu0 0.0
        %2210 = vmatprep.subr.mxu0 0.0
        %2211 = vmatpush1.msra.mxu0 0.0
        %2212 = vmatprep.subr.mxu0 0.0
        %2213 = vmatpush1.msra.mxu0 0.0
        %2214 = vmatprep.subr.mxu0 0.0
        %2215 = vmatpush1.msra.mxu0 0.0
        %2216 = vmatprep.subr.mxu0 0.0
        %2217 = vmatpush1.msra.mxu0 0.0
        %2218 = vmatprep.subr.mxu0 0.0
        %2219 = vmatpush1.msra.mxu0 0.0
        %2220 = vmatprep.subr.mxu0 0.0
        %2221 = vmatpush1.msra.mxu0 0.0
        %2222 = vmatprep.subr.mxu0 0.0
        %2223 = vmatpush1.msra.mxu0 0.0
        %2224 = vmatprep.subr.mxu0 0.0
        %2225 = vmatpush1.msra.mxu0 0.0
        %2226 = vmatprep.subr.mxu0 0.0
        %2227 = vmatpush1.msra.mxu0 0.0
        %2228 = vmatprep.mubr.f32.mxu0 0.0
        %2229 = vmatmul.mubr.f32.gmra.mrb[0].mxu0 %v2162
        %v2230 = vpop.f32.mrb[0].mxu0
        %v2231 = vadd.f32 0.0, %v2230
        %v2232 = vpop.f32.mrb[0].mxu0
        %v2233 = vadd.f32 0.0, %v2232
        %2234 = vdwg.mxu0
        %2235 = vset.pattern.permute.xlu0 13
        %2236 = vperm.xlu0 %2235, %v522
        %v2237 = vpop.permute.xlu0 %2236
        %v2239 = vmul.f32 %v2231, %v2237
        %v2240 = vmul.f32 %v2233, %v2237
        %2241 = vset.pattern.permute.xlu0 13
        %2242 = vperm.xlu0 %2241, %v523
        %v2243 = vpop.permute.xlu0 %2242
        %v2245 = vadd.f32 %v2239, %v2243
        %v2246 = vadd.f32 %v2240, %v2243
        %v2247 = vmax.f32 %v2245, 0.0
        %v2248 = vmax.f32 %v2246, 0.0
        %v2249 = vld [vmem:[%s1 + $0x78] sm:$0xff]
        %2250 = vrot.lane.b32.xlu0 %v2158, 34
        %v2251 = vpop.permute.xlu0 %2250
        %2252 = vrot.lane.b32.xlu0 %v2159, 34
        %v2253 = vpop.permute.xlu0 %2252
        %v2254 = vsel %vm1122, %v2251, %v2253
        %v2255 = vsel %vm1122, %v2253, %v2251
        %v2256 = vmul.f32 %v2255, %v1129
        %v2257 = vmul.f32 %v2254, %v1133
        %2258 = vrot.lane.b32.xlu0 %v2158, 32
        %v2259 = vpop.permute.xlu0 %2258
        %2260 = vrot.lane.b32.xlu0 %v2159, 32
        %v2261 = vpop.permute.xlu0 %2260
        %v2262 = vsel %vm1142, %v2259, %v2261
        %v2263 = vsel %vm1142, %v2261, %v2259
        %v2264 = vmul.f32 %v2263, %v1149
        %v2265 = vmul.f32 %v2262, %v1153
        %2266 = vrot.lane.b32.xlu0 %v2158, 30
        %v2267 = vpop.permute.xlu0 %2266
        %2268 = vrot.lane.b32.xlu0 %v2159, 30
        %v2269 = vpop.permute.xlu0 %2268
        %v2270 = vsel %vm1162, %v2267, %v2269
        %v2271 = vsel %vm1162, %v2269, %v2267
        %v2272 = vmul.f32 %v2271, %v1169
        %v2273 = vmul.f32 %v2270, %v1173
        %2274 = vrot.lane.b32.xlu0 %v2158, 2
        %v2275 = vpop.permute.xlu0 %2274
        %2276 = vrot.lane.b32.xlu0 %v2159, 2
        %v2277 = vpop.permute.xlu0 %2276
        %v2278 = vsel %vm1182, %v2275, %v2277
        %v2279 = vsel %vm1182, %v2277, %v2275
        %v2280 = vmul.f32 %v2279, %v1189
        %v2281 = vmul.f32 %v2278, %v1193
        %2282 = vrot.lane.b32.xlu0 %v2158, 126
        %v2283 = vpop.permute.xlu0 %2282
        %2284 = vrot.lane.b32.xlu0 %v2159, 126
        %v2285 = vpop.permute.xlu0 %2284
        %v2286 = vsel %vm1202, %v2283, %v2285
        %v2287 = vsel %vm1202, %v2285, %v2283
        %v2288 = vmul.f32 %v2286, %v1209
        %v2289 = vmul.f32 %v2287, %v1213
        %2290 = vrot.lane.b32.xlu0 %v2158, 98
        %v2291 = vpop.permute.xlu0 %2290
        %2292 = vrot.lane.b32.xlu0 %v2159, 98
        %v2293 = vpop.permute.xlu0 %2292
        %v2294 = vsel %vm1222, %v2291, %v2293
        %v2295 = vsel %vm1222, %v2293, %v2291
        %v2296 = vmul.f32 %v2294, %v1229
        %v2297 = vmul.f32 %v2295, %v1233
        %2298 = vrot.lane.b32.xlu0 %v2158, 96
        %v2299 = vpop.permute.xlu0 %2298
        %2300 = vrot.lane.b32.xlu0 %v2159, 96
        %v2301 = vpop.permute.xlu0 %2300
        %v2302 = vsel %vm1242, %v2299, %v2301
        %v2303 = vsel %vm1242, %v2301, %v2299
        %v2304 = vmul.f32 %v2302, %v1249
        %v2305 = vmul.f32 %v2303, %v1253
        %2306 = vrot.lane.b32.xlu0 %v2158, 94
        %v2307 = vpop.permute.xlu0 %2306
        %2308 = vrot.lane.b32.xlu0 %v2159, 94
        %v2309 = vpop.permute.xlu0 %2308
        %v2310 = vsel %vm1262, %v2307, %v2309
        %v2311 = vsel %vm1262, %v2309, %v2307
        %v2312 = vmul.f32 %v2310, %v1269
        %v2313 = vmul.f32 %v2311, %v1273
        %v2315 = vsel %vm447, %v2249, 0
        %2317 = vmatprep.subr.mxu0 %v2257
        %2318 = vmatpush1.msra.mxu0 %v2256
        %2319 = vmatprep.subr.mxu0 %v2265
        %2320 = vmatpush1.msra.mxu0 %v2264
        %2321 = vmatprep.subr.mxu0 %v2273
        %2322 = vmatpush1.msra.mxu0 %v2272
        %2323 = vmatprep.subr.mxu0 %v2281
        %2324 = vmatpush1.msra.mxu0 %v2280
        %2325 = vmatprep.subr.mxu0 %v2159
        %2326 = vmatpush1.msra.mxu0 %v2158
        %2327 = vmatprep.subr.mxu0 %v2289
        %2328 = vmatpush1.msra.mxu0 %v2288
        %2329 = vmatprep.subr.mxu0 %v2297
        %2330 = vmatpush1.msra.mxu0 %v2296
        %2331 = vmatprep.subr.mxu0 %v2305
        %2332 = vmatpush1.msra.mxu0 %v2304
        %2333 = vmatprep.subr.mxu0 %v2313
        %2334 = vmatpush1.msra.mxu0 %v2312
        %2335 = vmatprep.subr.mxu0 0.0
        %2336 = vmatpush1.msra.mxu0 0.0
        %2337 = vmatprep.subr.mxu0 0.0
        %2338 = vmatpush1.msra.mxu0 0.0
        %2339 = vmatprep.subr.mxu0 0.0
        %2340 = vmatpush1.msra.mxu0 0.0
        %2341 = vmatprep.subr.mxu0 0.0
        %2342 = vmatpush1.msra.mxu0 0.0
        %2343 = vmatprep.subr.mxu0 0.0
        %2344 = vmatpush1.msra.mxu0 0.0
        %2345 = vmatprep.subr.mxu0 0.0
        %2346 = vmatpush1.msra.mxu0 0.0
        %2347 = vmatprep.subr.mxu0 0.0
        %2348 = vmatpush1.msra.mxu0 0.0
        %2349 = vmatprep.subr.mxu0 0.0
        %2350 = vmatpush1.msra.mxu0 0.0
        %2351 = vmatprep.subr.mxu0 0.0
        %2352 = vmatpush1.msra.mxu0 0.0
        %2353 = vmatprep.subr.mxu0 0.0
        %2354 = vmatpush1.msra.mxu0 0.0
        %2355 = vmatprep.subr.mxu0 0.0
        %2356 = vmatpush1.msra.mxu0 0.0
        %2357 = vmatprep.subr.mxu0 0.0
        %2358 = vmatpush1.msra.mxu0 0.0
        %2359 = vmatprep.subr.mxu0 0.0
        %2360 = vmatpush1.msra.mxu0 0.0
        %2361 = vmatprep.subr.mxu0 0.0
        %2362 = vmatpush1.msra.mxu0 0.0
        %2363 = vmatprep.subr.mxu0 0.0
        %2364 = vmatpush1.msra.mxu0 0.0
        %2365 = vmatprep.subr.mxu0 0.0
        %2366 = vmatpush1.msra.mxu0 0.0
        %2367 = vmatprep.subr.mxu0 0.0
        %2368 = vmatpush1.msra.mxu0 0.0
        %2369 = vmatprep.subr.mxu0 0.0
        %2370 = vmatpush1.msra.mxu0 0.0
        %2371 = vmatprep.subr.mxu0 0.0
        %2372 = vmatpush1.msra.mxu0 0.0
        %2373 = vmatprep.subr.mxu0 0.0
        %2374 = vmatpush1.msra.mxu0 0.0
        %2375 = vmatprep.subr.mxu0 0.0
        %2376 = vmatpush1.msra.mxu0 0.0
        %2377 = vmatprep.subr.mxu0 0.0
        %2378 = vmatpush1.msra.mxu0 0.0
        %2379 = vmatprep.subr.mxu0 0.0
        %2380 = vmatpush1.msra.mxu0 0.0
        %2381 = vmatprep.mubr.f32.mxu0 0.0
        %2382 = vmatmul.mubr.f32.gmra.mrb[0].mxu0 %v2315
        %v2383 = vpop.f32.mrb[0].mxu0
        %v2384 = vadd.f32 0.0, %v2383
        %v2385 = vpop.f32.mrb[0].mxu0
        %v2386 = vadd.f32 0.0, %v2385
        %2387 = vdwg.mxu0
        %2388 = vset.pattern.permute.xlu0 14
        %2389 = vperm.xlu0 %2388, %v522
        %v2390 = vpop.permute.xlu0 %2389
        %v2392 = vmul.f32 %v2384, %v2390
        %v2393 = vmul.f32 %v2386, %v2390
        %2394 = vset.pattern.permute.xlu0 14
        %2395 = vperm.xlu0 %2394, %v523
        %v2396 = vpop.permute.xlu0 %2395
        %v2398 = vadd.f32 %v2392, %v2396
        %v2399 = vadd.f32 %v2393, %v2396
        %v2400 = vmax.f32 %v2398, 0.0
        %v2401 = vmax.f32 %v2399, 0.0
        %v2402 = vld [vmem:[%s1 + $0x80] sm:$0xff]
        %v2404 = vsel %vm447, %v2402, 0
        %2406 = vmatprep.subr.mxu0 %v2257
        %2407 = vmatpush1.msra.mxu0 %v2256
        %2408 = vmatprep.subr.mxu0 %v2265
        %2409 = vmatpush1.msra.mxu0 %v2264
        %2410 = vmatprep.subr.mxu0 %v2273
        %2411 = vmatpush1.msra.mxu0 %v2272
        %2412 = vmatprep.subr.mxu0 %v2281
        %2413 = vmatpush1.msra.mxu0 %v2280
        %2414 = vmatprep.subr.mxu0 %v2159
        %2415 = vmatpush1.msra.mxu0 %v2158
        %2416 = vmatprep.subr.mxu0 %v2289
        %2417 = vmatpush1.msra.mxu0 %v2288
        %2418 = vmatprep.subr.mxu0 %v2297
        %2419 = vmatpush1.msra.mxu0 %v2296
        %2420 = vmatprep.subr.mxu0 %v2305
        %2421 = vmatpush1.msra.mxu0 %v2304
        %2422 = vmatprep.subr.mxu0 %v2313
        %2423 = vmatpush1.msra.mxu0 %v2312
        %2424 = vmatprep.subr.mxu0 0.0
        %2425 = vmatpush1.msra.mxu0 0.0
        %2426 = vmatprep.subr.mxu0 0.0
        %2427 = vmatpush1.msra.mxu0 0.0
        %2428 = vmatprep.subr.mxu0 0.0
        %2429 = vmatpush1.msra.mxu0 0.0
        %2430 = vmatprep.subr.mxu0 0.0
        %2431 = vmatpush1.msra.mxu0 0.0
        %2432 = vmatprep.subr.mxu0 0.0
        %2433 = vmatpush1.msra.mxu0 0.0
        %2434 = vmatprep.subr.mxu0 0.0
        %2435 = vmatpush1.msra.mxu0 0.0
        %2436 = vmatprep.subr.mxu0 0.0
        %2437 = vmatpush1.msra.mxu0 0.0
        %2438 = vmatprep.subr.mxu0 0.0
        %2439 = vmatpush1.msra.mxu0 0.0
        %2440 = vmatprep.subr.mxu0 0.0
        %2441 = vmatpush1.msra.mxu0 0.0
        %2442 = vmatprep.subr.mxu0 0.0
        %2443 = vmatpush1.msra.mxu0 0.0
        %2444 = vmatprep.subr.mxu0 0.0
        %2445 = vmatpush1.msra.mxu0 0.0
        %2446 = vmatprep.subr.mxu0 0.0
        %2447 = vmatpush1.msra.mxu0 0.0
        %2448 = vmatprep.subr.mxu0 0.0
        %2449 = vmatpush1.msra.mxu0 0.0
        %2450 = vmatprep.subr.mxu0 0.0
        %2451 = vmatpush1.msra.mxu0 0.0
        %2452 = vmatprep.subr.mxu0 0.0
        %2453 = vmatpush1.msra.mxu0 0.0
        %2454 = vmatprep.subr.mxu0 0.0
        %2455 = vmatpush1.msra.mxu0 0.0
        %2456 = vmatprep.subr.mxu0 0.0
        %2457 = vmatpush1.msra.mxu0 0.0
        %2458 = vmatprep.subr.mxu0 0.0
        %2459 = vmatpush1.msra.mxu0 0.0
        %2460 = vmatprep.subr.mxu0 0.0
        %2461 = vmatpush1.msra.mxu0 0.0
        %2462 = vmatprep.subr.mxu0 0.0
        %2463 = vmatpush1.msra.mxu0 0.0
        %2464 = vmatprep.subr.mxu0 0.0
        %2465 = vmatpush1.msra.mxu0 0.0
        %2466 = vmatprep.subr.mxu0 0.0
        %2467 = vmatpush1.msra.mxu0 0.0
        %2468 = vmatprep.subr.mxu0 0.0
        %2469 = vmatpush1.msra.mxu0 0.0
        %2470 = vmatprep.mubr.f32.mxu0 0.0
        %2471 = vmatmul.mubr.f32.gmra.mrb[0].mxu0 %v2404
        %v2472 = vpop.f32.mrb[0].mxu0
        %v2473 = vadd.f32 0.0, %v2472
        %v2474 = vpop.f32.mrb[0].mxu0
        %v2475 = vadd.f32 0.0, %v2474
        %2476 = vdwg.mxu0
        %2477 = vset.pattern.permute.xlu0 15
        %2478 = vperm.xlu0 %2477, %v522
        %v2479 = vpop.permute.xlu0 %2478
        %v2481 = vmul.f32 %v2473, %v2479
        %v2482 = vmul.f32 %v2475, %v2479
        %2483 = vset.pattern.permute.xlu0 15
        %2484 = vperm.xlu0 %2483, %v523
        %v2485 = vpop.permute.xlu0 %2484
        %v2487 = vadd.f32 %v2481, %v2485
        %v2488 = vadd.f32 %v2482, %v2485
        %v2489 = vmax.f32 %v2487, 0.0
        %v2490 = vmax.f32 %v2488, 0.0
        %v2491 = vld [vmem:[%s1 + $0x88] sm:$0xff]
        %2492 = vrot.lane.b32.xlu0 %v2489, 34
        %v2493 = vpop.permute.xlu0 %2492
        %2494 = vrot.lane.b32.xlu0 %v2490, 34
        %v2495 = vpop.permute.xlu0 %2494
        %v2496 = vsel %vm1122, %v2493, %v2495
        %v2497 = vsel %vm1122, %v2495, %v2493
        %v2498 = vmul.f32 %v2497, %v1129
        %v2499 = vmul.f32 %v2496, %v1133
        %2500 = vrot.lane.b32.xlu0 %v2489, 32
        %v2501 = vpop.permute.xlu0 %2500
        %2502 = vrot.lane.b32.xlu0 %v2490, 32
        %v2503 = vpop.permute.xlu0 %2502
        %v2504 = vsel %vm1142, %v2501, %v2503
        %v2505 = vsel %vm1142, %v2503, %v2501
        %v2506 = vmul.f32 %v2505, %v1149
        %v2507 = vmul.f32 %v2504, %v1153
        %2508 = vrot.lane.b32.xlu0 %v2489, 30
        %v2509 = vpop.permute.xlu0 %2508
        %2510 = vrot.lane.b32.xlu0 %v2490, 30
        %v2511 = vpop.permute.xlu0 %2510
        %v2512 = vsel %vm1162, %v2509, %v2511
        %v2513 = vsel %vm1162, %v2511, %v2509
        %v2514 = vmul.f32 %v2513, %v1169
        %v2515 = vmul.f32 %v2512, %v1173
        %2516 = vrot.lane.b32.xlu0 %v2489, 2
        %v2517 = vpop.permute.xlu0 %2516
        %2518 = vrot.lane.b32.xlu0 %v2490, 2
        %v2519 = vpop.permute.xlu0 %2518
        %v2520 = vsel %vm1182, %v2517, %v2519
        %v2521 = vsel %vm1182, %v2519, %v2517
        %v2522 = vmul.f32 %v2521, %v1189
        %v2523 = vmul.f32 %v2520, %v1193
        %2524 = vrot.lane.b32.xlu0 %v2489, 126
        %v2525 = vpop.permute.xlu0 %2524
        %2526 = vrot.lane.b32.xlu0 %v2490, 126
        %v2527 = vpop.permute.xlu0 %2526
        %v2528 = vsel %vm1202, %v2525, %v2527
        %v2529 = vsel %vm1202, %v2527, %v2525
        %v2530 = vmul.f32 %v2528, %v1209
        %v2531 = vmul.f32 %v2529, %v1213
        %2532 = vrot.lane.b32.xlu0 %v2489, 98
        %v2533 = vpop.permute.xlu0 %2532
        %2534 = vrot.lane.b32.xlu0 %v2490, 98
        %v2535 = vpop.permute.xlu0 %2534
        %v2536 = vsel %vm1222, %v2533, %v2535
        %v2537 = vsel %vm1222, %v2535, %v2533
        %v2538 = vmul.f32 %v2536, %v1229
        %v2539 = vmul.f32 %v2537, %v1233
        %2540 = vrot.lane.b32.xlu0 %v2489, 96
        %v2541 = vpop.permute.xlu0 %2540
        %2542 = vrot.lane.b32.xlu0 %v2490, 96
        %v2543 = vpop.permute.xlu0 %2542
        %v2544 = vsel %vm1242, %v2541, %v2543
        %v2545 = vsel %vm1242, %v2543, %v2541
        %v2546 = vmul.f32 %v2544, %v1249
        %v2547 = vmul.f32 %v2545, %v1253
        %2548 = vrot.lane.b32.xlu0 %v2489, 94
        %v2549 = vpop.permute.xlu0 %2548
        %2550 = vrot.lane.b32.xlu0 %v2490, 94
        %v2551 = vpop.permute.xlu0 %2550
        %v2552 = vsel %vm1262, %v2549, %v2551
        %v2553 = vsel %vm1262, %v2551, %v2549
        %v2554 = vmul.f32 %v2552, %v1269
        %v2555 = vmul.f32 %v2553, %v1273
        %v2557 = vsel %vm447, %v2491, 0
        %2559 = vmatprep.subr.mxu0 %v2499
        %2560 = vmatpush1.msra.mxu0 %v2498
        %2561 = vmatprep.subr.mxu0 %v2507
        %2562 = vmatpush1.msra.mxu0 %v2506
        %2563 = vmatprep.subr.mxu0 %v2515
        %2564 = vmatpush1.msra.mxu0 %v2514
        %2565 = vmatprep.subr.mxu0 %v2523
        %2566 = vmatpush1.msra.mxu0 %v2522
        %2567 = vmatprep.subr.mxu0 %v2490
        %2568 = vmatpush1.msra.mxu0 %v2489
        %2569 = vmatprep.subr.mxu0 %v2531
        %2570 = vmatpush1.msra.mxu0 %v2530
        %2571 = vmatprep.subr.mxu0 %v2539
        %2572 = vmatpush1.msra.mxu0 %v2538
        %2573 = vmatprep.subr.mxu0 %v2547
        %2574 = vmatpush1.msra.mxu0 %v2546
        %2575 = vmatprep.subr.mxu0 %v2555
        %2576 = vmatpush1.msra.mxu0 %v2554
        %2577 = vmatprep.subr.mxu0 0.0
        %2578 = vmatpush1.msra.mxu0 0.0
        %2579 = vmatprep.subr.mxu0 0.0
        %2580 = vmatpush1.msra.mxu0 0.0
        %2581 = vmatprep.subr.mxu0 0.0
        %2582 = vmatpush1.msra.mxu0 0.0
        %2583 = vmatprep.subr.mxu0 0.0
        %2584 = vmatpush1.msra.mxu0 0.0
        %2585 = vmatprep.subr.mxu0 0.0
        %2586 = vmatpush1.msra.mxu0 0.0
        %2587 = vmatprep.subr.mxu0 0.0
        %2588 = vmatpush1.msra.mxu0 0.0
        %2589 = vmatprep.subr.mxu0 0.0
        %2590 = vmatpush1.msra.mxu0 0.0
        %2591 = vmatprep.subr.mxu0 0.0
        %2592 = vmatpush1.msra.mxu0 0.0
        %2593 = vmatprep.subr.mxu0 0.0
        %2594 = vmatpush1.msra.mxu0 0.0
        %2595 = vmatprep.subr.mxu0 0.0
        %2596 = vmatpush1.msra.mxu0 0.0
        %2597 = vmatprep.subr.mxu0 0.0
        %2598 = vmatpush1.msra.mxu0 0.0
        %2599 = vmatprep.subr.mxu0 0.0
        %2600 = vmatpush1.msra.mxu0 0.0
        %2601 = vmatprep.subr.mxu0 0.0
        %2602 = vmatpush1.msra.mxu0 0.0
        %2603 = vmatprep.subr.mxu0 0.0
        %2604 = vmatpush1.msra.mxu0 0.0
        %2605 = vmatprep.subr.mxu0 0.0
        %2606 = vmatpush1.msra.mxu0 0.0
        %2607 = vmatprep.subr.mxu0 0.0
        %2608 = vmatpush1.msra.mxu0 0.0
        %2609 = vmatprep.subr.mxu0 0.0
        %2610 = vmatpush1.msra.mxu0 0.0
        %2611 = vmatprep.subr.mxu0 0.0
        %2612 = vmatpush1.msra.mxu0 0.0
        %2613 = vmatprep.subr.mxu0 0.0
        %2614 = vmatpush1.msra.mxu0 0.0
        %2615 = vmatprep.subr.mxu0 0.0
        %2616 = vmatpush1.msra.mxu0 0.0
        %2617 = vmatprep.subr.mxu0 0.0
        %2618 = vmatpush1.msra.mxu0 0.0
        %2619 = vmatprep.subr.mxu0 0.0
        %2620 = vmatpush1.msra.mxu0 0.0
        %2621 = vmatprep.subr.mxu0 0.0
        %2622 = vmatpush1.msra.mxu0 0.0
        %2623 = vmatprep.mubr.f32.mxu0 0.0
        %2624 = vmatmul.mubr.f32.gmra.mrb[0].mxu0 %v2557
        %v2625 = vpop.f32.mrb[0].mxu0
        %v2626 = vadd.f32 0.0, %v2625
        %v2627 = vpop.f32.mrb[0].mxu0
        %v2628 = vadd.f32 0.0, %v2627
        %2629 = vdwg.mxu0
        %2630 = vset.pattern.permute.xlu0 16
        %2631 = vperm.xlu0 %2630, %v522
        %v2632 = vpop.permute.xlu0 %2631
        %v2634 = vmul.f32 %v2626, %v2632
        %v2635 = vmul.f32 %v2628, %v2632
        %2636 = vset.pattern.permute.xlu0 16
        %2637 = vperm.xlu0 %2636, %v523
        %v2638 = vpop.permute.xlu0 %2637
        %v2640 = vadd.f32 %v2634, %v2638
        %v2641 = vadd.f32 %v2635, %v2638
        %v2642 = vmax.f32 %v2640, 0.0
        %v2643 = vmax.f32 %v2641, 0.0
        %v2644 = vld [vmem:[%s1 + $0x90] sm:$0xff]
        %v2646 = vsel %vm1026, %v2644, 0
        %2648 = vmatprep.subr.mxu0 %v2248
        %2649 = vmatpush1.msra.mxu0 %v2247
        %2650 = vmatprep.subr.mxu0 %v2401
        %2651 = vmatpush1.msra.mxu0 %v2400
        %2652 = vmatprep.subr.mxu0 %v2643
        %2653 = vmatpush1.msra.mxu0 %v2642
        %2654 = vmatprep.subr.mxu0 0.0
        %2655 = vmatpush1.msra.mxu0 0.0
        %2656 = vmatprep.subr.mxu0 0.0
        %2657 = vmatpush1.msra.mxu0 0.0
        %2658 = vmatprep.subr.mxu0 0.0
        %2659 = vmatpush1.msra.mxu0 0.0
        %2660 = vmatprep.subr.mxu0 0.0
        %2661 = vmatpush1.msra.mxu0 0.0
        %2662 = vmatprep.subr.mxu0 0.0
        %2663 = vmatpush1.msra.mxu0 0.0
        %2664 = vmatprep.subr.mxu0 0.0
        %2665 = vmatpush1.msra.mxu0 0.0
        %2666 = vmatprep.subr.mxu0 0.0
        %2667 = vmatpush1.msra.mxu0 0.0
        %2668 = vmatprep.subr.mxu0 0.0
        %2669 = vmatpush1.msra.mxu0 0.0
        %2670 = vmatprep.subr.mxu0 0.0
        %2671 = vmatpush1.msra.mxu0 0.0
        %2672 = vmatprep.subr.mxu0 0.0
        %2673 = vmatpush1.msra.mxu0 0.0
        %2674 = vmatprep.subr.mxu0 0.0
        %2675 = vmatpush1.msra.mxu0 0.0
        %2676 = vmatprep.subr.mxu0 0.0
        %2677 = vmatpush1.msra.mxu0 0.0
        %2678 = vmatprep.subr.mxu0 0.0
        %2679 = vmatpush1.msra.mxu0 0.0
        %2680 = vmatprep.subr.mxu0 0.0
        %2681 = vmatpush1.msra.mxu0 0.0
        %2682 = vmatprep.subr.mxu0 0.0
        %2683 = vmatpush1.msra.mxu0 0.0
        %2684 = vmatprep.subr.mxu0 0.0
        %2685 = vmatpush1.msra.mxu0 0.0
        %2686 = vmatprep.subr.mxu0 0.0
        %2687 = vmatpush1.msra.mxu0 0.0
        %2688 = vmatprep.subr.mxu0 0.0
        %2689 = vmatpush1.msra.mxu0 0.0
        %2690 = vmatprep.subr.mxu0 0.0
        %2691 = vmatpush1.msra.mxu0 0.0
        %2692 = vmatprep.subr.mxu0 0.0
        %2693 = vmatpush1.msra.mxu0 0.0
        %2694 = vmatprep.subr.mxu0 0.0
        %2695 = vmatpush1.msra.mxu0 0.0
        %2696 = vmatprep.subr.mxu0 0.0
        %2697 = vmatpush1.msra.mxu0 0.0
        %2698 = vmatprep.subr.mxu0 0.0
        %2699 = vmatpush1.msra.mxu0 0.0
        %2700 = vmatprep.subr.mxu0 0.0
        %2701 = vmatpush1.msra.mxu0 0.0
        %2702 = vmatprep.subr.mxu0 0.0
        %2703 = vmatpush1.msra.mxu0 0.0
        %2704 = vmatprep.subr.mxu0 0.0
        %2705 = vmatpush1.msra.mxu0 0.0
        %2706 = vmatprep.subr.mxu0 0.0
        %2707 = vmatpush1.msra.mxu0 0.0
        %2708 = vmatprep.subr.mxu0 0.0
        %2709 = vmatpush1.msra.mxu0 0.0
        %2710 = vmatprep.subr.mxu0 0.0
        %2711 = vmatpush1.msra.mxu0 0.0
        %2712 = vmatprep.mubr.f32.mxu0 0.0
        %2713 = vmatmul.mubr.f32.gmra.mrb[0].mxu0 %v2646
        %v2714 = vpop.f32.mrb[0].mxu0
        %v2715 = vadd.f32 0.0, %v2714
        %v2716 = vpop.f32.mrb[0].mxu0
        %v2717 = vadd.f32 0.0, %v2716
        %2718 = vdwg.mxu0
        %2719 = vset.pattern.permute.xlu0 17
        %2720 = vperm.xlu0 %2719, %v522
        %v2721 = vpop.permute.xlu0 %2720
        %v2723 = vmul.f32 %v2715, %v2721
        %v2724 = vmul.f32 %v2717, %v2721
        %2725 = vset.pattern.permute.xlu0 17
        %2726 = vperm.xlu0 %2725, %v523
        %v2727 = vpop.permute.xlu0 %2726
        %v2729 = vadd.f32 %v2723, %v2727
        %v2730 = vadd.f32 %v2724, %v2727
        %v2731 = vmax.f32 %v2729, 0.0
        %v2732 = vmax.f32 %v2730, 0.0
        %v2733 = vadd.f32 %v2731, %v2158
        %v2734 = vadd.f32 %v2732, %v2159
        %2735 = vst [vmem:[%s250] sm:$0xff] %v2733
        %2736 = vst [vmem:[%s250 + $0x8] sm:$0xff] %v2734
        %p2737 = scmp.lt.s32.totalorder %s18, 1
        %s2738 = scalar_select %p2737, %s18, 1
        %s2739 = smul.addr %s2738, 2
        %s2740 = smul.addr %s2739, 8
        %s2741 = scalar_lea.vmem %s5, %s2740
        // Predicated region
        $region49: #{mfrf_dila_submeter.1} parent=39 // pred_check
          %p2742 = pneg %p146
        $region50: #{mfrf_dila_submeter.1} parent=39 // pred_check_branch
          %2744 = sbr.rel (%p2742) target = $region52
        $region51: #{mfrf_dila_submeter.1} parent=39 // pred_region
          _
        $region52: #{mfrf_dila_submeter.1} parent=39 // pred_fallthru
          _
      $region40: #{mfrf_dila_submeter.1} parent=5 // pred_fallthru
        _
      %p2745 = scmp.le.s32.totalorder 2, %s13
      // Predicated region
      $region53: #{mfrf_dila_submeter.1} parent=5 // pred_check
        %p2746 = pneg %p2745
      $region54: #{mfrf_dila_submeter.1} parent=5 // pred_check_branch
        %2748 = sbr.rel (%p2746) target = $region56
      $region55: #{mfrf_dila_submeter.1} parent=5 // pred_region
        %s2749 = ssub.s32 %s13, 2
        // Predicated region
        $region57: #{mfrf_dila_submeter.1} parent=55 // pred_check
          %p2750 = pneg %p152
        $region58: #{mfrf_dila_submeter.1} parent=55 // pred_check_branch
          %2752 = sbr.rel (%p2750) target = $region60
        $region59: #{mfrf_dila_submeter.1} parent=55 // pred_region
          %p2753 = scmp.lt.s32.totalorder %s19, 1
          %s2754 = scalar_select %p2753, %s19, 1
          %s2755 = smul.addr %s2754, 2
          %s2756 = smul.addr %s2755, 8
          %s2757 = scalar_lea.vmem %s5, %s2756
        $region60: #{mfrf_dila_submeter.1} parent=55 // pred_fallthru
          _
      $region56: #{mfrf_dila_submeter.1} parent=5 // pred_fallthru
        _
    $region6: #{mfrf_dila_submeter.1} parent=1 // loop_footer
      %s17 = sadd.s32 1, %s13
    $region7: #{mfrf_dila_submeter.1} parent=1 // loop_footer_branch
      %12 = sbr.rel target = $region3
    $region8: #{mfrf_dila_submeter.1} parent=1 // loop_exit
      _
    %2758 = vsyncpa [#allocation3], 1
    %s2759 = scalar_lea.sflag [#allocation3], 1
    %2760 = vsyncpa %s2759, 1
    %2761 = vsyncpa [#allocation5], 1

</llo_original>
